<compile_context>
chip_gen: v7x
topology: tpu7x:2x2x1
jax: 0.10.0
libtpu: 0.0.40
codegen_flags: <defaults>
</compile_context>

<pallas_src>
import functools

import jax
import jax.numpy as jnp
from jax.experimental import pallas as pl
from jax.experimental.pallas import tpu as pltpu

channels = 1
img_size = 32
img_shape = (channels, img_size, img_size)
latent_dim = 100
n_classes = 10
IMG_FLAT = channels * img_size * img_size          # 1024
K0 = latent_dim + n_classes                        # 110
K0_PAD = 128                                       # padded contraction dim
BN_EPS = 0.8  # nn.BatchNorm1d(out_feat, 0.8): second positional arg is eps


def generator_kernel(mask_ref, x_ref,
                     w1_ref, b1_ref,
                     w2_ref, g2_ref, be2_ref,
                     w3_ref, g3_ref, be3_ref,
                     w4_ref, g4_ref, be4_ref,
                     w5_ref, b5_ref,
                     out_ref, *, b_true):
    b_pad = x_ref.shape[0]
    use_mask = (b_true != b_pad)          # trace-time constant
    inv_b = 1.0 / float(b_true)

    def linear(h, w_ref, b_ref=None):
        # bf16 operands, f32 accumulate on the MXU.
        acc = jnp.dot(h.astype(jnp.bfloat16), w_ref[...],
                      preferred_element_type=jnp.float32)
        if b_ref is not None:
            acc = acc + b_ref[...]
        return acc

    def batchnorm(h, g_ref, be_ref):
        # Training-mode BatchNorm1d: biased batch variance, eps=0.8.
        # One-pass stats: v = E[h^2] - m^2, masked to the true batch rows.
        if use_mask:
            mask = mask_ref[...]                                   # (B_pad, 1) f32
            hm = h * mask
            m = jnp.sum(hm, axis=0, keepdims=True) * inv_b
            ex2 = jnp.sum(hm * h, axis=0, keepdims=True) * inv_b
        else:
            m = jnp.mean(h, axis=0, keepdims=True)
            ex2 = jnp.mean(h * h, axis=0, keepdims=True)
        v = ex2 - m * m
        # Fused affine: one scale / one shift over the (B, feat) tile.
        scale = g_ref[...] * jax.lax.rsqrt(v + BN_EPS)
        shift = be_ref[...] - m * scale
        return h * scale + shift

    # block(110, 128, normalize=False): Linear -> ReLU
    h = jnp.maximum(linear(x_ref[...], w1_ref, b1_ref), 0.0)
    # block(128, 256): Linear (bias folded into BN) -> BN -> ReLU
    h = jnp.maximum(batchnorm(linear(h, w2_ref), g2_ref, be2_ref), 0.0)
    # block(256, 512)
    h = jnp.maximum(batchnorm(linear(h, w3_ref), g3_ref, be3_ref), 0.0)
    # block(512, 1024)
    h = jnp.maximum(batchnorm(linear(h, w4_ref), g4_ref, be4_ref), 0.0)
    # Linear(1024, 1024) -> Tanh
    out_ref[...] = jnp.tanh(linear(h, w5_ref, b5_ref))


def init_params(key):
    """Kernel-ready params: bf16 weights, w1 pre-padded 110->128 (hoisted)."""
    dims = [K0, 128, 256, 512, 1024, IMG_FLAT]
    keys = jax.random.split(key, 11)
    params = {"emb": jax.random.normal(keys[0], (n_classes, n_classes), jnp.float32)}
    for i in range(5):
        fan_in, fan_out = dims[i], dims[i + 1]
        scale = 1.0 / jnp.sqrt(jnp.float32(fan_in))
        w = jax.random.uniform(keys[2 * i + 1], (fan_in, fan_out),
                               jnp.float32, -1.0, 1.0) * scale
        b = jax.random.uniform(keys[2 * i + 2], (1, fan_out),
                               jnp.float32, -1.0, 1.0) * scale
        if i == 0:
            # Zero-pad contraction dim 110 -> 128 once, store bf16.
            w = jnp.zeros((K0_PAD, fan_out), jnp.float32).at[:K0, :].set(w)
        params[f"w{i+1}"] = w.astype(jnp.bfloat16)
        params[f"b{i+1}"] = b                     # b2/b3/b4 kept for parity only
    # BatchNorm affine params (PyTorch default init: weight=1, bias=0)
    for i, feat in [(2, 256), (3, 512), (4, 1024)]:
        params[f"g{i}"] = jnp.ones((1, feat), jnp.float32)
        params[f"be{i}"] = jnp.zeros((1, feat), jnp.float32)
    return params


def _vmem_limit_bytes():
    # Generation-aware VMEM limit with ~25% headroom for compiler scratch.
    try:
        cap = int(pltpu.get_tpu_info().vmem_capacity_bytes)
        return min(int(cap * 0.75), 96 * 1024 * 1024)
    except Exception:
        return 32 * 1024 * 1024


_VMEM_LIMIT = _vmem_limit_bytes()


@jax.jit
def generator_forward(z, labels, params):
    emb = jnp.take(params["emb"], labels, axis=0)          # (B, n_classes)
    gen_input = jnp.concatenate([emb, z], axis=-1)         # (B, 110)
    B = gen_input.shape[0]
    B_pad = max(16, ((B + 15) // 16) * 16)                 # bf16 sublane tile (16,128)

    # Pad batch and contraction dims with zeros; activations in bf16.
    x = (jnp.zeros((B_pad, K0_PAD), jnp.bfloat16)
         .at[:B, :K0].set(gen_input.astype(jnp.bfloat16)))

    # Row-validity mask so BN statistics use only the true batch rows.
    mask = (jnp.arange(B_pad) < B).astype(jnp.float32).reshape(B_pad, 1)

    args = [mask, x,
            params["w1"], params["b1"],
            params["w2"], params["g2"], params["be2"],
            params["w3"], params["g3"], params["be3"],
            params["w4"], params["g4"], params["be4"],
            params["w5"], params["b5"]]

    # Single invocation (no grid): every operand fully resident in VMEM.
    in_specs = [pl.BlockSpec(a.shape, lambda: (0, 0)) for a in args]

    flops = 2 * B_pad * (K0_PAD * 128 + 128 * 256 + 256 * 512
                         + 512 * 1024 + 1024 * IMG_FLAT)
    bytes_accessed = (sum(int(a.size) * a.dtype.itemsize for a in args)
                      + B_pad * IMG_FLAT * 4)
    cost = pl.CostEstimate(flops=flops,
                           transcendentals=B_pad * IMG_FLAT,   # tanh
                           bytes_accessed=bytes_accessed)

    out = pl.pallas_call(
        functools.partial(generator_kernel, b_true=B),
        out_shape=jax.ShapeDtypeStruct((B_pad, IMG_FLAT), jnp.float32),
        in_specs=in_specs,
        out_specs=pl.BlockSpec((B_pad, IMG_FLAT), lambda: (0, 0)),
        compiler_params=pltpu.CompilerParams(vmem_limit_bytes=_VMEM_LIMIT),
        cost_estimate=cost,
    )(*args)

    # NCHW, matches PyTorch img.view(B, *img_shape)
    return out[:B].reshape(B, *img_shape)


if __name__ == "__main__":
    key = jax.random.PRNGKey(0)
    kp, kz, kl = jax.random.split(key, 3)

    params = init_params(kp)

    B = 2
    z = jax.random.normal(kz, (B, latent_dim), dtype=jnp.float32)
    labels = jax.random.randint(kl, (B,), 0, n_classes)

    img = generator_forward(z, labels, params)
    img = jax.block_until_ready(img)

    assert img.shape == (B, channels, img_size, img_size), img.shape
    assert img.dtype == jnp.float32
    assert bool(jnp.all(jnp.isfinite(img)))
    assert bool(jnp.all(jnp.abs(img) <= 1.0))   # tanh-bounded
    print("KERNEL_OK")
</pallas_src>

<mosaic_0001>
module attributes {stable_mosaic.version = 11 : i64} {
  func.func @generator_kernel(%arg0: memref<16x1xf32, #tpu.memory_space<vmem>>, %arg1: memref<16x128xbf16, #tpu.memory_space<vmem>>, %arg2: memref<128x128xbf16, #tpu.memory_space<vmem>>, %arg3: memref<1x128xf32, #tpu.memory_space<vmem>>, %arg4: memref<128x256xbf16, #tpu.memory_space<vmem>>, %arg5: memref<1x256xf32, #tpu.memory_space<vmem>>, %arg6: memref<1x256xf32, #tpu.memory_space<vmem>>, %arg7: memref<256x512xbf16, #tpu.memory_space<vmem>>, %arg8: memref<1x512xf32, #tpu.memory_space<vmem>>, %arg9: memref<1x512xf32, #tpu.memory_space<vmem>>, %arg10: memref<512x1024xbf16, #tpu.memory_space<vmem>>, %arg11: memref<1x1024xf32, #tpu.memory_space<vmem>>, %arg12: memref<1x1024xf32, #tpu.memory_space<vmem>>, %arg13: memref<1024x1024xbf16, #tpu.memory_space<vmem>>, %arg14: memref<1x1024xf32, #tpu.memory_space<vmem>>, %arg15: memref<16x1024xf32, #tpu.memory_space<vmem>>) attributes {dimension_semantics = [], scalar_prefetch = 0 : i64, scratch_operands = 0 : i64, tpu.core_type = #tpu.core_type<tc>} {
    %c0 = arith.constant 0 : index
    %c0_0 = arith.constant 0 : index
    %0 = vector.load %arg1[%c0, %c0_0] : memref<16x128xbf16, #tpu.memory_space<vmem>>, vector<16x128xbf16>
    %c0_1 = arith.constant 0 : index
    %c0_2 = arith.constant 0 : index
    %1 = vector.load %arg2[%c0_1, %c0_2] : memref<128x128xbf16, #tpu.memory_space<vmem>>, vector<128x128xbf16>
    %cst = arith.constant dense<0.000000e+00> : vector<16x128xf32>
    %2 = tpu.matmul %0, %1, %cst {dimension_numbers = #tpu.dot_dimension_numbers<[1], [0], [0], [1], [0, 0, 1, 1], [], []>} : vector<16x128xbf16>, vector<128x128xbf16>, vector<16x128xf32> -> vector<16x128xf32>
    %c0_3 = arith.constant 0 : index
    %c0_4 = arith.constant 0 : index
    %3 = vector.load %arg3[%c0_3, %c0_4] : memref<1x128xf32, #tpu.memory_space<vmem>>, vector<1x128xf32>
    %4 = vector.broadcast %3 : vector<1x128xf32> to vector<16x128xf32>
    %5 = arith.addf %2, %4 : vector<16x128xf32>
    %cst_5 = arith.constant 0.000000e+00 : f32
    %6 = vector.broadcast %cst_5 : f32 to vector<16x128xf32>
    %7 = arith.maximumf %5, %6 : vector<16x128xf32>
    %8 = arith.truncf %7 : vector<16x128xf32> to vector<16x128xbf16>
    %c0_6 = arith.constant 0 : index
    %c0_7 = arith.constant 0 : index
    %9 = vector.load %arg4[%c0_6, %c0_7] : memref<128x256xbf16, #tpu.memory_space<vmem>>, vector<128x256xbf16>
    %cst_8 = arith.constant dense<0.000000e+00> : vector<16x256xf32>
    %10 = tpu.matmul %8, %9, %cst_8 {dimension_numbers = #tpu.dot_dimension_numbers<[1], [0], [0], [1], [0, 0, 1, 1], [], []>} : vector<16x128xbf16>, vector<128x256xbf16>, vector<16x256xf32> -> vector<16x256xf32>
    %c0_9 = arith.constant 0 : index
    %c0_10 = arith.constant 0 : index
    %11 = vector.load %arg0[%c0_9, %c0_10] : memref<16x1xf32, #tpu.memory_space<vmem>>, vector<16x1xf32>
    %12 = vector.broadcast %11 : vector<16x1xf32> to vector<16x256xf32>
    %13 = arith.mulf %10, %12 : vector<16x256xf32>
    %cst_11 = arith.constant dense<0.000000e+00> : vector<256xf32>
    %14 = vector.multi_reduction <add>, %13, %cst_11 [0] : vector<16x256xf32> to vector<256xf32>
    %15 = vector.shape_cast %14 : vector<256xf32> to vector<1x256xf32>
    %cst_12 = arith.constant 5.000000e-01 : f32
    %16 = vector.broadcast %cst_12 : f32 to vector<1x256xf32>
    %17 = arith.mulf %15, %16 : vector<1x256xf32>
    %18 = arith.mulf %13, %10 : vector<16x256xf32>
    %cst_13 = arith.constant dense<0.000000e+00> : vector<256xf32>
    %19 = vector.multi_reduction <add>, %18, %cst_13 [0] : vector<16x256xf32> to vector<256xf32>
    %20 = vector.shape_cast %19 : vector<256xf32> to vector<1x256xf32>
    %cst_14 = arith.constant 5.000000e-01 : f32
    %21 = vector.broadcast %cst_14 : f32 to vector<1x256xf32>
    %22 = arith.mulf %20, %21 : vector<1x256xf32>
    %23 = arith.mulf %17, %17 : vector<1x256xf32>
    %24 = arith.subf %22, %23 : vector<1x256xf32>
    %c0_15 = arith.constant 0 : index
    %c0_16 = arith.constant 0 : index
    %25 = vector.load %arg5[%c0_15, %c0_16] : memref<1x256xf32, #tpu.memory_space<vmem>>, vector<1x256xf32>
    %cst_17 = arith.constant 8.000000e-01 : f32
    %26 = vector.broadcast %cst_17 : f32 to vector<1x256xf32>
    %27 = arith.addf %24, %26 : vector<1x256xf32>
    %28 = math.rsqrt %27 : vector<1x256xf32>
    %29 = arith.mulf %25, %28 : vector<1x256xf32>
    %c0_18 = arith.constant 0 : index
    %c0_19 = arith.constant 0 : index
    %30 = vector.load %arg6[%c0_18, %c0_19] : memref<1x256xf32, #tpu.memory_space<vmem>>, vector<1x256xf32>
    %31 = arith.mulf %17, %29 : vector<1x256xf32>
    %32 = arith.subf %30, %31 : vector<1x256xf32>
    %33 = vector.broadcast %29 : vector<1x256xf32> to vector<16x256xf32>
    %34 = arith.mulf %10, %33 : vector<16x256xf32>
    %35 = vector.broadcast %32 : vector<1x256xf32> to vector<16x256xf32>
    %36 = arith.addf %34, %35 : vector<16x256xf32>
    %cst_20 = arith.constant 0.000000e+00 : f32
    %37 = vector.broadcast %cst_20 : f32 to vector<16x256xf32>
    %38 = arith.maximumf %36, %37 : vector<16x256xf32>
    %39 = arith.truncf %38 : vector<16x256xf32> to vector<16x256xbf16>
    %c0_21 = arith.constant 0 : index
    %c0_22 = arith.constant 0 : index
    %40 = vector.load %arg7[%c0_21, %c0_22] : memref<256x512xbf16, #tpu.memory_space<vmem>>, vector<256x512xbf16>
    %cst_23 = arith.constant dense<0.000000e+00> : vector<16x512xf32>
    %41 = tpu.matmul %39, %40, %cst_23 {dimension_numbers = #tpu.dot_dimension_numbers<[1], [0], [0], [1], [0, 0, 1, 1], [], []>} : vector<16x256xbf16>, vector<256x512xbf16>, vector<16x512xf32> -> vector<16x512xf32>
    %c0_24 = arith.constant 0 : index
    %c0_25 = arith.constant 0 : index
    %42 = vector.load %arg0[%c0_24, %c0_25] : memref<16x1xf32, #tpu.memory_space<vmem>>, vector<16x1xf32>
    %43 = vector.broadcast %42 : vector<16x1xf32> to vector<16x512xf32>
    %44 = arith.mulf %41, %43 : vector<16x512xf32>
    %cst_26 = arith.constant dense<0.000000e+00> : vector<512xf32>
    %45 = vector.multi_reduction <add>, %44, %cst_26 [0] : vector<16x512xf32> to vector<512xf32>
    %46 = vector.shape_cast %45 : vector<512xf32> to vector<1x512xf32>
    %cst_27 = arith.constant 5.000000e-01 : f32
    %47 = vector.broadcast %cst_27 : f32 to vector<1x512xf32>
    %48 = arith.mulf %46, %47 : vector<1x512xf32>
    %49 = arith.mulf %44, %41 : vector<16x512xf32>
    %cst_28 = arith.constant dense<0.000000e+00> : vector<512xf32>
    %50 = vector.multi_reduction <add>, %49, %cst_28 [0] : vector<16x512xf32> to vector<512xf32>
    %51 = vector.shape_cast %50 : vector<512xf32> to vector<1x512xf32>
    %cst_29 = arith.constant 5.000000e-01 : f32
    %52 = vector.broadcast %cst_29 : f32 to vector<1x512xf32>
    %53 = arith.mulf %51, %52 : vector<1x512xf32>
    %54 = arith.mulf %48, %48 : vector<1x512xf32>
    %55 = arith.subf %53, %54 : vector<1x512xf32>
    %c0_30 = arith.constant 0 : index
    %c0_31 = arith.constant 0 : index
    %56 = vector.load %arg8[%c0_30, %c0_31] : memref<1x512xf32, #tpu.memory_space<vmem>>, vector<1x512xf32>
    %cst_32 = arith.constant 8.000000e-01 : f32
    %57 = vector.broadcast %cst_32 : f32 to vector<1x512xf32>
    %58 = arith.addf %55, %57 : vector<1x512xf32>
    %59 = math.rsqrt %58 : vector<1x512xf32>
    %60 = arith.mulf %56, %59 : vector<1x512xf32>
    %c0_33 = arith.constant 0 : index
    %c0_34 = arith.constant 0 : index
    %61 = vector.load %arg9[%c0_33, %c0_34] : memref<1x512xf32, #tpu.memory_space<vmem>>, vector<1x512xf32>
    %62 = arith.mulf %48, %60 : vector<1x512xf32>
    %63 = arith.subf %61, %62 : vector<1x512xf32>
    %64 = vector.broadcast %60 : vector<1x512xf32> to vector<16x512xf32>
    %65 = arith.mulf %41, %64 : vector<16x512xf32>
    %66 = vector.broadcast %63 : vector<1x512xf32> to vector<16x512xf32>
    %67 = arith.addf %65, %66 : vector<16x512xf32>
    %cst_35 = arith.constant 0.000000e+00 : f32
    %68 = vector.broadcast %cst_35 : f32 to vector<16x512xf32>
    %69 = arith.maximumf %67, %68 : vector<16x512xf32>
    %70 = arith.truncf %69 : vector<16x512xf32> to vector<16x512xbf16>
    %c0_36 = arith.constant 0 : index
    %c0_37 = arith.constant 0 : index
    %71 = vector.load %arg10[%c0_36, %c0_37] : memref<512x1024xbf16, #tpu.memory_space<vmem>>, vector<512x1024xbf16>
    %cst_38 = arith.constant dense<0.000000e+00> : vector<16x1024xf32>
    %72 = tpu.matmul %70, %71, %cst_38 {dimension_numbers = #tpu.dot_dimension_numbers<[1], [0], [0], [1], [0, 0, 1, 1], [], []>} : vector<16x512xbf16>, vector<512x1024xbf16>, vector<16x1024xf32> -> vector<16x1024xf32>
    %c0_39 = arith.constant 0 : index
    %c0_40 = arith.constant 0 : index
    %73 = vector.load %arg0[%c0_39, %c0_40] : memref<16x1xf32, #tpu.memory_space<vmem>>, vector<16x1xf32>
    %74 = vector.broadcast %73 : vector<16x1xf32> to vector<16x1024xf32>
    %75 = arith.mulf %72, %74 : vector<16x1024xf32>
    %cst_41 = arith.constant dense<0.000000e+00> : vector<1024xf32>
    %76 = vector.multi_reduction <add>, %75, %cst_41 [0] : vector<16x1024xf32> to vector<1024xf32>
    %77 = vector.shape_cast %76 : vector<1024xf32> to vector<1x1024xf32>
    %cst_42 = arith.constant 5.000000e-01 : f32
    %78 = vector.broadcast %cst_42 : f32 to vector<1x1024xf32>
    %79 = arith.mulf %77, %78 : vector<1x1024xf32>
    %80 = arith.mulf %75, %72 : vector<16x1024xf32>
    %cst_43 = arith.constant dense<0.000000e+00> : vector<1024xf32>
    %81 = vector.multi_reduction <add>, %80, %cst_43 [0] : vector<16x1024xf32> to vector<1024xf32>
    %82 = vector.shape_cast %81 : vector<1024xf32> to vector<1x1024xf32>
    %cst_44 = arith.constant 5.000000e-01 : f32
    %83 = vector.broadcast %cst_44 : f32 to vector<1x1024xf32>
    %84 = arith.mulf %82, %83 : vector<1x1024xf32>
    %85 = arith.mulf %79, %79 : vector<1x1024xf32>
    %86 = arith.subf %84, %85 : vector<1x1024xf32>
    %c0_45 = arith.constant 0 : index
    %c0_46 = arith.constant 0 : index
    %87 = vector.load %arg11[%c0_45, %c0_46] : memref<1x1024xf32, #tpu.memory_space<vmem>>, vector<1x1024xf32>
    %cst_47 = arith.constant 8.000000e-01 : f32
    %88 = vector.broadcast %cst_47 : f32 to vector<1x1024xf32>
    %89 = arith.addf %86, %88 : vector<1x1024xf32>
    %90 = math.rsqrt %89 : vector<1x1024xf32>
    %91 = arith.mulf %87, %90 : vector<1x1024xf32>
    %c0_48 = arith.constant 0 : index
    %c0_49 = arith.constant 0 : index
    %92 = vector.load %arg12[%c0_48, %c0_49] : memref<1x1024xf32, #tpu.memory_space<vmem>>, vector<1x1024xf32>
    %93 = arith.mulf %79, %91 : vector<1x1024xf32>
    %94 = arith.subf %92, %93 : vector<1x1024xf32>
    %95 = vector.broadcast %91 : vector<1x1024xf32> to vector<16x1024xf32>
    %96 = arith.mulf %72, %95 : vector<16x1024xf32>
    %97 = vector.broadcast %94 : vector<1x1024xf32> to vector<16x1024xf32>
    %98 = arith.addf %96, %97 : vector<16x1024xf32>
    %cst_50 = arith.constant 0.000000e+00 : f32
    %99 = vector.broadcast %cst_50 : f32 to vector<16x1024xf32>
    %100 = arith.maximumf %98, %99 : vector<16x1024xf32>
    %101 = arith.truncf %100 : vector<16x1024xf32> to vector<16x1024xbf16>
    %c0_51 = arith.constant 0 : index
    %c0_52 = arith.constant 0 : index
    %102 = vector.load %arg13[%c0_51, %c0_52] : memref<1024x1024xbf16, #tpu.memory_space<vmem>>, vector<1024x1024xbf16>
    %cst_53 = arith.constant dense<0.000000e+00> : vector<16x1024xf32>
    %103 = tpu.matmul %101, %102, %cst_53 {dimension_numbers = #tpu.dot_dimension_numbers<[1], [0], [0], [1], [0, 0, 1, 1], [], []>} : vector<16x1024xbf16>, vector<1024x1024xbf16>, vector<16x1024xf32> -> vector<16x1024xf32>
    %c0_54 = arith.constant 0 : index
    %c0_55 = arith.constant 0 : index
    %104 = vector.load %arg14[%c0_54, %c0_55] : memref<1x1024xf32, #tpu.memory_space<vmem>>, vector<1x1024xf32>
    %105 = vector.broadcast %104 : vector<1x1024xf32> to vector<16x1024xf32>
    %106 = arith.addf %103, %105 : vector<16x1024xf32>
    %107 = math.tanh %106 : vector<16x1024xf32>
    %c0_56 = arith.constant 0 : index
    %c0_57 = arith.constant 0 : index
    %108 = vector.load %arg15[%c0_56, %c0_57] : memref<16x1024xf32, #tpu.memory_space<vmem>>, vector<16x1024xf32>
    tpu.vector_store %arg15[%c0_56, %c0_57], %107 {strides = array<i32>} : memref<16x1024xf32, #tpu.memory_space<vmem>>, vector<16x1024xf32>,
    return
  }
}

</mosaic_0001>

<llo_original>
// kernel: generator_forward.1
$region0: #{generator_forward.1}
  #allocation0 [shape = 'u32[]', space=smem, size = 0x4, offset = 0x4, fixed_abs, tag = 'smem constant byte address 0x4 - core index']
  #allocation1 [shape = 'u32[144,128]{1,0:T(1,128)}', space=vmem, size = 0x12000, scoped, tag = 'internal scratch']
  %s0 = inlined_call_operand.vmem [shape: f32[16,1], index: 0, kind: input, shape index: {}]
  %s1 = inlined_call_operand.vmem [shape: bf16[16,128], index: 1, kind: input, shape index: {}]
  %s2 = inlined_call_operand.hbm [shape: bf16[128,128], index: 2, kind: input, shape index: {}]
  %s3 = inlined_call_operand.hbm [shape: f32[1,128], index: 3, kind: input, shape index: {}]
  %s4 = inlined_call_operand.hbm [shape: bf16[128,256], index: 4, kind: input, shape index: {}]
  %s5 = inlined_call_operand.hbm [shape: f32[1,256], index: 5, kind: input, shape index: {}]
  %s6 = inlined_call_operand.hbm [shape: f32[1,256], index: 6, kind: input, shape index: {}]
  %s7 = inlined_call_operand.hbm [shape: bf16[256,512], index: 7, kind: input, shape index: {}]
  %s8 = inlined_call_operand.hbm [shape: f32[1,512], index: 8, kind: input, shape index: {}]
  %s9 = inlined_call_operand.hbm [shape: f32[1,512], index: 9, kind: input, shape index: {}]
  %s10 = inlined_call_operand.hbm [shape: bf16[512,1024], index: 10, kind: input, shape index: {}]
  %s11 = inlined_call_operand.hbm [shape: f32[1,1024], index: 11, kind: input, shape index: {}]
  %s12 = inlined_call_operand.hbm [shape: f32[1,1024], index: 12, kind: input, shape index: {}]
  %s13 = inlined_call_operand.hbm [shape: bf16[1024,1024], index: 13, kind: input, shape index: {}]
  %s14 = inlined_call_operand.hbm [shape: f32[1,1024], index: 14, kind: input, shape index: {}]
  %s15 = inlined_call_operand.vmem [shape: f32[16,1024], index: 15, kind: output, shape index: {}]
  %s16 = sld [smem:[#allocation0]]
  $region122: #{generator_forward.1} parent=0
    _
  %s18 = ssub.s32 1, %s16
  %s19 = scalar_select 0, %s18, %s16
  $region1: #{generator_forward.1} parent=0
    #allocation2 [shape = 'u8[32768]{0}', space=vmem, size = 0x8000, scoped, tag = 'input window, operand 2, single buffered']
    #allocation3 [shape = 's32[1]{0}', space=sflag, size = 0x4, scoped, tag = 'scoped memory for generator_forward.1']
    #allocation4 [shape = 'u8[512]{0}', space=vmem, size = 0x400, scoped, tag = 'input window, operand 3, single buffered']
    #allocation5 [shape = 's32[1]{0}', space=sflag, size = 0x4, scoped, tag = 'scoped memory for generator_forward.1']
    #allocation6 [shape = 'u8[65536]{0}', space=vmem, size = 0x10000, scoped, tag = 'input window, operand 4, single buffered']
    #allocation7 [shape = 'u8[1024]{0}', space=vmem, size = 0x400, scoped, tag = 'input window, operand 5, single buffered']
    #allocation8 [shape = 's32[1]{0}', space=sflag, size = 0x4, scoped, tag = 'scoped memory for generator_forward.1']
    #allocation9 [shape = 'u8[1024]{0}', space=vmem, size = 0x400, scoped, tag = 'input window, operand 6, single buffered']
    #allocation10 [shape = 'u8[262144]{0}', space=vmem, size = 0x40000, scoped, tag = 'input window, operand 7, single buffered']
    #allocation11 [shape = 's32[1]{0}', space=sflag, size = 0x4, scoped, tag = 'scoped memory for generator_forward.1']
    #allocation12 [shape = 'u8[2048]{0}', space=vmem, size = 0x800, scoped, tag = 'input window, operand 8, single buffered']
    #allocation13 [shape = 'u8[2048]{0}', space=vmem, size = 0x800, scoped, tag = 'input window, operand 9, single buffered']
    #allocation14 [shape = 's32[1]{0}', space=sflag, size = 0x4, scoped, tag = 'scoped memory for generator_forward.1']
    #allocation15 [shape = 'u8[1048576]{0}', space=vmem, size = 0x100000, scoped, tag = 'input window, operand 10, single buffered']
    #allocation16 [shape = 'u8[4096]{0}', space=vmem, size = 0x1000, scoped, tag = 'input window, operand 11, single buffered']
    #allocation17 [shape = 's32[1]{0}', space=sflag, size = 0x4, scoped, tag = 'scoped memory for generator_forward.1']
    #allocation18 [shape = 'u8[4096]{0}', space=vmem, size = 0x1000, scoped, tag = 'input window, operand 12, single buffered']
    #allocation19 [shape = 'u8[2097152]{0}', space=vmem, size = 0x200000, scoped, tag = 'input window, operand 13, single buffered']
    #allocation20 [shape = 's32[1]{0}', space=sflag, size = 0x4, scoped, tag = 'scoped memory for generator_forward.1']
    #allocation21 [shape = 'u8[4096]{0}', space=vmem, size = 0x1000, scoped, tag = 'input window, operand 14, single buffered']
    %20 = vsyncpa [#allocation3], 0
    %21 = vsyncpa [#allocation5], 0
    %22 = vsyncpa [#allocation8], 0
    %23 = vsyncpa [#allocation11], 0
    %24 = vsyncpa [#allocation14], 0
    %25 = vsyncpa [#allocation17], 0
    %26 = vsyncpa [#allocation20], 0
    // Predicated region
    $region2: #{generator_forward.1} parent=1 // pred_check
      _
    $region3: #{generator_forward.1} parent=1 // pred_check_branch
      %28 = sbr.rel (0) target = $region5
    $region4: #{generator_forward.1} parent=1 // pred_region
      _
    $region5: #{generator_forward.1} parent=1 // pred_fallthru
      _
    // Predicated region
    $region6: #{generator_forward.1} parent=1 // pred_check
      _
    $region7: #{generator_forward.1} parent=1 // pred_check_branch
      %30 = sbr.rel (0) target = $region9
    $region8: #{generator_forward.1} parent=1 // pred_region
      _
    $region9: #{generator_forward.1} parent=1 // pred_fallthru
      _
    // Predicated region
    $region10: #{generator_forward.1} parent=1 // pred_check
      _
    $region11: #{generator_forward.1} parent=1 // pred_check_branch
      %32 = sbr.rel (0) target = $region13
    $region12: #{generator_forward.1} parent=1 // pred_region
      %s34 = ssub.s32 1024, 1024
      %35 = vsyncadd [#allocation3], %s34
      %s36 = sshll.u32 [#allocation2], 4
      %s37 = int_to_ptr.vmem [resolvable:$true] %s36
      %42 = dma.hbm_to_vmem [thread:$0]  %s2, 1024, %s37, [#allocation3], 64, 64, 4
    $region13: #{generator_forward.1} parent=1 // pred_fallthru
      _
    // Predicated region
    $region14: #{generator_forward.1} parent=1 // pred_check
      _
    $region15: #{generator_forward.1} parent=1 // pred_check_branch
      %44 = sbr.rel (0) target = $region17
    $region16: #{generator_forward.1} parent=1 // pred_region
      %s46 = ssub.s32 16, 16
      %47 = vsyncadd [#allocation5], %s46
      %s49 = sshll.u32 [#allocation4], 4
      %s50 = int_to_ptr.vmem [resolvable:$true] %s49
      %52 = dma.hbm_to_vmem [thread:$0]  %s3, 16, %s50, [#allocation5]
    $region17: #{generator_forward.1} parent=1 // pred_fallthru
      _
    // Predicated region
    $region18: #{generator_forward.1} parent=1 // pred_check
      _
    $region19: #{generator_forward.1} parent=1 // pred_check_branch
      %54 = sbr.rel (0) target = $region21
    $region20: #{generator_forward.1} parent=1 // pred_region
      %s56 = ssub.s32 2048, 2048
      %57 = vsyncadd [#allocation5], %s56
      %s58 = sshll.u32 [#allocation6], 4
      %s59 = int_to_ptr.vmem [resolvable:$true] %s58
      %64 = dma.hbm_to_vmem [thread:$0]  %s4, 2048, %s59, [#allocation5], 128, 128, 8
    $region21: #{generator_forward.1} parent=1 // pred_fallthru
      _
    // Predicated region
    $region22: #{generator_forward.1} parent=1 // pred_check
      _
    $region23: #{generator_forward.1} parent=1 // pred_check_branch
      %66 = sbr.rel (0) target = $region25
    $region24: #{generator_forward.1} parent=1 // pred_region
      %s68 = ssub.s32 32, 32
      %69 = vsyncadd [#allocation8], %s68
      %s71 = sshll.u32 [#allocation7], 4
      %s72 = int_to_ptr.vmem [resolvable:$true] %s71
      %74 = dma.hbm_to_vmem [thread:$0]  %s5, 32, %s72, [#allocation8]
    $region25: #{generator_forward.1} parent=1 // pred_fallthru
      _
    // Predicated region
    $region26: #{generator_forward.1} parent=1 // pred_check
      _
    $region27: #{generator_forward.1} parent=1 // pred_check_branch
      %76 = sbr.rel (0) target = $region29
    $region28: #{generator_forward.1} parent=1 // pred_region
      %s78 = ssub.s32 32, 32
      %79 = vsyncadd [#allocation8], %s78
      %s81 = sshll.u32 [#allocation9], 4
      %s82 = int_to_ptr.vmem [resolvable:$true] %s81
      %84 = dma.hbm_to_vmem [thread:$0]  %s6, 32, %s82, [#allocation8]
    $region29: #{generator_forward.1} parent=1 // pred_fallthru
      _
    // Predicated region
    $region30: #{generator_forward.1} parent=1 // pred_check
      _
    $region31: #{generator_forward.1} parent=1 // pred_check_branch
      %86 = sbr.rel (0) target = $region33
    $region32: #{generator_forward.1} parent=1 // pred_region
      %s88 = ssub.s32 8192, 8192
      %89 = vsyncadd [#allocation11], %s88
      %s90 = sshll.u32 [#allocation10], 4
      %s91 = int_to_ptr.vmem [resolvable:$true] %s90
      %96 = dma.hbm_to_vmem [thread:$0]  %s7, 8192, %s91, [#allocation11], 256, 256, 16
    $region33: #{generator_forward.1} parent=1 // pred_fallthru
      _
    // Predicated region
    $region34: #{generator_forward.1} parent=1 // pred_check
      _
    $region35: #{generator_forward.1} parent=1 // pred_check_branch
      %98 = sbr.rel (0) target = $region37
    $region36: #{generator_forward.1} parent=1 // pred_region
      %s100 = ssub.s32 64, 64
      %101 = vsyncadd [#allocation11], %s100
      %s103 = sshll.u32 [#allocation12], 4
      %s104 = int_to_ptr.vmem [resolvable:$true] %s103
      %106 = dma.hbm_to_vmem [thread:$0]  %s8, 64, %s104, [#allocation11]
    $region37: #{generator_forward.1} parent=1 // pred_fallthru
      _
    // Predicated region
    $region38: #{generator_forward.1} parent=1 // pred_check
      _
    $region39: #{generator_forward.1} parent=1 // pred_check_branch
      %108 = sbr.rel (0) target = $region41
    $region40: #{generator_forward.1} parent=1 // pred_region
      %s110 = ssub.s32 64, 64
      %111 = vsyncadd [#allocation14], %s110
      %s113 = sshll.u32 [#allocation13], 4
      %s114 = int_to_ptr.vmem [resolvable:$true] %s113
      %116 = dma.hbm_to_vmem [thread:$0]  %s9, 64, %s114, [#allocation14]
    $region41: #{generator_forward.1} parent=1 // pred_fallthru
      _
    // Predicated region
    $region42: #{generator_forward.1} parent=1 // pred_check
      _
    $region43: #{generator_forward.1} parent=1 // pred_check_branch
      %118 = sbr.rel (0) target = $region45
    $region44: #{generator_forward.1} parent=1 // pred_region
      %s120 = ssub.s32 32768, 32768
      %121 = vsyncadd [#allocation14], %s120
      %s122 = sshll.u32 [#allocation15], 4
      %s123 = int_to_ptr.vmem [resolvable:$true] %s122
      %128 = dma.hbm_to_vmem [thread:$0]  %s10, 32768, %s123, [#allocation14], 512, 512, 32
    $region45: #{generator_forward.1} parent=1 // pred_fallthru
      _
    // Predicated region
    $region46: #{generator_forward.1} parent=1 // pred_check
      _
    $region47: #{generator_forward.1} parent=1 // pred_check_branch
      %130 = sbr.rel (0) target = $region49
    $region48: #{generator_forward.1} parent=1 // pred_region
      %s132 = ssub.s32 128, 128
      %133 = vsyncadd [#allocation17], %s132
      %s135 = sshll.u32 [#allocation16], 4
      %s136 = int_to_ptr.vmem [resolvable:$true] %s135
      %138 = dma.hbm_to_vmem [thread:$0]  %s11, 128, %s136, [#allocation17]
    $region49: #{generator_forward.1} parent=1 // pred_fallthru
      _
    // Predicated region
    $region50: #{generator_forward.1} parent=1 // pred_check
      _
    $region51: #{generator_forward.1} parent=1 // pred_check_branch
      %140 = sbr.rel (0) target = $region53
    $region52: #{generator_forward.1} parent=1 // pred_region
      %s142 = ssub.s32 128, 128
      %143 = vsyncadd [#allocation17], %s142
      %s145 = sshll.u32 [#allocation18], 4
      %s146 = int_to_ptr.vmem [resolvable:$true] %s145
      %148 = dma.hbm_to_vmem [thread:$0]  %s12, 128, %s146, [#allocation17]
    $region53: #{generator_forward.1} parent=1 // pred_fallthru
      _
    // Predicated region
    $region54: #{generator_forward.1} parent=1 // pred_check
      _
    $region55: #{generator_forward.1} parent=1 // pred_check_branch
      %150 = sbr.rel (0) target = $region57
    $region56: #{generator_forward.1} parent=1 // pred_region
      %s152 = ssub.s32 65536, 65536
      %153 = vsyncadd [#allocation20], %s152
      %s154 = sshll.u32 [#allocation19], 4
      %s155 = int_to_ptr.vmem [resolvable:$true] %s154
      %160 = dma.hbm_to_vmem [thread:$0]  %s13, 65536, %s155, [#allocation20], 512, 512, 32
    $region57: #{generator_forward.1} parent=1 // pred_fallthru
      _
    // Predicated region
    $region58: #{generator_forward.1} parent=1 // pred_check
      _
    $region59: #{generator_forward.1} parent=1 // pred_check_branch
      %162 = sbr.rel (0) target = $region61
    $region60: #{generator_forward.1} parent=1 // pred_region
      %s164 = ssub.s32 128, 128
      %165 = vsyncadd [#allocation20], %s164
      %s167 = sshll.u32 [#allocation21], 4
      %s168 = int_to_ptr.vmem [resolvable:$true] %s167
      %170 = dma.hbm_to_vmem [thread:$0]  %s14, 128, %s168, [#allocation20]
    $region61: #{generator_forward.1} parent=1 // pred_fallthru
      _
    // Predicated region
    $region62: #{generator_forward.1} parent=1 // pred_check
      _
    $region63: #{generator_forward.1} parent=1 // pred_check_branch
      %172 = sbr.rel (0) target = $region65
    $region64: #{generator_forward.1} parent=1 // pred_region
      %173 = dma.done [#allocation3], 1024
    $region65: #{generator_forward.1} parent=1 // pred_fallthru
      _
    // Predicated region
    $region66: #{generator_forward.1} parent=1 // pred_check
      _
    $region67: #{generator_forward.1} parent=1 // pred_check_branch
      %175 = sbr.rel (0) target = $region69
    $region68: #{generator_forward.1} parent=1 // pred_region
      %176 = dma.done [#allocation5], 16
    $region69: #{generator_forward.1} parent=1 // pred_fallthru
      _
    // Predicated region
    $region70: #{generator_forward.1} parent=1 // pred_check
      _
    $region71: #{generator_forward.1} parent=1 // pred_check_branch
      %178 = sbr.rel (0) target = $region73
    $region72: #{generator_forward.1} parent=1 // pred_region
      %179 = dma.done [#allocation5], 2048
    $region73: #{generator_forward.1} parent=1 // pred_fallthru
      _
    // Predicated region
    $region74: #{generator_forward.1} parent=1 // pred_check
      _
    $region75: #{generator_forward.1} parent=1 // pred_check_branch
      %181 = sbr.rel (0) target = $region77
    $region76: #{generator_forward.1} parent=1 // pred_region
      %182 = dma.done [#allocation8], 32
    $region77: #{generator_forward.1} parent=1 // pred_fallthru
      _
    // Predicated region
    $region78: #{generator_forward.1} parent=1 // pred_check
      _
    $region79: #{generator_forward.1} parent=1 // pred_check_branch
      %184 = sbr.rel (0) target = $region81
    $region80: #{generator_forward.1} parent=1 // pred_region
      %185 = dma.done [#allocation8], 32
    $region81: #{generator_forward.1} parent=1 // pred_fallthru
      _
    // Predicated region
    $region82: #{generator_forward.1} parent=1 // pred_check
      _
    $region83: #{generator_forward.1} parent=1 // pred_check_branch
      %187 = sbr.rel (0) target = $region85
    $region84: #{generator_forward.1} parent=1 // pred_region
      %188 = dma.done [#allocation11], 8192
    $region85: #{generator_forward.1} parent=1 // pred_fallthru
      _
    // Predicated region
    $region86: #{generator_forward.1} parent=1 // pred_check
      _
    $region87: #{generator_forward.1} parent=1 // pred_check_branch
      %190 = sbr.rel (0) target = $region89
    $region88: #{generator_forward.1} parent=1 // pred_region
      %191 = dma.done [#allocation11], 64
    $region89: #{generator_forward.1} parent=1 // pred_fallthru
      _
    // Predicated region
    $region90: #{generator_forward.1} parent=1 // pred_check
      _
    $region91: #{generator_forward.1} parent=1 // pred_check_branch
      %193 = sbr.rel (0) target = $region93
    $region92: #{generator_forward.1} parent=1 // pred_region
      %194 = dma.done [#allocation14], 64
    $region93: #{generator_forward.1} parent=1 // pred_fallthru
      _
    // Predicated region
    $region94: #{generator_forward.1} parent=1 // pred_check
      _
    $region95: #{generator_forward.1} parent=1 // pred_check_branch
      %196 = sbr.rel (0) target = $region97
    $region96: #{generator_forward.1} parent=1 // pred_region
      %197 = dma.done [#allocation14], 32768
    $region97: #{generator_forward.1} parent=1 // pred_fallthru
      _
    // Predicated region
    $region98: #{generator_forward.1} parent=1 // pred_check
      _
    $region99: #{generator_forward.1} parent=1 // pred_check_branch
      %199 = sbr.rel (0) target = $region101
    $region100: #{generator_forward.1} parent=1 // pred_region
      %200 = dma.done [#allocation17], 128
    $region101: #{generator_forward.1} parent=1 // pred_fallthru
      _
    // Predicated region
    $region102: #{generator_forward.1} parent=1 // pred_check
      _
    $region103: #{generator_forward.1} parent=1 // pred_check_branch
      %202 = sbr.rel (0) target = $region105
    $region104: #{generator_forward.1} parent=1 // pred_region
      %203 = dma.done [#allocation17], 128
    $region105: #{generator_forward.1} parent=1 // pred_fallthru
      _
    // Predicated region
    $region106: #{generator_forward.1} parent=1 // pred_check
      _
    $region107: #{generator_forward.1} parent=1 // pred_check_branch
      %205 = sbr.rel (0) target = $region109
    $region108: #{generator_forward.1} parent=1 // pred_region
      %206 = dma.done [#allocation20], 65536
    $region109: #{generator_forward.1} parent=1 // pred_fallthru
      _
    // Predicated region
    $region110: #{generator_forward.1} parent=1 // pred_check
      _
    $region111: #{generator_forward.1} parent=1 // pred_check_branch
      %208 = sbr.rel (0) target = $region113
    $region112: #{generator_forward.1} parent=1 // pred_region
      %209 = dma.done [#allocation20], 128
    $region113: #{generator_forward.1} parent=1 // pred_fallthru
      _
    %v211 = vld [vmem:[%s1] sm:$0xf]
    %v212 = vld [vmem:[%s1 + $0x4] sm:$0xf]
    %v213 = vld [vmem:[#allocation2] sm:$0xf]
    %v214 = vld [vmem:[#allocation2 + $0x4] sm:$0xf]
    %v215 = vld [vmem:[#allocation2 + $0x8] sm:$0xf]
    %v216 = vld [vmem:[#allocation2 + $0xc] sm:$0xf]
    %v217 = vld [vmem:[#allocation2 + $0x10] sm:$0xf]
    %v218 = vld [vmem:[#allocation2 + $0x14] sm:$0xf]
    %v219 = vld [vmem:[#allocation2 + $0x18] sm:$0xf]
    %v220 = vld [vmem:[#allocation2 + $0x1c] sm:$0xf]
    %v221 = vld [vmem:[#allocation2 + $0x20] sm:$0xf]
    %v222 = vld [vmem:[#allocation2 + $0x24] sm:$0xf]
    %v223 = vld [vmem:[#allocation2 + $0x28] sm:$0xf]
    %v224 = vld [vmem:[#allocation2 + $0x2c] sm:$0xf]
    %v225 = vld [vmem:[#allocation2 + $0x30] sm:$0xf]
    %v226 = vld [vmem:[#allocation2 + $0x34] sm:$0xf]
    %v227 = vld [vmem:[#allocation2 + $0x38] sm:$0xf]
    %v228 = vld [vmem:[#allocation2 + $0x3c] sm:$0xf]
    %v229 = vld [vmem:[#allocation4] sm:$0x1]
    %v231 = vlaneseq
    %v232 = vshrl.u32 %v231, 7
    %v233 = vsub.s32 0, %v232
    %v234 = vrot.slane %v229, %v233
    %v238 = vunpack.c.l.b16 %v211
    %v239 = vunpack.c.l.b16 %v212
    %v240 = vpack.c.b16 %v239, %v238
    %v258 = vunpack.c.l.b16 %v213
    %v259 = vunpack.c.l.b16 %v214
    %v260 = vunpack.c.l.b16 %v215
    %v261 = vunpack.c.l.b16 %v216
    %v262 = vunpack.c.l.b16 %v217
    %v263 = vunpack.c.l.b16 %v218
    %v264 = vunpack.c.l.b16 %v219
    %v265 = vunpack.c.l.b16 %v220
    %v266 = vunpack.c.l.b16 %v221
    %v267 = vunpack.c.l.b16 %v222
    %v268 = vunpack.c.l.b16 %v223
    %v269 = vunpack.c.l.b16 %v224
    %v270 = vunpack.c.l.b16 %v225
    %v271 = vunpack.c.l.b16 %v226
    %v272 = vunpack.c.l.b16 %v227
    %v273 = vunpack.c.l.b16 %v228
    %v274 = vpack.c.b16 %v259, %v258
    %v275 = vpack.c.b16 %v261, %v260
    %v276 = vpack.c.b16 %v263, %v262
    %v277 = vpack.c.b16 %v265, %v264
    %v278 = vpack.c.b16 %v267, %v266
    %v279 = vpack.c.b16 %v269, %v268
    %v280 = vpack.c.b16 %v271, %v270
    %v281 = vpack.c.b16 %v273, %v272
    %290 = vmatprep.subr.bf16.mxu0 0
    %291 = vmatpush1.bf16.msra.mxu0 %v274
    %292 = vmatprep.subr.bf16.mxu0 0
    %293 = vmatpush1.bf16.msra.mxu0 %v275
    %294 = vmatprep.subr.bf16.mxu0 0
    %295 = vmatpush1.bf16.msra.mxu0 %v276
    %296 = vmatprep.subr.bf16.mxu0 0
    %297 = vmatpush1.bf16.msra.mxu0 %v277
    %298 = vmatprep.subr.bf16.mxu0 0
    %299 = vmatpush1.bf16.msra.mxu0 %v278
    %300 = vmatprep.subr.bf16.mxu0 0
    %301 = vmatpush1.bf16.msra.mxu0 %v279
    %302 = vmatprep.subr.bf16.mxu0 0
    %303 = vmatpush1.bf16.msra.mxu0 %v280
    %304 = vmatprep.subr.bf16.mxu0 0
    %305 = vmatpush1.bf16.msra.mxu0 %v281
    %306 = vmatprep.subr.bf16.mxu0 0
    %307 = vmatpush1.bf16.msra.mxu0 0
    %308 = vmatprep.subr.bf16.mxu0 0
    %309 = vmatpush1.bf16.msra.mxu0 0
    %310 = vmatprep.subr.bf16.mxu0 0
    %311 = vmatpush1.bf16.msra.mxu0 0
    %312 = vmatprep.subr.bf16.mxu0 0
    %313 = vmatpush1.bf16.msra.mxu0 0
    %314 = vmatprep.subr.bf16.mxu0 0
    %315 = vmatpush1.bf16.msra.mxu0 0
    %316 = vmatprep.subr.bf16.mxu0 0
    %317 = vmatpush1.bf16.msra.mxu0 0
    %318 = vmatprep.subr.bf16.mxu0 0
    %319 = vmatpush1.bf16.msra.mxu0 0
    %320 = vmatprep.subr.bf16.mxu0 0
    %321 = vmatpush1.bf16.msra.mxu0 0
    %322 = vmatprep.mubr.bf16.mxu0 0
    %323 = vmatmul.mubr.bf16.gmra.mrb[0].mxu0 %v240
    %v324 = vpop.f32.mrb[0].mxu0
    %v325 = vadd.f32 %v234, %v324
    %v326 = vpop.f32.mrb[0].mxu0
    %v327 = vpop.f32.mrb[0].mxu0
    %v328 = vadd.f32 %v234, %v327
    %v329 = vpop.f32.mrb[0].mxu0
    %330 = vdwg.mxu0
    %v331 = vmax.f32 %v325, 0.0
    %v332 = vmax.f32 %v328, 0.0
    %v333 = vpack.c.bf16 %v332, %v331
    %v334 = vld [vmem:[#allocation6] sm:$0xff]
    %v335 = vld [vmem:[#allocation6 + $0x8] sm:$0xff]
    %v336 = vld [vmem:[#allocation6 + $0x10] sm:$0xff]
    %v337 = vld [vmem:[#allocation6 + $0x18] sm:$0xff]
    %v338 = vld [vmem:[#allocation6 + $0x20] sm:$0xff]
    %v339 = vld [vmem:[#allocation6 + $0x28] sm:$0xff]
    %v340 = vld [vmem:[#allocation6 + $0x30] sm:$0xff]
    %v341 = vld [vmem:[#allocation6 + $0x38] sm:$0xff]
    %v342 = vld [vmem:[#allocation6 + $0x40] sm:$0xff]
    %v343 = vld [vmem:[#allocation6 + $0x48] sm:$0xff]
    %v344 = vld [vmem:[#allocation6 + $0x50] sm:$0xff]
    %v345 = vld [vmem:[#allocation6 + $0x58] sm:$0xff]
    %v346 = vld [vmem:[#allocation6 + $0x60] sm:$0xff]
    %v347 = vld [vmem:[#allocation6 + $0x68] sm:$0xff]
    %v348 = vld [vmem:[#allocation6 + $0x70] sm:$0xff]
    %v349 = vld [vmem:[#allocation6 + $0x78] sm:$0xff]
    %v366 = vunpack.c.l.b16 %v334
    %v367 = vunpack.c.h.b16 %v334
    %v368 = vunpack.c.l.b16 %v335
    %v369 = vunpack.c.h.b16 %v335
    %v370 = vunpack.c.l.b16 %v336
    %v371 = vunpack.c.h.b16 %v336
    %v372 = vunpack.c.l.b16 %v337
    %v373 = vunpack.c.h.b16 %v337
    %v374 = vunpack.c.l.b16 %v338
    %v375 = vunpack.c.h.b16 %v338
    %v376 = vunpack.c.l.b16 %v339
    %v377 = vunpack.c.h.b16 %v339
    %v378 = vunpack.c.l.b16 %v340
    %v379 = vunpack.c.h.b16 %v340
    %v380 = vunpack.c.l.b16 %v341
    %v381 = vunpack.c.h.b16 %v341
    %v382 = vunpack.c.l.b16 %v342
    %v383 = vunpack.c.h.b16 %v342
    %v384 = vunpack.c.l.b16 %v343
    %v385 = vunpack.c.h.b16 %v343
    %v386 = vunpack.c.l.b16 %v344
    %v387 = vunpack.c.h.b16 %v344
    %v388 = vunpack.c.l.b16 %v345
    %v389 = vunpack.c.h.b16 %v345
    %v390 = vunpack.c.l.b16 %v346
    %v391 = vunpack.c.h.b16 %v346
    %v392 = vunpack.c.l.b16 %v347
    %v393 = vunpack.c.h.b16 %v347
    %v394 = vunpack.c.l.b16 %v348
    %v395 = vunpack.c.h.b16 %v348
    %v396 = vunpack.c.l.b16 %v349
    %v397 = vunpack.c.h.b16 %v349
    %v398 = vpack.c.b16 %v368, %v366
    %v399 = vpack.c.b16 %v369, %v367
    %v400 = vpack.c.b16 %v372, %v370
    %v401 = vpack.c.b16 %v373, %v371
    %v402 = vpack.c.b16 %v376, %v374
    %v403 = vpack.c.b16 %v377, %v375
    %v404 = vpack.c.b16 %v380, %v378
    %v405 = vpack.c.b16 %v381, %v379
    %v406 = vpack.c.b16 %v384, %v382
    %v407 = vpack.c.b16 %v385, %v383
    %v408 = vpack.c.b16 %v388, %v386
    %v409 = vpack.c.b16 %v389, %v387
    %v410 = vpack.c.b16 %v392, %v390
    %v411 = vpack.c.b16 %v393, %v391
    %v412 = vpack.c.b16 %v396, %v394
    %v413 = vpack.c.b16 %v397, %v395
    %430 = vmatprep.subr.bf16.mxu0 %v399
    %431 = vmatpush1.bf16.msra.mxu0 %v398
    %432 = vmatprep.subr.bf16.mxu0 %v401
    %433 = vmatpush1.bf16.msra.mxu0 %v400
    %434 = vmatprep.subr.bf16.mxu0 %v403
    %435 = vmatpush1.bf16.msra.mxu0 %v402
    %436 = vmatprep.subr.bf16.mxu0 %v405
    %437 = vmatpush1.bf16.msra.mxu0 %v404
    %438 = vmatprep.subr.bf16.mxu0 %v407
    %439 = vmatpush1.bf16.msra.mxu0 %v406
    %440 = vmatprep.subr.bf16.mxu0 %v409
    %441 = vmatpush1.bf16.msra.mxu0 %v408
    %442 = vmatprep.subr.bf16.mxu0 %v411
    %443 = vmatpush1.bf16.msra.mxu0 %v410
    %444 = vmatprep.subr.bf16.mxu0 %v413
    %445 = vmatpush1.bf16.msra.mxu0 %v412
    %446 = vmatprep.subr.bf16.mxu0 0
    %447 = vmatpush1.bf16.msra.mxu0 0
    %448 = vmatprep.subr.bf16.mxu0 0
    %449 = vmatpush1.bf16.msra.mxu0 0
    %450 = vmatprep.subr.bf16.mxu0 0
    %451 = vmatpush1.bf16.msra.mxu0 0
    %452 = vmatprep.subr.bf16.mxu0 0
    %453 = vmatpush1.bf16.msra.mxu0 0
    %454 = vmatprep.subr.bf16.mxu0 0
    %455 = vmatpush1.bf16.msra.mxu0 0
    %456 = vmatprep.subr.bf16.mxu0 0
    %457 = vmatpush1.bf16.msra.mxu0 0
    %458 = vmatprep.subr.bf16.mxu0 0
    %459 = vmatpush1.bf16.msra.mxu0 0
    %460 = vmatprep.subr.bf16.mxu0 0
    %461 = vmatpush1.bf16.msra.mxu0 0
    %462 = vmatprep.mubr.bf16.mxu0 0
    %463 = vmatmul.mubr.bf16.gmra.mrb[0].mxu0 %v333
    %v464 = vpop.f32.mrb[0].mxu0
    %v465 = vadd.f32 0.0, %v464
    %v466 = vpop.f32.mrb[0].mxu0
    %v467 = vadd.f32 0.0, %v466
    %v468 = vpop.f32.mrb[0].mxu0
    %v469 = vadd.f32 0.0, %v468
    %v470 = vpop.f32.mrb[0].mxu0
    %v471 = vadd.f32 0.0, %v470
    %472 = vdwg.mxu0
    %v473 = vld [vmem:[%s0] sm:$0xff]
    %v474 = vld [vmem:[%s0 + $0x8] sm:$0xff]
    %476 = vset.pattern.permute.xlu0 0
    %477 = vperm.xlu0 %476, %v473
    %v478 = vpop.permute.xlu0 %477
    %481 = vset.pattern.permute.xlu0 0
    %482 = vperm.xlu0 %481, %v474
    %v483 = vpop.permute.xlu0 %482
    %v485 = vmul.f32 %v465, %v478
    %v486 = vmul.f32 %v467, %v478
    %v487 = vmul.f32 %v469, %v483
    %v488 = vmul.f32 %v471, %v483
    %v489 = vadd.f32 %v485, %v487
    %v490 = vrot.slane %v489, 4
    %v491 = vadd.f32 %v489, %v490
    %v492 = vrot.slane %v491, 2
    %v493 = vadd.f32 %v491, %v492
    %v494 = vrot.slane %v493, 1
    %v495 = vadd.f32 %v493, %v494
    %v496 = vadd.f32 %v486, %v488
    %v497 = vrot.slane %v496, 4
    %v498 = vadd.f32 %v496, %v497
    %v499 = vrot.slane %v498, 2
    %v500 = vadd.f32 %v498, %v499
    %v501 = vrot.slane %v500, 1
    %v502 = vadd.f32 %v500, %v501
    %v503 = vmul.f32 %v495, 0.5
    %v504 = vmul.f32 %v502, 0.5
    %v505 = vmul.f32 %v485, %v465
    %v506 = vmul.f32 %v486, %v467
    %v507 = vmul.f32 %v487, %v469
    %v508 = vmul.f32 %v488, %v471
    %v509 = vadd.f32 %v505, %v507
    %v510 = vrot.slane %v509, 4
    %v511 = vadd.f32 %v509, %v510
    %v512 = vrot.slane %v511, 2
    %v513 = vadd.f32 %v511, %v512
    %v514 = vrot.slane %v513, 1
    %v515 = vadd.f32 %v513, %v514
    %v516 = vadd.f32 %v506, %v508
    %v517 = vrot.slane %v516, 4
    %v518 = vadd.f32 %v516, %v517
    %v519 = vrot.slane %v518, 2
    %v520 = vadd.f32 %v518, %v519
    %v521 = vrot.slane %v520, 1
    %v522 = vadd.f32 %v520, %v521
    %v523 = vmul.f32 %v515, 0.5
    %v524 = vmul.f32 %v522, 0.5
    %v525 = vmul.f32 %v503, %v503
    %v526 = vmul.f32 %v504, %v504
    %v527 = vsub.f32 %v523, %v525
    %v528 = vsub.f32 %v524, %v526
    %v529 = vld [vmem:[#allocation7] sm:$0x3]
    %v530 = vadd.f32 %v527, 0.8
    %v531 = vadd.f32 %v528, 0.8
    %v532 = vrsqrt.pop %v530
    %v533 = vrsqrt.pop %v531
    %v536 = vcombine.low %v532, %v533
    %v538 = vunpack.c.l.s4 1966171168
    %v539 = vunpack.c.0.s8 %v538
    %v540 = vlaneseq
    %v541 = vshrl.u32 %v540, 7
    %v542 = vsub.s32 %v539, %v541
    %v543 = vrot.slane %v536, %v542
    %v545 = vunpack.c.l.s4 1966171168
    %v546 = vunpack.c.0.s8 %v545
    %v547 = vlaneseq
    %v548 = vshrl.u32 %v547, 7
    %v549 = vsub.s32 %v546, %v548
    %v550 = vrot.slane %v543, %v549
    %v552 = vmul.f32 %v529, %v550
    %v553 = vld [vmem:[#allocation9] sm:$0x3]
    %v555 = vlaneseq
    %v556 = vshrl.u32 %v555, 7
    %v557 = vsub.s32 0, %v556
    %v558 = vrot.slane %v552, %v557
    %v559 = vlaneseq
    %v560 = vshrl.u32 %v559, 7
    %v561 = vsub.s32 1, %v560
    %v562 = vrot.slane %v552, %v561
    %v565 = vmul.f32 %v503, %v558
    %v566 = vmul.f32 %v504, %v562
    %v569 = vcombine.low %v565, %v566
    %v571 = vunpack.c.l.s4 1966171168
    %v572 = vunpack.c.0.s8 %v571
    %v573 = vlaneseq
    %v574 = vshrl.u32 %v573, 7
    %v575 = vsub.s32 %v572, %v574
    %v576 = vrot.slane %v569, %v575
    %v578 = vunpack.c.l.s4 1966171168
    %v579 = vunpack.c.0.s8 %v578
    %v580 = vlaneseq
    %v581 = vshrl.u32 %v580, 7
    %v582 = vsub.s32 %v579, %v581
    %v583 = vrot.slane %v576, %v582
    %v585 = vsub.f32 %v553, %v583
    %v586 = vmul.f32 %v465, %v558
    %v587 = vmul.f32 %v467, %v562
    %v588 = vmul.f32 %v469, %v558
    %v589 = vmul.f32 %v471, %v562
    %v591 = vlaneseq
    %v592 = vshrl.u32 %v591, 7
    %v593 = vsub.s32 0, %v592
    %v594 = vrot.slane %v585, %v593
    %v595 = vlaneseq
    %v596 = vshrl.u32 %v595, 7
    %v597 = vsub.s32 1, %v596
    %v598 = vrot.slane %v585, %v597
    %v601 = vadd.f32 %v586, %v594
    %v602 = vadd.f32 %v587, %v598
    %v603 = vadd.f32 %v588, %v594
    %v604 = vadd.f32 %v589, %v598
    %v605 = vmax.f32 %v601, 0.0
    %v606 = vmax.f32 %v602, 0.0
    %v607 = vmax.f32 %v603, 0.0
    %v608 = vmax.f32 %v604, 0.0
    %v609 = vpack.c.bf16 %v607, %v605
    %v610 = vpack.c.bf16 %v608, %v606
    %v611 = vld [vmem:[#allocation10] sm:$0xff]
    %v612 = vld [vmem:[#allocation10 + $0x8] sm:$0xff]
    %v613 = vld [vmem:[#allocation10 + $0x10] sm:$0xff]
    %v614 = vld [vmem:[#allocation10 + $0x18] sm:$0xff]
    %v615 = vld [vmem:[#allocation10 + $0x20] sm:$0xff]
    %v616 = vld [vmem:[#allocation10 + $0x28] sm:$0xff]
    %v617 = vld [vmem:[#allocation10 + $0x30] sm:$0xff]
    %v618 = vld [vmem:[#allocation10 + $0x38] sm:$0xff]
    %v619 = vld [vmem:[#allocation10 + $0x40] sm:$0xff]
    %v620 = vld [vmem:[#allocation10 + $0x48] sm:$0xff]
    %v621 = vld [vmem:[#allocation10 + $0x50] sm:$0xff]
    %v622 = vld [vmem:[#allocation10 + $0x58] sm:$0xff]
    %v623 = vld [vmem:[#allocation10 + $0x60] sm:$0xff]
    %v624 = vld [vmem:[#allocation10 + $0x68] sm:$0xff]
    %v625 = vld [vmem:[#allocation10 + $0x70] sm:$0xff]
    %v626 = vld [vmem:[#allocation10 + $0x78] sm:$0xff]
    %v627 = vld [vmem:[#allocation10 + $0x80] sm:$0xff]
    %v628 = vld [vmem:[#allocation10 + $0x88] sm:$0xff]
    %v629 = vld [vmem:[#allocation10 + $0x90] sm:$0xff]
    %v630 = vld [vmem:[#allocation10 + $0x98] sm:$0xff]
    %v631 = vld [vmem:[#allocation10 + $0xa0] sm:$0xff]
    %v632 = vld [vmem:[#allocation10 + $0xa8] sm:$0xff]
    %v633 = vld [vmem:[#allocation10 + $0xb0] sm:$0xff]
    %v634 = vld [vmem:[#allocation10 + $0xb8] sm:$0xff]
    %v635 = vld [vmem:[#allocation10 + $0xc0] sm:$0xff]
    %v636 = vld [vmem:[#allocation10 + $0xc8] sm:$0xff]
    %v637 = vld [vmem:[#allocation10 + $0xd0] sm:$0xff]
    %v638 = vld [vmem:[#allocation10 + $0xd8] sm:$0xff]
    %v639 = vld [vmem:[#allocation10 + $0xe0] sm:$0xff]
    %v640 = vld [vmem:[#allocation10 + $0xe8] sm:$0xff]
    %v641 = vld [vmem:[#allocation10 + $0xf0] sm:$0xff]
    %v642 = vld [vmem:[#allocation10 + $0xf8] sm:$0xff]
    %v643 = vld [vmem:[#allocation10 + $0x100] sm:$0xff]
    %v644 = vld [vmem:[#allocation10 + $0x108] sm:$0xff]
    %v645 = vld [vmem:[#allocation10 + $0x110] sm:$0xff]
    %v646 = vld [vmem:[#allocation10 + $0x118] sm:$0xff]
    %v647 = vld [vmem:[#allocation10 + $0x120] sm:$0xff]
    %v648 = vld [vmem:[#allocation10 + $0x128] sm:$0xff]
    %v649 = vld [vmem:[#allocation10 + $0x130] sm:$0xff]
    %v650 = vld [vmem:[#allocation10 + $0x138] sm:$0xff]
    %v651 = vld [vmem:[#allocation10 + $0x140] sm:$0xff]
    %v652 = vld [vmem:[#allocation10 + $0x148] sm:$0xff]
    %v653 = vld [vmem:[#allocation10 + $0x150] sm:$0xff]
    %v654 = vld [vmem:[#allocation10 + $0x158] sm:$0xff]
    %v655 = vld [vmem:[#allocation10 + $0x160] sm:$0xff]
    %v656 = vld [vmem:[#allocation10 + $0x168] sm:$0xff]
    %v657 = vld [vmem:[#allocation10 + $0x170] sm:$0xff]
    %v658 = vld [vmem:[#allocation10 + $0x178] sm:$0xff]
    %v659 = vld [vmem:[#allocation10 + $0x180] sm:$0xff]
    %v660 = vld [vmem:[#allocation10 + $0x188] sm:$0xff]
    %v661 = vld [vmem:[#allocation10 + $0x190] sm:$0xff]
    %v662 = vld [vmem:[#allocation10 + $0x198] sm:$0xff]
    %v663 = vld [vmem:[#allocation10 + $0x1a0] sm:$0xff]
    %v664 = vld [vmem:[#allocation10 + $0x1a8] sm:$0xff]
    %v665 = vld [vmem:[#allocation10 + $0x1b0] sm:$0xff]
    %v666 = vld [vmem:[#allocation10 + $0x1b8] sm:$0xff]
    %v667 = vld [vmem:[#allocation10 + $0x1c0] sm:$0xff]
    %v668 = vld [vmem:[#allocation10 + $0x1c8] sm:$0xff]
    %v669 = vld [vmem:[#allocation10 + $0x1d0] sm:$0xff]
    %v670 = vld [vmem:[#allocation10 + $0x1d8] sm:$0xff]
    %v671 = vld [vmem:[#allocation10 + $0x1e0] sm:$0xff]
    %v672 = vld [vmem:[#allocation10 + $0x1e8] sm:$0xff]
    %v673 = vld [vmem:[#allocation10 + $0x1f0] sm:$0xff]
    %v674 = vld [vmem:[#allocation10 + $0x1f8] sm:$0xff]
    %v739 = vunpack.c.l.b16 %v611
    %v740 = vunpack.c.h.b16 %v611
    %v741 = vunpack.c.l.b16 %v612
    %v742 = vunpack.c.h.b16 %v612
    %v743 = vunpack.c.l.b16 %v613
    %v744 = vunpack.c.h.b16 %v613
    %v745 = vunpack.c.l.b16 %v614
    %v746 = vunpack.c.h.b16 %v614
    %v747 = vunpack.c.l.b16 %v615
    %v748 = vunpack.c.h.b16 %v615
    %v749 = vunpack.c.l.b16 %v616
    %v750 = vunpack.c.h.b16 %v616
    %v751 = vunpack.c.l.b16 %v617
    %v752 = vunpack.c.h.b16 %v617
    %v753 = vunpack.c.l.b16 %v618
    %v754 = vunpack.c.h.b16 %v618
    %v755 = vunpack.c.l.b16 %v619
    %v756 = vunpack.c.h.b16 %v619
    %v757 = vunpack.c.l.b16 %v620
    %v758 = vunpack.c.h.b16 %v620
    %v759 = vunpack.c.l.b16 %v621
    %v760 = vunpack.c.h.b16 %v621
    %v761 = vunpack.c.l.b16 %v622
    %v762 = vunpack.c.h.b16 %v622
    %v763 = vunpack.c.l.b16 %v623
    %v764 = vunpack.c.h.b16 %v623
    %v765 = vunpack.c.l.b16 %v624
    %v766 = vunpack.c.h.b16 %v624
    %v767 = vunpack.c.l.b16 %v625
    %v768 = vunpack.c.h.b16 %v625
    %v769 = vunpack.c.l.b16 %v626
    %v770 = vunpack.c.h.b16 %v626
    %v771 = vunpack.c.l.b16 %v627
    %v772 = vunpack.c.h.b16 %v627
    %v773 = vunpack.c.l.b16 %v628
    %v774 = vunpack.c.h.b16 %v628
    %v775 = vunpack.c.l.b16 %v629
    %v776 = vunpack.c.h.b16 %v629
    %v777 = vunpack.c.l.b16 %v630
    %v778 = vunpack.c.h.b16 %v630
    %v779 = vunpack.c.l.b16 %v631
    %v780 = vunpack.c.h.b16 %v631
    %v781 = vunpack.c.l.b16 %v632
    %v782 = vunpack.c.h.b16 %v632
    %v783 = vunpack.c.l.b16 %v633
    %v784 = vunpack.c.h.b16 %v633
    %v785 = vunpack.c.l.b16 %v634
    %v786 = vunpack.c.h.b16 %v634
    %v787 = vunpack.c.l.b16 %v635
    %v788 = vunpack.c.h.b16 %v635
    %v789 = vunpack.c.l.b16 %v636
    %v790 = vunpack.c.h.b16 %v636
    %v791 = vunpack.c.l.b16 %v637
    %v792 = vunpack.c.h.b16 %v637
    %v793 = vunpack.c.l.b16 %v638
    %v794 = vunpack.c.h.b16 %v638
    %v795 = vunpack.c.l.b16 %v639
    %v796 = vunpack.c.h.b16 %v639
    %v797 = vunpack.c.l.b16 %v640
    %v798 = vunpack.c.h.b16 %v640
    %v799 = vunpack.c.l.b16 %v641
    %v800 = vunpack.c.h.b16 %v641
    %v801 = vunpack.c.l.b16 %v642
    %v802 = vunpack.c.h.b16 %v642
    %v803 = vunpack.c.l.b16 %v643
    %v804 = vunpack.c.h.b16 %v643
    %v805 = vunpack.c.l.b16 %v644
    %v806 = vunpack.c.h.b16 %v644
    %v807 = vunpack.c.l.b16 %v645
    %v808 = vunpack.c.h.b16 %v645
    %v809 = vunpack.c.l.b16 %v646
    %v810 = vunpack.c.h.b16 %v646
    %v811 = vunpack.c.l.b16 %v647
    %v812 = vunpack.c.h.b16 %v647
    %v813 = vunpack.c.l.b16 %v648
    %v814 = vunpack.c.h.b16 %v648
    %v815 = vunpack.c.l.b16 %v649
    %v816 = vunpack.c.h.b16 %v649
    %v817 = vunpack.c.l.b16 %v650
    %v818 = vunpack.c.h.b16 %v650
    %v819 = vunpack.c.l.b16 %v651
    %v820 = vunpack.c.h.b16 %v651
    %v821 = vunpack.c.l.b16 %v652
    %v822 = vunpack.c.h.b16 %v652
    %v823 = vunpack.c.l.b16 %v653
    %v824 = vunpack.c.h.b16 %v653
    %v825 = vunpack.c.l.b16 %v654
    %v826 = vunpack.c.h.b16 %v654
    %v827 = vunpack.c.l.b16 %v655
    %v828 = vunpack.c.h.b16 %v655
    %v829 = vunpack.c.l.b16 %v656
    %v830 = vunpack.c.h.b16 %v656
    %v831 = vunpack.c.l.b16 %v657
    %v832 = vunpack.c.h.b16 %v657
    %v833 = vunpack.c.l.b16 %v658
    %v834 = vunpack.c.h.b16 %v658
    %v835 = vunpack.c.l.b16 %v659
    %v836 = vunpack.c.h.b16 %v659
    %v837 = vunpack.c.l.b16 %v660
    %v838 = vunpack.c.h.b16 %v660
    %v839 = vunpack.c.l.b16 %v661
    %v840 = vunpack.c.h.b16 %v661
    %v841 = vunpack.c.l.b16 %v662
    %v842 = vunpack.c.h.b16 %v662
    %v843 = vunpack.c.l.b16 %v663
    %v844 = vunpack.c.h.b16 %v663
    %v845 = vunpack.c.l.b16 %v664
    %v846 = vunpack.c.h.b16 %v664
    %v847 = vunpack.c.l.b16 %v665
    %v848 = vunpack.c.h.b16 %v665
    %v849 = vunpack.c.l.b16 %v666
    %v850 = vunpack.c.h.b16 %v666
    %v851 = vunpack.c.l.b16 %v667
    %v852 = vunpack.c.h.b16 %v667
    %v853 = vunpack.c.l.b16 %v668
    %v854 = vunpack.c.h.b16 %v668
    %v855 = vunpack.c.l.b16 %v669
    %v856 = vunpack.c.h.b16 %v669
    %v857 = vunpack.c.l.b16 %v670
    %v858 = vunpack.c.h.b16 %v670
    %v859 = vunpack.c.l.b16 %v671
    %v860 = vunpack.c.h.b16 %v671
    %v861 = vunpack.c.l.b16 %v672
    %v862 = vunpack.c.h.b16 %v672
    %v863 = vunpack.c.l.b16 %v673
    %v864 = vunpack.c.h.b16 %v673
    %v865 = vunpack.c.l.b16 %v674
    %v866 = vunpack.c.h.b16 %v674
    %v867 = vpack.c.b16 %v743, %v739
    %v868 = vpack.c.b16 %v744, %v740
    %v869 = vpack.c.b16 %v745, %v741
    %v870 = vpack.c.b16 %v746, %v742
    %v871 = vpack.c.b16 %v751, %v747
    %v872 = vpack.c.b16 %v752, %v748
    %v873 = vpack.c.b16 %v753, %v749
    %v874 = vpack.c.b16 %v754, %v750
    %v875 = vpack.c.b16 %v759, %v755
    %v876 = vpack.c.b16 %v760, %v756
    %v877 = vpack.c.b16 %v761, %v757
    %v878 = vpack.c.b16 %v762, %v758
    %v879 = vpack.c.b16 %v767, %v763
    %v880 = vpack.c.b16 %v768, %v764
    %v881 = vpack.c.b16 %v769, %v765
    %v882 = vpack.c.b16 %v770, %v766
    %v883 = vpack.c.b16 %v775, %v771
    %v884 = vpack.c.b16 %v776, %v772
    %v885 = vpack.c.b16 %v777, %v773
    %v886 = vpack.c.b16 %v778, %v774
    %v887 = vpack.c.b16 %v783, %v779
    %v888 = vpack.c.b16 %v784, %v780
    %v889 = vpack.c.b16 %v785, %v781
    %v890 = vpack.c.b16 %v786, %v782
    %v891 = vpack.c.b16 %v791, %v787
    %v892 = vpack.c.b16 %v792, %v788
    %v893 = vpack.c.b16 %v793, %v789
    %v894 = vpack.c.b16 %v794, %v790
    %v895 = vpack.c.b16 %v799, %v795
    %v896 = vpack.c.b16 %v800, %v796
    %v897 = vpack.c.b16 %v801, %v797
    %v898 = vpack.c.b16 %v802, %v798
    %v899 = vpack.c.b16 %v807, %v803
    %v900 = vpack.c.b16 %v808, %v804
    %v901 = vpack.c.b16 %v809, %v805
    %v902 = vpack.c.b16 %v810, %v806
    %v903 = vpack.c.b16 %v815, %v811
    %v904 = vpack.c.b16 %v816, %v812
    %v905 = vpack.c.b16 %v817, %v813
    %v906 = vpack.c.b16 %v818, %v814
    %v907 = vpack.c.b16 %v823, %v819
    %v908 = vpack.c.b16 %v824, %v820
    %v909 = vpack.c.b16 %v825, %v821
    %v910 = vpack.c.b16 %v826, %v822
    %v911 = vpack.c.b16 %v831, %v827
    %v912 = vpack.c.b16 %v832, %v828
    %v913 = vpack.c.b16 %v833, %v829
    %v914 = vpack.c.b16 %v834, %v830
    %v915 = vpack.c.b16 %v839, %v835
    %v916 = vpack.c.b16 %v840, %v836
    %v917 = vpack.c.b16 %v841, %v837
    %v918 = vpack.c.b16 %v842, %v838
    %v919 = vpack.c.b16 %v847, %v843
    %v920 = vpack.c.b16 %v848, %v844
    %v921 = vpack.c.b16 %v849, %v845
    %v922 = vpack.c.b16 %v850, %v846
    %v923 = vpack.c.b16 %v855, %v851
    %v924 = vpack.c.b16 %v856, %v852
    %v925 = vpack.c.b16 %v857, %v853
    %v926 = vpack.c.b16 %v858, %v854
    %v927 = vpack.c.b16 %v863, %v859
    %v928 = vpack.c.b16 %v864, %v860
    %v929 = vpack.c.b16 %v865, %v861
    %v930 = vpack.c.b16 %v866, %v862
    %995 = vmatprep.subr.bf16.mxu0 %v868
    %996 = vmatpush1.bf16.msra.mxu0 %v867
    %997 = vmatprep.subr.bf16.mxu0 %v872
    %998 = vmatpush1.bf16.msra.mxu0 %v871
    %999 = vmatprep.subr.bf16.mxu0 %v876
    %1000 = vmatpush1.bf16.msra.mxu0 %v875
    %1001 = vmatprep.subr.bf16.mxu0 %v880
    %1002 = vmatpush1.bf16.msra.mxu0 %v879
    %1003 = vmatprep.subr.bf16.mxu0 %v884
    %1004 = vmatpush1.bf16.msra.mxu0 %v883
    %1005 = vmatprep.subr.bf16.mxu0 %v888
    %1006 = vmatpush1.bf16.msra.mxu0 %v887
    %1007 = vmatprep.subr.bf16.mxu0 %v892
    %1008 = vmatpush1.bf16.msra.mxu0 %v891
    %1009 = vmatprep.subr.bf16.mxu0 %v896
    %1010 = vmatpush1.bf16.msra.mxu0 %v895
    %1011 = vmatprep.subr.bf16.mxu0 %v900
    %1012 = vmatpush1.bf16.msra.mxu0 %v899
    %1013 = vmatprep.subr.bf16.mxu0 %v904
    %1014 = vmatpush1.bf16.msra.mxu0 %v903
    %1015 = vmatprep.subr.bf16.mxu0 %v908
    %1016 = vmatpush1.bf16.msra.mxu0 %v907
    %1017 = vmatprep.subr.bf16.mxu0 %v912
    %1018 = vmatpush1.bf16.msra.mxu0 %v911
    %1019 = vmatprep.subr.bf16.mxu0 %v916
    %1020 = vmatpush1.bf16.msra.mxu0 %v915
    %1021 = vmatprep.subr.bf16.mxu0 %v920
    %1022 = vmatpush1.bf16.msra.mxu0 %v919
    %1023 = vmatprep.subr.bf16.mxu0 %v924
    %1024 = vmatpush1.bf16.msra.mxu0 %v923
    %1025 = vmatprep.subr.bf16.mxu0 %v928
    %1026 = vmatpush1.bf16.msra.mxu0 %v927
    %1027 = vmatprep.mubr.bf16.mxu0 %v610
    %1028 = vmatmul.mubr.bf16.gmra.mrb[0].mxu0 %v609
    %v1029 = vpop.f32.mrb[0].mxu0
    %v1030 = vadd.f32 0.0, %v1029
    %v1031 = vpop.f32.mrb[0].mxu0
    %v1032 = vadd.f32 0.0, %v1031
    %v1033 = vpop.f32.mrb[0].mxu0
    %v1034 = vadd.f32 0.0, %v1033
    %v1035 = vpop.f32.mrb[0].mxu0
    %v1036 = vadd.f32 0.0, %v1035
    %1037 = vdwg.mxu0
    %1038 = vmatprep.subr.bf16.mxu0 %v870
    %1039 = vmatpush1.bf16.msra.mxu0 %v869
    %1040 = vmatprep.subr.bf16.mxu0 %v874
    %1041 = vmatpush1.bf16.msra.mxu0 %v873
    %1042 = vmatprep.subr.bf16.mxu0 %v878
    %1043 = vmatpush1.bf16.msra.mxu0 %v877
    %1044 = vmatprep.subr.bf16.mxu0 %v882
    %1045 = vmatpush1.bf16.msra.mxu0 %v881
    %1046 = vmatprep.subr.bf16.mxu0 %v886
    %1047 = vmatpush1.bf16.msra.mxu0 %v885
    %1048 = vmatprep.subr.bf16.mxu0 %v890
    %1049 = vmatpush1.bf16.msra.mxu0 %v889
    %1050 = vmatprep.subr.bf16.mxu0 %v894
    %1051 = vmatpush1.bf16.msra.mxu0 %v893
    %1052 = vmatprep.subr.bf16.mxu0 %v898
    %1053 = vmatpush1.bf16.msra.mxu0 %v897
    %1054 = vmatprep.subr.bf16.mxu0 %v902
    %1055 = vmatpush1.bf16.msra.mxu0 %v901
    %1056 = vmatprep.subr.bf16.mxu0 %v906
    %1057 = vmatpush1.bf16.msra.mxu0 %v905
    %1058 = vmatprep.subr.bf16.mxu0 %v910
    %1059 = vmatpush1.bf16.msra.mxu0 %v909
    %1060 = vmatprep.subr.bf16.mxu0 %v914
    %1061 = vmatpush1.bf16.msra.mxu0 %v913
    %1062 = vmatprep.subr.bf16.mxu0 %v918
    %1063 = vmatpush1.bf16.msra.mxu0 %v917
    %1064 = vmatprep.subr.bf16.mxu0 %v922
    %1065 = vmatpush1.bf16.msra.mxu0 %v921
    %1066 = vmatprep.subr.bf16.mxu0 %v926
    %1067 = vmatpush1.bf16.msra.mxu0 %v925
    %1068 = vmatprep.subr.bf16.mxu0 %v930
    %1069 = vmatpush1.bf16.msra.mxu0 %v929
    %1070 = vmatprep.mubr.bf16.mxu0 %v610
    %1071 = vmatmul.mubr.bf16.gmra.mrb[0].mxu0 %v609
    %v1072 = vpop.f32.mrb[0].mxu0
    %v1073 = vadd.f32 0.0, %v1072
    %v1074 = vpop.f32.mrb[0].mxu0
    %v1075 = vadd.f32 0.0, %v1074
    %v1076 = vpop.f32.mrb[0].mxu0
    %v1077 = vadd.f32 0.0, %v1076
    %v1078 = vpop.f32.mrb[0].mxu0
    %v1079 = vadd.f32 0.0, %v1078
    %1080 = vdwg.mxu0
    %v1081 = vmul.f32 %v1030, %v478
    %v1082 = vmul.f32 %v1032, %v478
    %v1083 = vmul.f32 %v1073, %v478
    %v1084 = vmul.f32 %v1075, %v478
    %v1085 = vmul.f32 %v1034, %v483
    %v1086 = vmul.f32 %v1036, %v483
    %v1087 = vmul.f32 %v1077, %v483
    %v1088 = vmul.f32 %v1079, %v483
    %v1089 = vadd.f32 %v1081, %v1085
    %v1090 = vrot.slane %v1089, 4
    %v1091 = vadd.f32 %v1089, %v1090
    %v1092 = vrot.slane %v1091, 2
    %v1093 = vadd.f32 %v1091, %v1092
    %v1094 = vrot.slane %v1093, 1
    %v1095 = vadd.f32 %v1093, %v1094
    %v1096 = vadd.f32 %v1082, %v1086
    %v1097 = vrot.slane %v1096, 4
    %v1098 = vadd.f32 %v1096, %v1097
    %v1099 = vrot.slane %v1098, 2
    %v1100 = vadd.f32 %v1098, %v1099
    %v1101 = vrot.slane %v1100, 1
    %v1102 = vadd.f32 %v1100, %v1101
    %v1103 = vadd.f32 %v1083, %v1087
    %v1104 = vrot.slane %v1103, 4
    %v1105 = vadd.f32 %v1103, %v1104
    %v1106 = vrot.slane %v1105, 2
    %v1107 = vadd.f32 %v1105, %v1106
    %v1108 = vrot.slane %v1107, 1
    %v1109 = vadd.f32 %v1107, %v1108
    %v1110 = vadd.f32 %v1084, %v1088
    %v1111 = vrot.slane %v1110, 4
    %v1112 = vadd.f32 %v1110, %v1111
    %v1113 = vrot.slane %v1112, 2
    %v1114 = vadd.f32 %v1112, %v1113
    %v1115 = vrot.slane %v1114, 1
    %v1116 = vadd.f32 %v1114, %v1115
    %v1117 = vmul.f32 %v1095, 0.5
    %v1118 = vmul.f32 %v1102, 0.5
    %v1119 = vmul.f32 %v1109, 0.5
    %v1120 = vmul.f32 %v1116, 0.5
    %v1121 = vmul.f32 %v1081, %v1030
    %v1122 = vmul.f32 %v1082, %v1032
    %v1123 = vmul.f32 %v1083, %v1073
    %v1124 = vmul.f32 %v1084, %v1075
    %v1125 = vmul.f32 %v1085, %v1034
    %v1126 = vmul.f32 %v1086, %v1036
    %v1127 = vmul.f32 %v1087, %v1077
    %v1128 = vmul.f32 %v1088, %v1079
    %v1129 = vadd.f32 %v1121, %v1125
    %v1130 = vrot.slane %v1129, 4
    %v1131 = vadd.f32 %v1129, %v1130
    %v1132 = vrot.slane %v1131, 2
    %v1133 = vadd.f32 %v1131, %v1132
    %v1134 = vrot.slane %v1133, 1
    %v1135 = vadd.f32 %v1133, %v1134
    %v1136 = vadd.f32 %v1122, %v1126
    %v1137 = vrot.slane %v1136, 4
    %v1138 = vadd.f32 %v1136, %v1137
    %v1139 = vrot.slane %v1138, 2
    %v1140 = vadd.f32 %v1138, %v1139
    %v1141 = vrot.slane %v1140, 1
    %v1142 = vadd.f32 %v1140, %v1141
    %v1143 = vadd.f32 %v1123, %v1127
    %v1144 = vrot.slane %v1143, 4
    %v1145 = vadd.f32 %v1143, %v1144
    %v1146 = vrot.slane %v1145, 2
    %v1147 = vadd.f32 %v1145, %v1146
    %v1148 = vrot.slane %v1147, 1
    %v1149 = vadd.f32 %v1147, %v1148
    %v1150 = vadd.f32 %v1124, %v1128
    %v1151 = vrot.slane %v1150, 4
    %v1152 = vadd.f32 %v1150, %v1151
    %v1153 = vrot.slane %v1152, 2
    %v1154 = vadd.f32 %v1152, %v1153
    %v1155 = vrot.slane %v1154, 1
    %v1156 = vadd.f32 %v1154, %v1155
    %v1157 = vmul.f32 %v1135, 0.5
    %v1158 = vmul.f32 %v1142, 0.5
    %v1159 = vmul.f32 %v1149, 0.5
    %v1160 = vmul.f32 %v1156, 0.5
    %v1161 = vmul.f32 %v1117, %v1117
    %v1162 = vmul.f32 %v1118, %v1118
    %v1163 = vmul.f32 %v1119, %v1119
    %v1164 = vmul.f32 %v1120, %v1120
    %v1165 = vsub.f32 %v1157, %v1161
    %v1166 = vsub.f32 %v1158, %v1162
    %v1167 = vsub.f32 %v1159, %v1163
    %v1168 = vsub.f32 %v1160, %v1164
    %v1169 = vld [vmem:[#allocation12] sm:$0xf]
    %v1170 = vadd.f32 %v1165, 0.8
    %v1171 = vadd.f32 %v1166, 0.8
    %v1172 = vadd.f32 %v1167, 0.8
    %v1173 = vadd.f32 %v1168, 0.8
    %v1174 = vrsqrt.pop %v1170
    %v1175 = vrsqrt.pop %v1171
    %v1176 = vrsqrt.pop %v1172
    %v1177 = vrsqrt.pop %v1173
    %v1182 = vcombine.low %v1174, %v1175
    %v1183 = vcombine.low %v1176, %v1177
    %v1185 = vunpack.c.l.s4 1966171168
    %v1186 = vunpack.c.0.s8 %v1185
    %v1187 = vlaneseq
    %v1188 = vshrl.u32 %v1187, 7
    %v1189 = vsub.s32 %v1186, %v1188
    %v1190 = vrot.slane %v1182, %v1189
    %v1192 = vunpack.c.l.s4 1966171168
    %v1193 = vunpack.c.0.s8 %v1192
    %v1194 = vlaneseq
    %v1195 = vshrl.u32 %v1194, 7
    %v1196 = vsub.s32 %v1193, %v1195
    %v1197 = vrot.slane %v1183, %v1196
    %v1198 = vcombine.low %v1190, %v1197
    %v1200 = vunpack.c.l.s4 1966171168
    %v1201 = vunpack.c.0.s8 %v1200
    %v1202 = vlaneseq
    %v1203 = vshrl.u32 %v1202, 7
    %v1204 = vsub.s32 %v1201, %v1203
    %v1205 = vrot.slane %v1198, %v1204
    %v1207 = vmul.f32 %v1169, %v1205
    %v1208 = vld [vmem:[#allocation13] sm:$0xf]
    %v1210 = vlaneseq
    %v1211 = vshrl.u32 %v1210, 7
    %v1212 = vsub.s32 0, %v1211
    %v1213 = vrot.slane %v1207, %v1212
    %v1214 = vlaneseq
    %v1215 = vshrl.u32 %v1214, 7
    %v1216 = vsub.s32 1, %v1215
    %v1217 = vrot.slane %v1207, %v1216
    %v1218 = vlaneseq
    %v1219 = vshrl.u32 %v1218, 7
    %v1220 = vsub.s32 2, %v1219
    %v1221 = vrot.slane %v1207, %v1220
    %v1222 = vlaneseq
    %v1223 = vshrl.u32 %v1222, 7
    %v1224 = vsub.s32 3, %v1223
    %v1225 = vrot.slane %v1207, %v1224
    %v1230 = vmul.f32 %v1117, %v1213
    %v1231 = vmul.f32 %v1118, %v1217
    %v1232 = vmul.f32 %v1119, %v1221
    %v1233 = vmul.f32 %v1120, %v1225
    %v1238 = vcombine.low %v1230, %v1231
    %v1239 = vcombine.low %v1232, %v1233
    %v1241 = vunpack.c.l.s4 1966171168
    %v1242 = vunpack.c.0.s8 %v1241
    %v1243 = vlaneseq
    %v1244 = vshrl.u32 %v1243, 7
    %v1245 = vsub.s32 %v1242, %v1244
    %v1246 = vrot.slane %v1238, %v1245
    %v1248 = vunpack.c.l.s4 1966171168
    %v1249 = vunpack.c.0.s8 %v1248
    %v1250 = vlaneseq
    %v1251 = vshrl.u32 %v1250, 7
    %v1252 = vsub.s32 %v1249, %v1251
    %v1253 = vrot.slane %v1239, %v1252
    %v1254 = vcombine.low %v1246, %v1253
    %v1256 = vunpack.c.l.s4 1966171168
    %v1257 = vunpack.c.0.s8 %v1256
    %v1258 = vlaneseq
    %v1259 = vshrl.u32 %v1258, 7
    %v1260 = vsub.s32 %v1257, %v1259
    %v1261 = vrot.slane %v1254, %v1260
    %v1263 = vsub.f32 %v1208, %v1261
    %v1264 = vmul.f32 %v1030, %v1213
    %v1265 = vmul.f32 %v1032, %v1217
    %v1266 = vmul.f32 %v1073, %v1221
    %v1267 = vmul.f32 %v1075, %v1225
    %v1268 = vmul.f32 %v1034, %v1213
    %v1269 = vmul.f32 %v1036, %v1217
    %v1270 = vmul.f32 %v1077, %v1221
    %v1271 = vmul.f32 %v1079, %v1225
    %v1273 = vlaneseq
    %v1274 = vshrl.u32 %v1273, 7
    %v1275 = vsub.s32 0, %v1274
    %v1276 = vrot.slane %v1263, %v1275
    %v1277 = vlaneseq
    %v1278 = vshrl.u32 %v1277, 7
    %v1279 = vsub.s32 1, %v1278
    %v1280 = vrot.slane %v1263, %v1279
    %v1281 = vlaneseq
    %v1282 = vshrl.u32 %v1281, 7
    %v1283 = vsub.s32 2, %v1282
    %v1284 = vrot.slane %v1263, %v1283
    %v1285 = vlaneseq
    %v1286 = vshrl.u32 %v1285, 7
    %v1287 = vsub.s32 3, %v1286
    %v1288 = vrot.slane %v1263, %v1287
    %v1293 = vadd.f32 %v1264, %v1276
    %v1294 = vadd.f32 %v1265, %v1280
    %v1295 = vadd.f32 %v1266, %v1284
    %v1296 = vadd.f32 %v1267, %v1288
    %v1297 = vadd.f32 %v1268, %v1276
    %v1298 = vadd.f32 %v1269, %v1280
    %v1299 = vadd.f32 %v1270, %v1284
    %v1300 = vadd.f32 %v1271, %v1288
    %v1301 = vmax.f32 %v1293, 0.0
    %v1302 = vmax.f32 %v1294, 0.0
    %v1303 = vmax.f32 %v1295, 0.0
    %v1304 = vmax.f32 %v1296, 0.0
    %v1305 = vmax.f32 %v1297, 0.0
    %v1306 = vmax.f32 %v1298, 0.0
    %v1307 = vmax.f32 %v1299, 0.0
    %v1308 = vmax.f32 %v1300, 0.0
    %v1309 = vpack.c.bf16 %v1305, %v1301
    %v1310 = vpack.c.bf16 %v1306, %v1302
    %v1311 = vpack.c.bf16 %v1307, %v1303
    %v1312 = vpack.c.bf16 %v1308, %v1304
    %v1313 = vld [vmem:[#allocation15] sm:$0xff]
    %v1314 = vld [vmem:[#allocation15 + $0x8] sm:$0xff]
    %v1315 = vld [vmem:[#allocation15 + $0x10] sm:$0xff]
    %v1316 = vld [vmem:[#allocation15 + $0x18] sm:$0xff]
    %v1317 = vld [vmem:[#allocation15 + $0x20] sm:$0xff]
    %v1318 = vld [vmem:[#allocation15 + $0x28] sm:$0xff]
    %v1319 = vld [vmem:[#allocation15 + $0x30] sm:$0xff]
    %v1320 = vld [vmem:[#allocation15 + $0x38] sm:$0xff]
    %v1321 = vld [vmem:[#allocation15 + $0x40] sm:$0xff]
    %v1322 = vld [vmem:[#allocation15 + $0x48] sm:$0xff]
    %v1323 = vld [vmem:[#allocation15 + $0x50] sm:$0xff]
    %v1324 = vld [vmem:[#allocation15 + $0x58] sm:$0xff]
    %v1325 = vld [vmem:[#allocation15 + $0x60] sm:$0xff]
    %v1326 = vld [vmem:[#allocation15 + $0x68] sm:$0xff]
    %v1327 = vld [vmem:[#allocation15 + $0x70] sm:$0xff]
    %v1328 = vld [vmem:[#allocation15 + $0x78] sm:$0xff]
    %v1329 = vld [vmem:[#allocation15 + $0x80] sm:$0xff]
    %v1330 = vld [vmem:[#allocation15 + $0x88] sm:$0xff]
    %v1331 = vld [vmem:[#allocation15 + $0x90] sm:$0xff]
    %v1332 = vld [vmem:[#allocation15 + $0x98] sm:$0xff]
    %v1333 = vld [vmem:[#allocation15 + $0xa0] sm:$0xff]
    %v1334 = vld [vmem:[#allocation15 + $0xa8] sm:$0xff]
    %v1335 = vld [vmem:[#allocation15 + $0xb0] sm:$0xff]
    %v1336 = vld [vmem:[#allocation15 + $0xb8] sm:$0xff]
    %v1337 = vld [vmem:[#allocation15 + $0xc0] sm:$0xff]
    %v1338 = vld [vmem:[#allocation15 + $0xc8] sm:$0xff]
    %v1339 = vld [vmem:[#allocation15 + $0xd0] sm:$0xff]
    %v1340 = vld [vmem:[#allocation15 + $0xd8] sm:$0xff]
    %v1341 = vld [vmem:[#allocation15 + $0xe0] sm:$0xff]
    %v1342 = vld [vmem:[#allocation15 + $0xe8] sm:$0xff]
    %v1343 = vld [vmem:[#allocation15 + $0xf0] sm:$0xff]
    %v1344 = vld [vmem:[#allocation15 + $0xf8] sm:$0xff]
    %v1345 = vld [vmem:[#allocation15 + $0x100] sm:$0xff]
    %v1346 = vld [vmem:[#allocation15 + $0x108] sm:$0xff]
    %v1347 = vld [vmem:[#allocation15 + $0x110] sm:$0xff]
    %v1348 = vld [vmem:[#allocation15 + $0x118] sm:$0xff]
    %v1349 = vld [vmem:[#allocation15 + $0x120] sm:$0xff]
    %v1350 = vld [vmem:[#allocation15 + $0x128] sm:$0xff]
    %v1351 = vld [vmem:[#allocation15 + $0x130] sm:$0xff]
    %v1352 = vld [vmem:[#allocation15 + $0x138] sm:$0xff]
    %v1353 = vld [vmem:[#allocation15 + $0x140] sm:$0xff]
    %v1354 = vld [vmem:[#allocation15 + $0x148] sm:$0xff]
    %v1355 = vld [vmem:[#allocation15 + $0x150] sm:$0xff]
    %v1356 = vld [vmem:[#allocation15 + $0x158] sm:$0xff]
    %v1357 = vld [vmem:[#allocation15 + $0x160] sm:$0xff]
    %v1358 = vld [vmem:[#allocation15 + $0x168] sm:$0xff]
    %v1359 = vld [vmem:[#allocation15 + $0x170] sm:$0xff]
    %v1360 = vld [vmem:[#allocation15 + $0x178] sm:$0xff]
    %v1361 = vld [vmem:[#allocation15 + $0x180] sm:$0xff]
    %v1362 = vld [vmem:[#allocation15 + $0x188] sm:$0xff]
    %v1363 = vld [vmem:[#allocation15 + $0x190] sm:$0xff]
    %v1364 = vld [vmem:[#allocation15 + $0x198] sm:$0xff]
    %v1365 = vld [vmem:[#allocation15 + $0x1a0] sm:$0xff]
    %v1366 = vld [vmem:[#allocation15 + $0x1a8] sm:$0xff]
    %v1367 = vld [vmem:[#allocation15 + $0x1b0] sm:$0xff]
    %v1368 = vld [vmem:[#allocation15 + $0x1b8] sm:$0xff]
    %v1369 = vld [vmem:[#allocation15 + $0x1c0] sm:$0xff]
    %v1370 = vld [vmem:[#allocation15 + $0x1c8] sm:$0xff]
    %v1371 = vld [vmem:[#allocation15 + $0x1d0] sm:$0xff]
    %v1372 = vld [vmem:[#allocation15 + $0x1d8] sm:$0xff]
    %v1373 = vld [vmem:[#allocation15 + $0x1e0] sm:$0xff]
    %v1374 = vld [vmem:[#allocation15 + $0x1e8] sm:$0xff]
    %v1375 = vld [vmem:[#allocation15 + $0x1f0] sm:$0xff]
    %v1376 = vld [vmem:[#allocation15 + $0x1f8] sm:$0xff]
    %v1377 = vld [vmem:[#allocation15 + $0x200] sm:$0xff]
    %v1378 = vld [vmem:[#allocation15 + $0x208] sm:$0xff]
    %v1379 = vld [vmem:[#allocation15 + $0x210] sm:$0xff]
    %v1380 = vld [vmem:[#allocation15 + $0x218] sm:$0xff]
    %v1381 = vld [vmem:[#allocation15 + $0x220] sm:$0xff]
    %v1382 = vld [vmem:[#allocation15 + $0x228] sm:$0xff]
    %v1383 = vld [vmem:[#allocation15 + $0x230] sm:$0xff]
    %v1384 = vld [vmem:[#allocation15 + $0x238] sm:$0xff]
    %v1385 = vld [vmem:[#allocation15 + $0x240] sm:$0xff]
    %v1386 = vld [vmem:[#allocation15 + $0x248] sm:$0xff]
    %v1387 = vld [vmem:[#allocation15 + $0x250] sm:$0xff]
    %v1388 = vld [vmem:[#allocation15 + $0x258] sm:$0xff]
    %v1389 = vld [vmem:[#allocation15 + $0x260] sm:$0xff]
    %v1390 = vld [vmem:[#allocation15 + $0x268] sm:$0xff]
    %v1391 = vld [vmem:[#allocation15 + $0x270] sm:$0xff]
    %v1392 = vld [vmem:[#allocation15 + $0x278] sm:$0xff]
    %v1393 = vld [vmem:[#allocation15 + $0x280] sm:$0xff]
    %v1394 = vld [vmem:[#allocation15 + $0x288] sm:$0xff]
    %v1395 = vld [vmem:[#allocation15 + $0x290] sm:$0xff]
    %v1396 = vld [vmem:[#allocation15 + $0x298] sm:$0xff]
    %v1397 = vld [vmem:[#allocation15 + $0x2a0] sm:$0xff]
    %v1398 = vld [vmem:[#allocation15 + $0x2a8] sm:$0xff]
    %v1399 = vld [vmem:[#allocation15 + $0x2b0] sm:$0xff]
    %v1400 = vld [vmem:[#allocation15 + $0x2b8] sm:$0xff]
    %v1401 = vld [vmem:[#allocation15 + $0x2c0] sm:$0xff]
    %v1402 = vld [vmem:[#allocation15 + $0x2c8] sm:$0xff]
    %v1403 = vld [vmem:[#allocation15 + $0x2d0] sm:$0xff]
    %v1404 = vld [vmem:[#allocation15 + $0x2d8] sm:$0xff]
    %v1405 = vld [vmem:[#allocation15 + $0x2e0] sm:$0xff]
    %v1406 = vld [vmem:[#allocation15 + $0x2e8] sm:$0xff]
    %v1407 = vld [vmem:[#allocation15 + $0x2f0] sm:$0xff]
    %v1408 = vld [vmem:[#allocation15 + $0x2f8] sm:$0xff]
    %v1409 = vld [vmem:[#allocation15 + $0x300] sm:$0xff]
    %v1410 = vld [vmem:[#allocation15 + $0x308] sm:$0xff]
    %v1411 = vld [vmem:[#allocation15 + $0x310] sm:$0xff]
    %v1412 = vld [vmem:[#allocation15 + $0x318] sm:$0xff]
    %v1413 = vld [vmem:[#allocation15 + $0x320] sm:$0xff]
    %v1414 = vld [vmem:[#allocation15 + $0x328] sm:$0xff]
    %v1415 = vld [vmem:[#allocation15 + $0x330] sm:$0xff]
    %v1416 = vld [vmem:[#allocation15 + $0x338] sm:$0xff]
    %v1417 = vld [vmem:[#allocation15 + $0x340] sm:$0xff]
    %v1418 = vld [vmem:[#allocation15 + $0x348] sm:$0xff]
    %v1419 = vld [vmem:[#allocation15 + $0x350] sm:$0xff]
    %v1420 = vld [vmem:[#allocation15 + $0x358] sm:$0xff]
    %v1421 = vld [vmem:[#allocation15 + $0x360] sm:$0xff]
    %v1422 = vld [vmem:[#allocation15 + $0x368] sm:$0xff]
    %v1423 = vld [vmem:[#allocation15 + $0x370] sm:$0xff]
    %v1424 = vld [vmem:[#allocation15 + $0x378] sm:$0xff]
    %v1425 = vld [vmem:[#allocation15 + $0x380] sm:$0xff]
    %v1426 = vld [vmem:[#allocation15 + $0x388] sm:$0xff]
    %v1427 = vld [vmem:[#allocation15 + $0x390] sm:$0xff]
    %v1428 = vld [vmem:[#allocation15 + $0x398] sm:$0xff]
    %v1429 = vld [vmem:[#allocation15 + $0x3a0] sm:$0xff]
    %v1430 = vld [vmem:[#allocation15 + $0x3a8] sm:$0xff]
    %v1431 = vld [vmem:[#allocation15 + $0x3b0] sm:$0xff]
    %v1432 = vld [vmem:[#allocation15 + $0x3b8] sm:$0xff]
    %v1433 = vld [vmem:[#allocation15 + $0x3c0] sm:$0xff]
    %v1434 = vld [vmem:[#allocation15 + $0x3c8] sm:$0xff]
    %v1435 = vld [vmem:[#allocation15 + $0x3d0] sm:$0xff]
    %v1436 = vld [vmem:[#allocation15 + $0x3d8] sm:$0xff]
    %v1437 = vld [vmem:[#allocation15 + $0x3e0] sm:$0xff]
    %v1438 = vld [vmem:[#allocation15 + $0x3e8] sm:$0xff]
    %v1439 = vld [vmem:[#allocation15 + $0x3f0] sm:$0xff]
    %v1440 = vld [vmem:[#allocation15 + $0x3f8] sm:$0xff]
    %v1441 = vld [vmem:[#allocation15 + $0x400] sm:$0xff]
    %v1442 = vld [vmem:[#allocation15 + $0x408] sm:$0xff]
    %v1443 = vld [vmem:[#allocation15 + $0x410] sm:$0xff]
    %v1444 = vld [vmem:[#allocation15 + $0x418] sm:$0xff]
    %v1445 = vld [vmem:[#allocation15 + $0x420] sm:$0xff]
    %v1446 = vld [vmem:[#allocation15 + $0x428] sm:$0xff]
    %v1447 = vld [vmem:[#allocation15 + $0x430] sm:$0xff]
    %v1448 = vld [vmem:[#allocation15 + $0x438] sm:$0xff]
    %v1449 = vld [vmem:[#allocation15 + $0x440] sm:$0xff]
    %v1450 = vld [vmem:[#allocation15 + $0x448] sm:$0xff]
    %v1451 = vld [vmem:[#allocation15 + $0x450] sm:$0xff]
    %v1452 = vld [vmem:[#allocation15 + $0x458] sm:$0xff]
    %v1453 = vld [vmem:[#allocation15 + $0x460] sm:$0xff]
    %v1454 = vld [vmem:[#allocation15 + $0x468] sm:$0xff]
    %v1455 = vld [vmem:[#allocation15 + $0x470] sm:$0xff]
    %v1456 = vld [vmem:[#allocation15 + $0x478] sm:$0xff]
    %v1457 = vld [vmem:[#allocation15 + $0x480] sm:$0xff]
    %v1458 = vld [vmem:[#allocation15 + $0x488] sm:$0xff]
    %v1459 = vld [vmem:[#allocation15 + $0x490] sm:$0xff]
    %v1460 = vld [vmem:[#allocation15 + $0x498] sm:$0xff]
    %v1461 = vld [vmem:[#allocation15 + $0x4a0] sm:$0xff]
    %v1462 = vld [vmem:[#allocation15 + $0x4a8] sm:$0xff]
    %v1463 = vld [vmem:[#allocation15 + $0x4b0] sm:$0xff]
    %v1464 = vld [vmem:[#allocation15 + $0x4b8] sm:$0xff]
    %v1465 = vld [vmem:[#allocation15 + $0x4c0] sm:$0xff]
    %v1466 = vld [vmem:[#allocation15 + $0x4c8] sm:$0xff]
    %v1467 = vld [vmem:[#allocation15 + $0x4d0] sm:$0xff]
    %v1468 = vld [vmem:[#allocation15 + $0x4d8] sm:$0xff]
    %v1469 = vld [vmem:[#allocation15 + $0x4e0] sm:$0xff]
    %v1470 = vld [vmem:[#allocation15 + $0x4e8] sm:$0xff]
    %v1471 = vld [vmem:[#allocation15 + $0x4f0] sm:$0xff]
    %v1472 = vld [vmem:[#allocation15 + $0x4f8] sm:$0xff]
    %v1473 = vld [vmem:[#allocation15 + $0x500] sm:$0xff]
    %v1474 = vld [vmem:[#allocation15 + $0x508] sm:$0xff]
    %v1475 = vld [vmem:[#allocation15 + $0x510] sm:$0xff]
    %v1476 = vld [vmem:[#allocation15 + $0x518] sm:$0xff]
    %v1477 = vld [vmem:[#allocation15 + $0x520] sm:$0xff]
    %v1478 = vld [vmem:[#allocation15 + $0x528] sm:$0xff]
    %v1479 = vld [vmem:[#allocation15 + $0x530] sm:$0xff]
    %v1480 = vld [vmem:[#allocation15 + $0x538] sm:$0xff]
    %v1481 = vld [vmem:[#allocation15 + $0x540] sm:$0xff]
    %v1482 = vld [vmem:[#allocation15 + $0x548] sm:$0xff]
    %v1483 = vld [vmem:[#allocation15 + $0x550] sm:$0xff]
    %v1484 = vld [vmem:[#allocation15 + $0x558] sm:$0xff]
    %v1485 = vld [vmem:[#allocation15 + $0x560] sm:$0xff]
    %v1486 = vld [vmem:[#allocation15 + $0x568] sm:$0xff]
    %v1487 = vld [vmem:[#allocation15 + $0x570] sm:$0xff]
    %v1488 = vld [vmem:[#allocation15 + $0x578] sm:$0xff]
    %v1489 = vld [vmem:[#allocation15 + $0x580] sm:$0xff]
    %v1490 = vld [vmem:[#allocation15 + $0x588] sm:$0xff]
    %v1491 = vld [vmem:[#allocation15 + $0x590] sm:$0xff]
    %v1492 = vld [vmem:[#allocation15 + $0x598] sm:$0xff]
    %v1493 = vld [vmem:[#allocation15 + $0x5a0] sm:$0xff]
    %v1494 = vld [vmem:[#allocation15 + $0x5a8] sm:$0xff]
    %v1495 = vld [vmem:[#allocation15 + $0x5b0] sm:$0xff]
    %v1496 = vld [vmem:[#allocation15 + $0x5b8] sm:$0xff]
    %v1497 = vld [vmem:[#allocation15 + $0x5c0] sm:$0xff]
    %v1498 = vld [vmem:[#allocation15 + $0x5c8] sm:$0xff]
    %v1499 = vld [vmem:[#allocation15 + $0x5d0] sm:$0xff]
    %v1500 = vld [vmem:[#allocation15 + $0x5d8] sm:$0xff]
    %v1501 = vld [vmem:[#allocation15 + $0x5e0] sm:$0xff]
    %v1502 = vld [vmem:[#allocation15 + $0x5e8] sm:$0xff]
    %v1503 = vld [vmem:[#allocation15 + $0x5f0] sm:$0xff]
    %v1504 = vld [vmem:[#allocation15 + $0x5f8] sm:$0xff]
    %v1505 = vld [vmem:[#allocation15 + $0x600] sm:$0xff]
    %v1506 = vld [vmem:[#allocation15 + $0x608] sm:$0xff]
    %v1507 = vld [vmem:[#allocation15 + $0x610] sm:$0xff]
    %v1508 = vld [vmem:[#allocation15 + $0x618] sm:$0xff]
    %v1509 = vld [vmem:[#allocation15 + $0x620] sm:$0xff]
    %v1510 = vld [vmem:[#allocation15 + $0x628] sm:$0xff]
    %v1511 = vld [vmem:[#allocation15 + $0x630] sm:$0xff]
    %v1512 = vld [vmem:[#allocation15 + $0x638] sm:$0xff]
    %v1513 = vld [vmem:[#allocation15 + $0x640] sm:$0xff]
    %v1514 = vld [vmem:[#allocation15 + $0x648] sm:$0xff]
    %v1515 = vld [vmem:[#allocation15 + $0x650] sm:$0xff]
    %v1516 = vld [vmem:[#allocation15 + $0x658] sm:$0xff]
    %v1517 = vld [vmem:[#allocation15 + $0x660] sm:$0xff]
    %v1518 = vld [vmem:[#allocation15 + $0x668] sm:$0xff]
    %v1519 = vld [vmem:[#allocation15 + $0x670] sm:$0xff]
    %v1520 = vld [vmem:[#allocation15 + $0x678] sm:$0xff]
    %v1521 = vld [vmem:[#allocation15 + $0x680] sm:$0xff]
    %v1522 = vld [vmem:[#allocation15 + $0x688] sm:$0xff]
    %v1523 = vld [vmem:[#allocation15 + $0x690] sm:$0xff]
    %v1524 = vld [vmem:[#allocation15 + $0x698] sm:$0xff]
    %v1525 = vld [vmem:[#allocation15 + $0x6a0] sm:$0xff]
    %v1526 = vld [vmem:[#allocation15 + $0x6a8] sm:$0xff]
    %v1527 = vld [vmem:[#allocation15 + $0x6b0] sm:$0xff]
    %v1528 = vld [vmem:[#allocation15 + $0x6b8] sm:$0xff]
    %v1529 = vld [vmem:[#allocation15 + $0x6c0] sm:$0xff]
    %v1530 = vld [vmem:[#allocation15 + $0x6c8] sm:$0xff]
    %v1531 = vld [vmem:[#allocation15 + $0x6d0] sm:$0xff]
    %v1532 = vld [vmem:[#allocation15 + $0x6d8] sm:$0xff]
    %v1533 = vld [vmem:[#allocation15 + $0x6e0] sm:$0xff]
    %v1534 = vld [vmem:[#allocation15 + $0x6e8] sm:$0xff]
    %v1535 = vld [vmem:[#allocation15 + $0x6f0] sm:$0xff]
    %v1536 = vld [vmem:[#allocation15 + $0x6f8] sm:$0xff]
    %v1537 = vld [vmem:[#allocation15 + $0x700] sm:$0xff]
    %v1538 = vld [vmem:[#allocation15 + $0x708] sm:$0xff]
    %v1539 = vld [vmem:[#allocation15 + $0x710] sm:$0xff]
    %v1540 = vld [vmem:[#allocation15 + $0x718] sm:$0xff]
    %v1541 = vld [vmem:[#allocation15 + $0x720] sm:$0xff]
    %v1542 = vld [vmem:[#allocation15 + $0x728] sm:$0xff]
    %v1543 = vld [vmem:[#allocation15 + $0x730] sm:$0xff]
    %v1544 = vld [vmem:[#allocation15 + $0x738] sm:$0xff]
    %v1545 = vld [vmem:[#allocation15 + $0x740] sm:$0xff]
    %v1546 = vld [vmem:[#allocation15 + $0x748] sm:$0xff]
    %v1547 = vld [vmem:[#allocation15 + $0x750] sm:$0xff]
    %v1548 = vld [vmem:[#allocation15 + $0x758] sm:$0xff]
    %v1549 = vld [vmem:[#allocation15 + $0x760] sm:$0xff]
    %v1550 = vld [vmem:[#allocation15 + $0x768] sm:$0xff]
    %v1551 = vld [vmem:[#allocation15 + $0x770] sm:$0xff]
    %v1552 = vld [vmem:[#allocation15 + $0x778] sm:$0xff]
    %v1553 = vld [vmem:[#allocation15 + $0x780] sm:$0xff]
    %v1554 = vld [vmem:[#allocation15 + $0x788] sm:$0xff]
    %v1555 = vld [vmem:[#allocation15 + $0x790] sm:$0xff]
    %v1556 = vld [vmem:[#allocation15 + $0x798] sm:$0xff]
    %v1557 = vld [vmem:[#allocation15 + $0x7a0] sm:$0xff]
    %v1558 = vld [vmem:[#allocation15 + $0x7a8] sm:$0xff]
    %v1559 = vld [vmem:[#allocation15 + $0x7b0] sm:$0xff]
    %v1560 = vld [vmem:[#allocation15 + $0x7b8] sm:$0xff]
    %v1561 = vld [vmem:[#allocation15 + $0x7c0] sm:$0xff]
    %v1562 = vld [vmem:[#allocation15 + $0x7c8] sm:$0xff]
    %v1563 = vld [vmem:[#allocation15 + $0x7d0] sm:$0xff]
    %v1564 = vld [vmem:[#allocation15 + $0x7d8] sm:$0xff]
    %v1565 = vld [vmem:[#allocation15 + $0x7e0] sm:$0xff]
    %v1566 = vld [vmem:[#allocation15 + $0x7e8] sm:$0xff]
    %v1567 = vld [vmem:[#allocation15 + $0x7f0] sm:$0xff]
    %v1568 = vld [vmem:[#allocation15 + $0x7f8] sm:$0xff]
    %v1825 = vunpack.c.l.b16 %v1313
    %v1826 = vunpack.c.h.b16 %v1313
    %v1827 = vunpack.c.l.b16 %v1314
    %v1828 = vunpack.c.h.b16 %v1314
    %v1829 = vunpack.c.l.b16 %v1315
    %v1830 = vunpack.c.h.b16 %v1315
    %v1831 = vunpack.c.l.b16 %v1316
    %v1832 = vunpack.c.h.b16 %v1316
    %v1833 = vunpack.c.l.b16 %v1317
    %v1834 = vunpack.c.h.b16 %v1317
    %v1835 = vunpack.c.l.b16 %v1318
    %v1836 = vunpack.c.h.b16 %v1318
    %v1837 = vunpack.c.l.b16 %v1319
    %v1838 = vunpack.c.h.b16 %v1319
    %v1839 = vunpack.c.l.b16 %v1320
    %v1840 = vunpack.c.h.b16 %v1320
    %v1841 = vunpack.c.l.b16 %v1321
    %v1842 = vunpack.c.h.b16 %v1321
    %v1843 = vunpack.c.l.b16 %v1322
    %v1844 = vunpack.c.h.b16 %v1322
    %v1845 = vunpack.c.l.b16 %v1323
    %v1846 = vunpack.c.h.b16 %v1323
    %v1847 = vunpack.c.l.b16 %v1324
    %v1848 = vunpack.c.h.b16 %v1324
    %v1849 = vunpack.c.l.b16 %v1325
    %v1850 = vunpack.c.h.b16 %v1325
    %v1851 = vunpack.c.l.b16 %v1326
    %v1852 = vunpack.c.h.b16 %v1326
    %v1853 = vunpack.c.l.b16 %v1327
    %v1854 = vunpack.c.h.b16 %v1327
    %v1855 = vunpack.c.l.b16 %v1328
    %v1856 = vunpack.c.h.b16 %v1328
    %v1857 = vunpack.c.l.b16 %v1329
    %v1858 = vunpack.c.h.b16 %v1329
    %v1859 = vunpack.c.l.b16 %v1330
    %v1860 = vunpack.c.h.b16 %v1330
    %v1861 = vunpack.c.l.b16 %v1331
    %v1862 = vunpack.c.h.b16 %v1331
    %v1863 = vunpack.c.l.b16 %v1332
    %v1864 = vunpack.c.h.b16 %v1332
    %v1865 = vunpack.c.l.b16 %v1333
    %v1866 = vunpack.c.h.b16 %v1333
    %v1867 = vunpack.c.l.b16 %v1334
    %v1868 = vunpack.c.h.b16 %v1334
    %v1869 = vunpack.c.l.b16 %v1335
    %v1870 = vunpack.c.h.b16 %v1335
    %v1871 = vunpack.c.l.b16 %v1336
    %v1872 = vunpack.c.h.b16 %v1336
    %v1873 = vunpack.c.l.b16 %v1337
    %v1874 = vunpack.c.h.b16 %v1337
    %v1875 = vunpack.c.l.b16 %v1338
    %v1876 = vunpack.c.h.b16 %v1338
    %v1877 = vunpack.c.l.b16 %v1339
    %v1878 = vunpack.c.h.b16 %v1339
    %v1879 = vunpack.c.l.b16 %v1340
    %v1880 = vunpack.c.h.b16 %v1340
    %v1881 = vunpack.c.l.b16 %v1341
    %v1882 = vunpack.c.h.b16 %v1341
    %v1883 = vunpack.c.l.b16 %v1342
    %v1884 = vunpack.c.h.b16 %v1342
    %v1885 = vunpack.c.l.b16 %v1343
    %v1886 = vunpack.c.h.b16 %v1343
    %v1887 = vunpack.c.l.b16 %v1344
    %v1888 = vunpack.c.h.b16 %v1344
    %v1889 = vunpack.c.l.b16 %v1345
    %v1890 = vunpack.c.h.b16 %v1345
    %v1891 = vunpack.c.l.b16 %v1346
    %v1892 = vunpack.c.h.b16 %v1346
    %v1893 = vunpack.c.l.b16 %v1347
    %v1894 = vunpack.c.h.b16 %v1347
    %v1895 = vunpack.c.l.b16 %v1348
    %v1896 = vunpack.c.h.b16 %v1348
    %v1897 = vunpack.c.l.b16 %v1349
    %v1898 = vunpack.c.h.b16 %v1349
    %v1899 = vunpack.c.l.b16 %v1350
    %v1900 = vunpack.c.h.b16 %v1350
    %v1901 = vunpack.c.l.b16 %v1351
    %v1902 = vunpack.c.h.b16 %v1351
    %v1903 = vunpack.c.l.b16 %v1352
    %v1904 = vunpack.c.h.b16 %v1352
    %v1905 = vunpack.c.l.b16 %v1353
    %v1906 = vunpack.c.h.b16 %v1353
    %v1907 = vunpack.c.l.b16 %v1354
    %v1908 = vunpack.c.h.b16 %v1354
    %v1909 = vunpack.c.l.b16 %v1355
    %v1910 = vunpack.c.h.b16 %v1355
    %v1911 = vunpack.c.l.b16 %v1356
    %v1912 = vunpack.c.h.b16 %v1356
    %v1913 = vunpack.c.l.b16 %v1357
    %v1914 = vunpack.c.h.b16 %v1357
    %v1915 = vunpack.c.l.b16 %v1358
    %v1916 = vunpack.c.h.b16 %v1358
    %v1917 = vunpack.c.l.b16 %v1359
    %v1918 = vunpack.c.h.b16 %v1359
    %v1919 = vunpack.c.l.b16 %v1360
    %v1920 = vunpack.c.h.b16 %v1360
    %v1921 = vunpack.c.l.b16 %v1361
    %v1922 = vunpack.c.h.b16 %v1361
    %v1923 = vunpack.c.l.b16 %v1362
    %v1924 = vunpack.c.h.b16 %v1362
    %v1925 = vunpack.c.l.b16 %v1363
    %v1926 = vunpack.c.h.b16 %v1363
    %v1927 = vunpack.c.l.b16 %v1364
    %v1928 = vunpack.c.h.b16 %v1364
    %v1929 = vunpack.c.l.b16 %v1365
    %v1930 = vunpack.c.h.b16 %v1365
    %v1931 = vunpack.c.l.b16 %v1366
    %v1932 = vunpack.c.h.b16 %v1366
    %v1933 = vunpack.c.l.b16 %v1367
    %v1934 = vunpack.c.h.b16 %v1367
    %v1935 = vunpack.c.l.b16 %v1368
    %v1936 = vunpack.c.h.b16 %v1368
    %v1937 = vunpack.c.l.b16 %v1369
    %v1938 = vunpack.c.h.b16 %v1369
    %v1939 = vunpack.c.l.b16 %v1370
    %v1940 = vunpack.c.h.b16 %v1370
    %v1941 = vunpack.c.l.b16 %v1371
    %v1942 = vunpack.c.h.b16 %v1371
    %v1943 = vunpack.c.l.b16 %v1372
    %v1944 = vunpack.c.h.b16 %v1372
    %v1945 = vunpack.c.l.b16 %v1373
    %v1946 = vunpack.c.h.b16 %v1373
    %v1947 = vunpack.c.l.b16 %v1374
    %v1948 = vunpack.c.h.b16 %v1374
    %v1949 = vunpack.c.l.b16 %v1375
    %v1950 = vunpack.c.h.b16 %v1375
    %v1951 = vunpack.c.l.b16 %v1376
    %v1952 = vunpack.c.h.b16 %v1376
    %v1953 = vunpack.c.l.b16 %v1377
    %v1954 = vunpack.c.h.b16 %v1377
    %v1955 = vunpack.c.l.b16 %v1378
    %v1956 = vunpack.c.h.b16 %v1378
    %v1957 = vunpack.c.l.b16 %v1379
    %v1958 = vunpack.c.h.b16 %v1379
    %v1959 = vunpack.c.l.b16 %v1380
    %v1960 = vunpack.c.h.b16 %v1380
    %v1961 = vunpack.c.l.b16 %v1381
    %v1962 = vunpack.c.h.b16 %v1381
    %v1963 = vunpack.c.l.b16 %v1382
    %v1964 = vunpack.c.h.b16 %v1382
    %v1965 = vunpack.c.l.b16 %v1383
    %v1966 = vunpack.c.h.b16 %v1383
    %v1967 = vunpack.c.l.b16 %v1384
    %v1968 = vunpack.c.h.b16 %v1384
    %v1969 = vunpack.c.l.b16 %v1385
    %v1970 = vunpack.c.h.b16 %v1385
    %v1971 = vunpack.c.l.b16 %v1386
    %v1972 = vunpack.c.h.b16 %v1386
    %v1973 = vunpack.c.l.b16 %v1387
    %v1974 = vunpack.c.h.b16 %v1387
    %v1975 = vunpack.c.l.b16 %v1388
    %v1976 = vunpack.c.h.b16 %v1388
    %v1977 = vunpack.c.l.b16 %v1389
    %v1978 = vunpack.c.h.b16 %v1389
    %v1979 = vunpack.c.l.b16 %v1390
    %v1980 = vunpack.c.h.b16 %v1390
    %v1981 = vunpack.c.l.b16 %v1391
    %v1982 = vunpack.c.h.b16 %v1391
    %v1983 = vunpack.c.l.b16 %v1392
    %v1984 = vunpack.c.h.b16 %v1392
    %v1985 = vunpack.c.l.b16 %v1393
    %v1986 = vunpack.c.h.b16 %v1393
    %v1987 = vunpack.c.l.b16 %v1394
    %v1988 = vunpack.c.h.b16 %v1394
    %v1989 = vunpack.c.l.b16 %v1395
    %v1990 = vunpack.c.h.b16 %v1395
    %v1991 = vunpack.c.l.b16 %v1396
    %v1992 = vunpack.c.h.b16 %v1396
    %v1993 = vunpack.c.l.b16 %v1397
    %v1994 = vunpack.c.h.b16 %v1397
    %v1995 = vunpack.c.l.b16 %v1398
    %v1996 = vunpack.c.h.b16 %v1398
    %v1997 = vunpack.c.l.b16 %v1399
    %v1998 = vunpack.c.h.b16 %v1399
    %v1999 = vunpack.c.l.b16 %v1400
    %v2000 = vunpack.c.h.b16 %v1400
    %v2001 = vunpack.c.l.b16 %v1401
    %v2002 = vunpack.c.h.b16 %v1401
    %v2003 = vunpack.c.l.b16 %v1402
    %v2004 = vunpack.c.h.b16 %v1402
    %v2005 = vunpack.c.l.b16 %v1403
    %v2006 = vunpack.c.h.b16 %v1403
    %v2007 = vunpack.c.l.b16 %v1404
    %v2008 = vunpack.c.h.b16 %v1404
    %v2009 = vunpack.c.l.b16 %v1405
    %v2010 = vunpack.c.h.b16 %v1405
    %v2011 = vunpack.c.l.b16 %v1406
    %v2012 = vunpack.c.h.b16 %v1406
    %v2013 = vunpack.c.l.b16 %v1407
    %v2014 = vunpack.c.h.b16 %v1407
    %v2015 = vunpack.c.l.b16 %v1408
    %v2016 = vunpack.c.h.b16 %v1408
    %v2017 = vunpack.c.l.b16 %v1409
    %v2018 = vunpack.c.h.b16 %v1409
    %v2019 = vunpack.c.l.b16 %v1410
    %v2020 = vunpack.c.h.b16 %v1410
    %v2021 = vunpack.c.l.b16 %v1411
    %v2022 = vunpack.c.h.b16 %v1411
    %v2023 = vunpack.c.l.b16 %v1412
    %v2024 = vunpack.c.h.b16 %v1412
    %v2025 = vunpack.c.l.b16 %v1413
    %v2026 = vunpack.c.h.b16 %v1413
    %v2027 = vunpack.c.l.b16 %v1414
    %v2028 = vunpack.c.h.b16 %v1414
    %v2029 = vunpack.c.l.b16 %v1415
    %v2030 = vunpack.c.h.b16 %v1415
    %v2031 = vunpack.c.l.b16 %v1416
    %v2032 = vunpack.c.h.b16 %v1416
    %v2033 = vunpack.c.l.b16 %v1417
    %v2034 = vunpack.c.h.b16 %v1417
    %v2035 = vunpack.c.l.b16 %v1418
    %v2036 = vunpack.c.h.b16 %v1418
    %v2037 = vunpack.c.l.b16 %v1419
    %v2038 = vunpack.c.h.b16 %v1419
    %v2039 = vunpack.c.l.b16 %v1420
    %v2040 = vunpack.c.h.b16 %v1420
    %v2041 = vunpack.c.l.b16 %v1421
    %v2042 = vunpack.c.h.b16 %v1421
    %v2043 = vunpack.c.l.b16 %v1422
    %v2044 = vunpack.c.h.b16 %v1422
    %v2045 = vunpack.c.l.b16 %v1423
    %v2046 = vunpack.c.h.b16 %v1423
    %v2047 = vunpack.c.l.b16 %v1424
    %v2048 = vunpack.c.h.b16 %v1424
    %v2049 = vunpack.c.l.b16 %v1425
    %v2050 = vunpack.c.h.b16 %v1425
    %v2051 = vunpack.c.l.b16 %v1426
    %v2052 = vunpack.c.h.b16 %v1426
    %v2053 = vunpack.c.l.b16 %v1427
    %v2054 = vunpack.c.h.b16 %v1427
    %v2055 = vunpack.c.l.b16 %v1428
    %v2056 = vunpack.c.h.b16 %v1428
    %v2057 = vunpack.c.l.b16 %v1429
    %v2058 = vunpack.c.h.b16 %v1429
    %v2059 = vunpack.c.l.b16 %v1430
    %v2060 = vunpack.c.h.b16 %v1430
    %v2061 = vunpack.c.l.b16 %v1431
    %v2062 = vunpack.c.h.b16 %v1431
    %v2063 = vunpack.c.l.b16 %v1432
    %v2064 = vunpack.c.h.b16 %v1432
    %v2065 = vunpack.c.l.b16 %v1433
    %v2066 = vunpack.c.h.b16 %v1433
    %v2067 = vunpack.c.l.b16 %v1434
    %v2068 = vunpack.c.h.b16 %v1434
    %v2069 = vunpack.c.l.b16 %v1435
    %v2070 = vunpack.c.h.b16 %v1435
    %v2071 = vunpack.c.l.b16 %v1436
    %v2072 = vunpack.c.h.b16 %v1436
    %v2073 = vunpack.c.l.b16 %v1437
    %v2074 = vunpack.c.h.b16 %v1437
    %v2075 = vunpack.c.l.b16 %v1438
    %v2076 = vunpack.c.h.b16 %v1438
    %v2077 = vunpack.c.l.b16 %v1439
    %v2078 = vunpack.c.h.b16 %v1439
    %v2079 = vunpack.c.l.b16 %v1440
    %v2080 = vunpack.c.h.b16 %v1440
    %v2081 = vunpack.c.l.b16 %v1441
    %v2082 = vunpack.c.h.b16 %v1441
    %v2083 = vunpack.c.l.b16 %v1442
    %v2084 = vunpack.c.h.b16 %v1442
    %v2085 = vunpack.c.l.b16 %v1443
    %v2086 = vunpack.c.h.b16 %v1443
    %v2087 = vunpack.c.l.b16 %v1444
    %v2088 = vunpack.c.h.b16 %v1444
    %v2089 = vunpack.c.l.b16 %v1445
    %v2090 = vunpack.c.h.b16 %v1445
    %v2091 = vunpack.c.l.b16 %v1446
    %v2092 = vunpack.c.h.b16 %v1446
    %v2093 = vunpack.c.l.b16 %v1447
    %v2094 = vunpack.c.h.b16 %v1447
    %v2095 = vunpack.c.l.b16 %v1448
    %v2096 = vunpack.c.h.b16 %v1448
    %v2097 = vunpack.c.l.b16 %v1449
    %v2098 = vunpack.c.h.b16 %v1449
    %v2099 = vunpack.c.l.b16 %v1450
    %v2100 = vunpack.c.h.b16 %v1450
    %v2101 = vunpack.c.l.b16 %v1451
    %v2102 = vunpack.c.h.b16 %v1451
    %v2103 = vunpack.c.l.b16 %v1452
    %v2104 = vunpack.c.h.b16 %v1452
    %v2105 = vunpack.c.l.b16 %v1453
    %v2106 = vunpack.c.h.b16 %v1453
    %v2107 = vunpack.c.l.b16 %v1454
    %v2108 = vunpack.c.h.b16 %v1454
    %v2109 = vunpack.c.l.b16 %v1455
    %v2110 = vunpack.c.h.b16 %v1455
    %v2111 = vunpack.c.l.b16 %v1456
    %v2112 = vunpack.c.h.b16 %v1456
    %v2113 = vunpack.c.l.b16 %v1457
    %v2114 = vunpack.c.h.b16 %v1457
    %v2115 = vunpack.c.l.b16 %v1458
    %v2116 = vunpack.c.h.b16 %v1458
    %v2117 = vunpack.c.l.b16 %v1459
    %v2118 = vunpack.c.h.b16 %v1459
    %v2119 = vunpack.c.l.b16 %v1460
    %v2120 = vunpack.c.h.b16 %v1460
    %v2121 = vunpack.c.l.b16 %v1461
    %v2122 = vunpack.c.h.b16 %v1461
    %v2123 = vunpack.c.l.b16 %v1462
    %v2124 = vunpack.c.h.b16 %v1462
    %v2125 = vunpack.c.l.b16 %v1463
    %v2126 = vunpack.c.h.b16 %v1463
    %v2127 = vunpack.c.l.b16 %v1464
    %v2128 = vunpack.c.h.b16 %v1464
    %v2129 = vunpack.c.l.b16 %v1465
    %v2130 = vunpack.c.h.b16 %v1465
    %v2131 = vunpack.c.l.b16 %v1466
    %v2132 = vunpack.c.h.b16 %v1466
    %v2133 = vunpack.c.l.b16 %v1467
    %v2134 = vunpack.c.h.b16 %v1467
    %v2135 = vunpack.c.l.b16 %v1468
    %v2136 = vunpack.c.h.b16 %v1468
    %v2137 = vunpack.c.l.b16 %v1469
    %v2138 = vunpack.c.h.b16 %v1469
    %v2139 = vunpack.c.l.b16 %v1470
    %v2140 = vunpack.c.h.b16 %v1470
    %v2141 = vunpack.c.l.b16 %v1471
    %v2142 = vunpack.c.h.b16 %v1471
    %v2143 = vunpack.c.l.b16 %v1472
    %v2144 = vunpack.c.h.b16 %v1472
    %v2145 = vunpack.c.l.b16 %v1473
    %v2146 = vunpack.c.h.b16 %v1473
    %v2147 = vunpack.c.l.b16 %v1474
    %v2148 = vunpack.c.h.b16 %v1474
    %v2149 = vunpack.c.l.b16 %v1475
    %v2150 = vunpack.c.h.b16 %v1475
    %v2151 = vunpack.c.l.b16 %v1476
    %v2152 = vunpack.c.h.b16 %v1476
    %v2153 = vunpack.c.l.b16 %v1477
    %v2154 = vunpack.c.h.b16 %v1477
    %v2155 = vunpack.c.l.b16 %v1478
    %v2156 = vunpack.c.h.b16 %v1478
    %v2157 = vunpack.c.l.b16 %v1479
    %v2158 = vunpack.c.h.b16 %v1479
    %v2159 = vunpack.c.l.b16 %v1480
    %v2160 = vunpack.c.h.b16 %v1480
    %v2161 = vunpack.c.l.b16 %v1481
    %v2162 = vunpack.c.h.b16 %v1481
    %v2163 = vunpack.c.l.b16 %v1482
    %v2164 = vunpack.c.h.b16 %v1482
    %v2165 = vunpack.c.l.b16 %v1483
    %v2166 = vunpack.c.h.b16 %v1483
    %v2167 = vunpack.c.l.b16 %v1484
    %v2168 = vunpack.c.h.b16 %v1484
    %v2169 = vunpack.c.l.b16 %v1485
    %v2170 = vunpack.c.h.b16 %v1485
    %v2171 = vunpack.c.l.b16 %v1486
    %v2172 = vunpack.c.h.b16 %v1486
    %v2173 = vunpack.c.l.b16 %v1487
    %v2174 = vunpack.c.h.b16 %v1487
    %v2175 = vunpack.c.l.b16 %v1488
    %v2176 = vunpack.c.h.b16 %v1488
    %v2177 = vunpack.c.l.b16 %v1489
    %v2178 = vunpack.c.h.b16 %v1489
    %v2179 = vunpack.c.l.b16 %v1490
    %v2180 = vunpack.c.h.b16 %v1490
    %v2181 = vunpack.c.l.b16 %v1491
    %v2182 = vunpack.c.h.b16 %v1491
    %v2183 = vunpack.c.l.b16 %v1492
    %v2184 = vunpack.c.h.b16 %v1492
    %v2185 = vunpack.c.l.b16 %v1493
    %v2186 = vunpack.c.h.b16 %v1493
    %v2187 = vunpack.c.l.b16 %v1494
    %v2188 = vunpack.c.h.b16 %v1494
    %v2189 = vunpack.c.l.b16 %v1495
    %v2190 = vunpack.c.h.b16 %v1495
    %v2191 = vunpack.c.l.b16 %v1496
    %v2192 = vunpack.c.h.b16 %v1496
    %v2193 = vunpack.c.l.b16 %v1497
    %v2194 = vunpack.c.h.b16 %v1497
    %v2195 = vunpack.c.l.b16 %v1498
    %v2196 = vunpack.c.h.b16 %v1498
    %v2197 = vunpack.c.l.b16 %v1499
    %v2198 = vunpack.c.h.b16 %v1499
    %v2199 = vunpack.c.l.b16 %v1500
    %v2200 = vunpack.c.h.b16 %v1500
    %v2201 = vunpack.c.l.b16 %v1501
    %v2202 = vunpack.c.h.b16 %v1501
    %v2203 = vunpack.c.l.b16 %v1502
    %v2204 = vunpack.c.h.b16 %v1502
    %v2205 = vunpack.c.l.b16 %v1503
    %v2206 = vunpack.c.h.b16 %v1503
    %v2207 = vunpack.c.l.b16 %v1504
    %v2208 = vunpack.c.h.b16 %v1504
    %v2209 = vunpack.c.l.b16 %v1505
    %v2210 = vunpack.c.h.b16 %v1505
    %v2211 = vunpack.c.l.b16 %v1506
    %v2212 = vunpack.c.h.b16 %v1506
    %v2213 = vunpack.c.l.b16 %v1507
    %v2214 = vunpack.c.h.b16 %v1507
    %v2215 = vunpack.c.l.b16 %v1508
    %v2216 = vunpack.c.h.b16 %v1508
    %v2217 = vunpack.c.l.b16 %v1509
    %v2218 = vunpack.c.h.b16 %v1509
    %v2219 = vunpack.c.l.b16 %v1510
    %v2220 = vunpack.c.h.b16 %v1510
    %v2221 = vunpack.c.l.b16 %v1511
    %v2222 = vunpack.c.h.b16 %v1511
    %v2223 = vunpack.c.l.b16 %v1512
    %v2224 = vunpack.c.h.b16 %v1512
    %v2225 = vunpack.c.l.b16 %v1513
    %v2226 = vunpack.c.h.b16 %v1513
    %v2227 = vunpack.c.l.b16 %v1514
    %v2228 = vunpack.c.h.b16 %v1514
    %v2229 = vunpack.c.l.b16 %v1515
    %v2230 = vunpack.c.h.b16 %v1515
    %v2231 = vunpack.c.l.b16 %v1516
    %v2232 = vunpack.c.h.b16 %v1516
    %v2233 = vunpack.c.l.b16 %v1517
    %v2234 = vunpack.c.h.b16 %v1517
    %v2235 = vunpack.c.l.b16 %v1518
    %v2236 = vunpack.c.h.b16 %v1518
    %v2237 = vunpack.c.l.b16 %v1519
    %v2238 = vunpack.c.h.b16 %v1519
    %v2239 = vunpack.c.l.b16 %v1520
    %v2240 = vunpack.c.h.b16 %v1520
    %v2241 = vunpack.c.l.b16 %v1521
    %v2242 = vunpack.c.h.b16 %v1521
    %v2243 = vunpack.c.l.b16 %v1522
    %v2244 = vunpack.c.h.b16 %v1522
    %v2245 = vunpack.c.l.b16 %v1523
    %v2246 = vunpack.c.h.b16 %v1523
    %v2247 = vunpack.c.l.b16 %v1524
    %v2248 = vunpack.c.h.b16 %v1524
    %v2249 = vunpack.c.l.b16 %v1525
    %v2250 = vunpack.c.h.b16 %v1525
    %v2251 = vunpack.c.l.b16 %v1526
    %v2252 = vunpack.c.h.b16 %v1526
    %v2253 = vunpack.c.l.b16 %v1527
    %v2254 = vunpack.c.h.b16 %v1527
    %v2255 = vunpack.c.l.b16 %v1528
    %v2256 = vunpack.c.h.b16 %v1528
    %v2257 = vunpack.c.l.b16 %v1529
    %v2258 = vunpack.c.h.b16 %v1529
    %v2259 = vunpack.c.l.b16 %v1530
    %v2260 = vunpack.c.h.b16 %v1530
    %v2261 = vunpack.c.l.b16 %v1531
    %v2262 = vunpack.c.h.b16 %v1531
    %v2263 = vunpack.c.l.b16 %v1532
    %v2264 = vunpack.c.h.b16 %v1532
    %v2265 = vunpack.c.l.b16 %v1533
    %v2266 = vunpack.c.h.b16 %v1533
    %v2267 = vunpack.c.l.b16 %v1534
    %v2268 = vunpack.c.h.b16 %v1534
    %v2269 = vunpack.c.l.b16 %v1535
    %v2270 = vunpack.c.h.b16 %v1535
    %v2271 = vunpack.c.l.b16 %v1536
    %v2272 = vunpack.c.h.b16 %v1536
    %v2273 = vunpack.c.l.b16 %v1537
    %v2274 = vunpack.c.h.b16 %v1537
    %v2275 = vunpack.c.l.b16 %v1538
    %v2276 = vunpack.c.h.b16 %v1538
    %v2277 = vunpack.c.l.b16 %v1539
    %v2278 = vunpack.c.h.b16 %v1539
    %v2279 = vunpack.c.l.b16 %v1540
    %v2280 = vunpack.c.h.b16 %v1540
    %v2281 = vunpack.c.l.b16 %v1541
    %v2282 = vunpack.c.h.b16 %v1541
    %v2283 = vunpack.c.l.b16 %v1542
    %v2284 = vunpack.c.h.b16 %v1542
    %v2285 = vunpack.c.l.b16 %v1543
    %v2286 = vunpack.c.h.b16 %v1543
    %v2287 = vunpack.c.l.b16 %v1544
    %v2288 = vunpack.c.h.b16 %v1544
    %v2289 = vunpack.c.l.b16 %v1545
    %v2290 = vunpack.c.h.b16 %v1545
    %v2291 = vunpack.c.l.b16 %v1546
    %v2292 = vunpack.c.h.b16 %v1546
    %v2293 = vunpack.c.l.b16 %v1547
    %v2294 = vunpack.c.h.b16 %v1547
    %v2295 = vunpack.c.l.b16 %v1548
    %v2296 = vunpack.c.h.b16 %v1548
    %v2297 = vunpack.c.l.b16 %v1549
    %v2298 = vunpack.c.h.b16 %v1549
    %v2299 = vunpack.c.l.b16 %v1550
    %v2300 = vunpack.c.h.b16 %v1550
    %v2301 = vunpack.c.l.b16 %v1551
    %v2302 = vunpack.c.h.b16 %v1551
    %v2303 = vunpack.c.l.b16 %v1552
    %v2304 = vunpack.c.h.b16 %v1552
    %v2305 = vunpack.c.l.b16 %v1553
    %v2306 = vunpack.c.h.b16 %v1553
    %v2307 = vunpack.c.l.b16 %v1554
    %v2308 = vunpack.c.h.b16 %v1554
    %v2309 = vunpack.c.l.b16 %v1555
    %v2310 = vunpack.c.h.b16 %v1555
    %v2311 = vunpack.c.l.b16 %v1556
    %v2312 = vunpack.c.h.b16 %v1556
    %v2313 = vunpack.c.l.b16 %v1557
    %v2314 = vunpack.c.h.b16 %v1557
    %v2315 = vunpack.c.l.b16 %v1558
    %v2316 = vunpack.c.h.b16 %v1558
    %v2317 = vunpack.c.l.b16 %v1559
    %v2318 = vunpack.c.h.b16 %v1559
    %v2319 = vunpack.c.l.b16 %v1560
    %v2320 = vunpack.c.h.b16 %v1560
    %v2321 = vunpack.c.l.b16 %v1561
    %v2322 = vunpack.c.h.b16 %v1561
    %v2323 = vunpack.c.l.b16 %v1562
    %v2324 = vunpack.c.h.b16 %v1562
    %v2325 = vunpack.c.l.b16 %v1563
    %v2326 = vunpack.c.h.b16 %v1563
    %v2327 = vunpack.c.l.b16 %v1564
    %v2328 = vunpack.c.h.b16 %v1564
    %v2329 = vunpack.c.l.b16 %v1565
    %v2330 = vunpack.c.h.b16 %v1565
    %v2331 = vunpack.c.l.b16 %v1566
    %v2332 = vunpack.c.h.b16 %v1566
    %v2333 = vunpack.c.l.b16 %v1567
    %v2334 = vunpack.c.h.b16 %v1567
    %v2335 = vunpack.c.l.b16 %v1568
    %v2336 = vunpack.c.h.b16 %v1568
    %v2337 = vpack.c.b16 %v1833, %v1825
    %v2338 = vpack.c.b16 %v1834, %v1826
    %v2339 = vpack.c.b16 %v1835, %v1827
    %v2340 = vpack.c.b16 %v1836, %v1828
    %v2341 = vpack.c.b16 %v1837, %v1829
    %v2342 = vpack.c.b16 %v1838, %v1830
    %v2343 = vpack.c.b16 %v1839, %v1831
    %v2344 = vpack.c.b16 %v1840, %v1832
    %v2345 = vpack.c.b16 %v1849, %v1841
    %v2346 = vpack.c.b16 %v1850, %v1842
    %v2347 = vpack.c.b16 %v1851, %v1843
    %v2348 = vpack.c.b16 %v1852, %v1844
    %v2349 = vpack.c.b16 %v1853, %v1845
    %v2350 = vpack.c.b16 %v1854, %v1846
    %v2351 = vpack.c.b16 %v1855, %v1847
    %v2352 = vpack.c.b16 %v1856, %v1848
    %v2353 = vpack.c.b16 %v1865, %v1857
    %v2354 = vpack.c.b16 %v1866, %v1858
    %v2355 = vpack.c.b16 %v1867, %v1859
    %v2356 = vpack.c.b16 %v1868, %v1860
    %v2357 = vpack.c.b16 %v1869, %v1861
    %v2358 = vpack.c.b16 %v1870, %v1862
    %v2359 = vpack.c.b16 %v1871, %v1863
    %v2360 = vpack.c.b16 %v1872, %v1864
    %v2361 = vpack.c.b16 %v1881, %v1873
    %v2362 = vpack.c.b16 %v1882, %v1874
    %v2363 = vpack.c.b16 %v1883, %v1875
    %v2364 = vpack.c.b16 %v1884, %v1876
    %v2365 = vpack.c.b16 %v1885, %v1877
    %v2366 = vpack.c.b16 %v1886, %v1878
    %v2367 = vpack.c.b16 %v1887, %v1879
    %v2368 = vpack.c.b16 %v1888, %v1880
    %v2369 = vpack.c.b16 %v1897, %v1889
    %v2370 = vpack.c.b16 %v1898, %v1890
    %v2371 = vpack.c.b16 %v1899, %v1891
    %v2372 = vpack.c.b16 %v1900, %v1892
    %v2373 = vpack.c.b16 %v1901, %v1893
    %v2374 = vpack.c.b16 %v1902, %v1894
    %v2375 = vpack.c.b16 %v1903, %v1895
    %v2376 = vpack.c.b16 %v1904, %v1896
    %v2377 = vpack.c.b16 %v1913, %v1905
    %v2378 = vpack.c.b16 %v1914, %v1906
    %v2379 = vpack.c.b16 %v1915, %v1907
    %v2380 = vpack.c.b16 %v1916, %v1908
    %v2381 = vpack.c.b16 %v1917, %v1909
    %v2382 = vpack.c.b16 %v1918, %v1910
    %v2383 = vpack.c.b16 %v1919, %v1911
    %v2384 = vpack.c.b16 %v1920, %v1912
    %v2385 = vpack.c.b16 %v1929, %v1921
    %v2386 = vpack.c.b16 %v1930, %v1922
    %v2387 = vpack.c.b16 %v1931, %v1923
    %v2388 = vpack.c.b16 %v1932, %v1924
    %v2389 = vpack.c.b16 %v1933, %v1925
    %v2390 = vpack.c.b16 %v1934, %v1926
    %v2391 = vpack.c.b16 %v1935, %v1927
    %v2392 = vpack.c.b16 %v1936, %v1928
    %v2393 = vpack.c.b16 %v1945, %v1937
    %v2394 = vpack.c.b16 %v1946, %v1938
    %v2395 = vpack.c.b16 %v1947, %v1939
    %v2396 = vpack.c.b16 %v1948, %v1940
    %v2397 = vpack.c.b16 %v1949, %v1941
    %v2398 = vpack.c.b16 %v1950, %v1942
    %v2399 = vpack.c.b16 %v1951, %v1943
    %v2400 = vpack.c.b16 %v1952, %v1944
    %v2401 = vpack.c.b16 %v1961, %v1953
    %v2402 = vpack.c.b16 %v1962, %v1954
    %v2403 = vpack.c.b16 %v1963, %v1955
    %v2404 = vpack.c.b16 %v1964, %v1956
    %v2405 = vpack.c.b16 %v1965, %v1957
    %v2406 = vpack.c.b16 %v1966, %v1958
    %v2407 = vpack.c.b16 %v1967, %v1959
    %v2408 = vpack.c.b16 %v1968, %v1960
    %v2409 = vpack.c.b16 %v1977, %v1969
    %v2410 = vpack.c.b16 %v1978, %v1970
    %v2411 = vpack.c.b16 %v1979, %v1971
    %v2412 = vpack.c.b16 %v1980, %v1972
    %v2413 = vpack.c.b16 %v1981, %v1973
    %v2414 = vpack.c.b16 %v1982, %v1974
    %v2415 = vpack.c.b16 %v1983, %v1975
    %v2416 = vpack.c.b16 %v1984, %v1976
    %v2417 = vpack.c.b16 %v1993, %v1985
    %v2418 = vpack.c.b16 %v1994, %v1986
    %v2419 = vpack.c.b16 %v1995, %v1987
    %v2420 = vpack.c.b16 %v1996, %v1988
    %v2421 = vpack.c.b16 %v1997, %v1989
    %v2422 = vpack.c.b16 %v1998, %v1990
    %v2423 = vpack.c.b16 %v1999, %v1991
    %v2424 = vpack.c.b16 %v2000, %v1992
    %v2425 = vpack.c.b16 %v2009, %v2001
    %v2426 = vpack.c.b16 %v2010, %v2002
    %v2427 = vpack.c.b16 %v2011, %v2003
    %v2428 = vpack.c.b16 %v2012, %v2004
    %v2429 = vpack.c.b16 %v2013, %v2005
    %v2430 = vpack.c.b16 %v2014, %v2006
    %v2431 = vpack.c.b16 %v2015, %v2007
    %v2432 = vpack.c.b16 %v2016, %v2008
    %v2433 = vpack.c.b16 %v2025, %v2017
    %v2434 = vpack.c.b16 %v2026, %v2018
    %v2435 = vpack.c.b16 %v2027, %v2019
    %v2436 = vpack.c.b16 %v2028, %v2020
    %v2437 = vpack.c.b16 %v2029, %v2021
    %v2438 = vpack.c.b16 %v2030, %v2022
    %v2439 = vpack.c.b16 %v2031, %v2023
    %v2440 = vpack.c.b16 %v2032, %v2024
    %v2441 = vpack.c.b16 %v2041, %v2033
    %v2442 = vpack.c.b16 %v2042, %v2034
    %v2443 = vpack.c.b16 %v2043, %v2035
    %v2444 = vpack.c.b16 %v2044, %v2036
    %v2445 = vpack.c.b16 %v2045, %v2037
    %v2446 = vpack.c.b16 %v2046, %v2038
    %v2447 = vpack.c.b16 %v2047, %v2039
    %v2448 = vpack.c.b16 %v2048, %v2040
    %v2449 = vpack.c.b16 %v2057, %v2049
    %v2450 = vpack.c.b16 %v2058, %v2050
    %v2451 = vpack.c.b16 %v2059, %v2051
    %v2452 = vpack.c.b16 %v2060, %v2052
    %v2453 = vpack.c.b16 %v2061, %v2053
    %v2454 = vpack.c.b16 %v2062, %v2054
    %v2455 = vpack.c.b16 %v2063, %v2055
    %v2456 = vpack.c.b16 %v2064, %v2056
    %v2457 = vpack.c.b16 %v2073, %v2065
    %v2458 = vpack.c.b16 %v2074, %v2066
    %v2459 = vpack.c.b16 %v2075, %v2067
    %v2460 = vpack.c.b16 %v2076, %v2068
    %v2461 = vpack.c.b16 %v2077, %v2069
    %v2462 = vpack.c.b16 %v2078, %v2070
    %v2463 = vpack.c.b16 %v2079, %v2071
    %v2464 = vpack.c.b16 %v2080, %v2072
    %v2465 = vpack.c.b16 %v2089, %v2081
    %v2466 = vpack.c.b16 %v2090, %v2082
    %v2467 = vpack.c.b16 %v2091, %v2083
    %v2468 = vpack.c.b16 %v2092, %v2084
    %v2469 = vpack.c.b16 %v2093, %v2085
    %v2470 = vpack.c.b16 %v2094, %v2086
    %v2471 = vpack.c.b16 %v2095, %v2087
    %v2472 = vpack.c.b16 %v2096, %v2088
    %v2473 = vpack.c.b16 %v2105, %v2097
    %v2474 = vpack.c.b16 %v2106, %v2098
    %v2475 = vpack.c.b16 %v2107, %v2099
    %v2476 = vpack.c.b16 %v2108, %v2100
    %v2477 = vpack.c.b16 %v2109, %v2101
    %v2478 = vpack.c.b16 %v2110, %v2102
    %v2479 = vpack.c.b16 %v2111, %v2103
    %v2480 = vpack.c.b16 %v2112, %v2104
    %v2481 = vpack.c.b16 %v2121, %v2113
    %v2482 = vpack.c.b16 %v2122, %v2114
    %v2483 = vpack.c.b16 %v2123, %v2115
    %v2484 = vpack.c.b16 %v2124, %v2116
    %v2485 = vpack.c.b16 %v2125, %v2117
    %v2486 = vpack.c.b16 %v2126, %v2118
    %v2487 = vpack.c.b16 %v2127, %v2119
    %v2488 = vpack.c.b16 %v2128, %v2120
    %v2489 = vpack.c.b16 %v2137, %v2129
    %v2490 = vpack.c.b16 %v2138, %v2130
    %v2491 = vpack.c.b16 %v2139, %v2131
    %v2492 = vpack.c.b16 %v2140, %v2132
    %v2493 = vpack.c.b16 %v2141, %v2133
    %v2494 = vpack.c.b16 %v2142, %v2134
    %v2495 = vpack.c.b16 %v2143, %v2135
    %v2496 = vpack.c.b16 %v2144, %v2136
    %v2497 = vpack.c.b16 %v2153, %v2145
    %v2498 = vpack.c.b16 %v2154, %v2146
    %v2499 = vpack.c.b16 %v2155, %v2147
    %v2500 = vpack.c.b16 %v2156, %v2148
    %v2501 = vpack.c.b16 %v2157, %v2149
    %v2502 = vpack.c.b16 %v2158, %v2150
    %v2503 = vpack.c.b16 %v2159, %v2151
    %v2504 = vpack.c.b16 %v2160, %v2152
    %v2505 = vpack.c.b16 %v2169, %v2161
    %v2506 = vpack.c.b16 %v2170, %v2162
    %v2507 = vpack.c.b16 %v2171, %v2163
    %v2508 = vpack.c.b16 %v2172, %v2164
    %v2509 = vpack.c.b16 %v2173, %v2165
    %v2510 = vpack.c.b16 %v2174, %v2166
    %v2511 = vpack.c.b16 %v2175, %v2167
    %v2512 = vpack.c.b16 %v2176, %v2168
    %v2513 = vpack.c.b16 %v2185, %v2177
    %v2514 = vpack.c.b16 %v2186, %v2178
    %v2515 = vpack.c.b16 %v2187, %v2179
    %v2516 = vpack.c.b16 %v2188, %v2180
    %v2517 = vpack.c.b16 %v2189, %v2181
    %v2518 = vpack.c.b16 %v2190, %v2182
    %v2519 = vpack.c.b16 %v2191, %v2183
    %v2520 = vpack.c.b16 %v2192, %v2184
    %v2521 = vpack.c.b16 %v2201, %v2193
    %v2522 = vpack.c.b16 %v2202, %v2194
    %v2523 = vpack.c.b16 %v2203, %v2195
    %v2524 = vpack.c.b16 %v2204, %v2196
    %v2525 = vpack.c.b16 %v2205, %v2197
    %v2526 = vpack.c.b16 %v2206, %v2198
    %v2527 = vpack.c.b16 %v2207, %v2199
    %v2528 = vpack.c.b16 %v2208, %v2200
    %v2529 = vpack.c.b16 %v2217, %v2209
    %v2530 = vpack.c.b16 %v2218, %v2210
    %v2531 = vpack.c.b16 %v2219, %v2211
    %v2532 = vpack.c.b16 %v2220, %v2212
    %v2533 = vpack.c.b16 %v2221, %v2213
    %v2534 = vpack.c.b16 %v2222, %v2214
    %v2535 = vpack.c.b16 %v2223, %v2215
    %v2536 = vpack.c.b16 %v2224, %v2216
    %v2537 = vpack.c.b16 %v2233, %v2225
    %v2538 = vpack.c.b16 %v2234, %v2226
    %v2539 = vpack.c.b16 %v2235, %v2227
    %v2540 = vpack.c.b16 %v2236, %v2228
    %v2541 = vpack.c.b16 %v2237, %v2229
    %v2542 = vpack.c.b16 %v2238, %v2230
    %v2543 = vpack.c.b16 %v2239, %v2231
    %v2544 = vpack.c.b16 %v2240, %v2232
    %v2545 = vpack.c.b16 %v2249, %v2241
    %v2546 = vpack.c.b16 %v2250, %v2242
    %v2547 = vpack.c.b16 %v2251, %v2243
    %v2548 = vpack.c.b16 %v2252, %v2244
    %v2549 = vpack.c.b16 %v2253, %v2245
    %v2550 = vpack.c.b16 %v2254, %v2246
    %v2551 = vpack.c.b16 %v2255, %v2247
    %v2552 = vpack.c.b16 %v2256, %v2248
    %v2553 = vpack.c.b16 %v2265, %v2257
    %v2554 = vpack.c.b16 %v2266, %v2258
    %v2555 = vpack.c.b16 %v2267, %v2259
    %v2556 = vpack.c.b16 %v2268, %v2260
    %v2557 = vpack.c.b16 %v2269, %v2261
    %v2558 = vpack.c.b16 %v2270, %v2262
    %v2559 = vpack.c.b16 %v2271, %v2263
    %v2560 = vpack.c.b16 %v2272, %v2264
    %v2561 = vpack.c.b16 %v2281, %v2273
    %v2562 = vpack.c.b16 %v2282, %v2274
    %v2563 = vpack.c.b16 %v2283, %v2275
    %v2564 = vpack.c.b16 %v2284, %v2276
    %v2565 = vpack.c.b16 %v2285, %v2277
    %v2566 = vpack.c.b16 %v2286, %v2278
    %v2567 = vpack.c.b16 %v2287, %v2279
    %v2568 = vpack.c.b16 %v2288, %v2280
    %v2569 = vpack.c.b16 %v2297, %v2289
    %v2570 = vpack.c.b16 %v2298, %v2290
    %v2571 = vpack.c.b16 %v2299, %v2291
    %v2572 = vpack.c.b16 %v2300, %v2292
    %v2573 = vpack.c.b16 %v2301, %v2293
    %v2574 = vpack.c.b16 %v2302, %v2294
    %v2575 = vpack.c.b16 %v2303, %v2295
    %v2576 = vpack.c.b16 %v2304, %v2296
    %v2577 = vpack.c.b16 %v2313, %v2305
    %v2578 = vpack.c.b16 %v2314, %v2306
    %v2579 = vpack.c.b16 %v2315, %v2307
    %v2580 = vpack.c.b16 %v2316, %v2308
    %v2581 = vpack.c.b16 %v2317, %v2309
    %v2582 = vpack.c.b16 %v2318, %v2310
    %v2583 = vpack.c.b16 %v2319, %v2311
    %v2584 = vpack.c.b16 %v2320, %v2312
    %v2585 = vpack.c.b16 %v2329, %v2321
    %v2586 = vpack.c.b16 %v2330, %v2322
    %v2587 = vpack.c.b16 %v2331, %v2323
    %v2588 = vpack.c.b16 %v2332, %v2324
    %v2589 = vpack.c.b16 %v2333, %v2325
    %v2590 = vpack.c.b16 %v2334, %v2326
    %v2591 = vpack.c.b16 %v2335, %v2327
    %v2592 = vpack.c.b16 %v2336, %v2328
    %2849 = vmatprep.subr.bf16.mxu0 %v2338
    %2850 = vmatpush1.bf16.msra.mxu0 %v2337
    %2851 = vmatprep.subr.bf16.mxu0 %v2346
    %2852 = vmatpush1.bf16.msra.mxu0 %v2345
    %2853 = vmatprep.subr.bf16.mxu0 %v2354
    %2854 = vmatpush1.bf16.msra.mxu0 %v2353
    %2855 = vmatprep.subr.bf16.mxu0 %v2362
    %2856 = vmatpush1.bf16.msra.mxu0 %v2361
    %2857 = vmatprep.subr.bf16.mxu0 %v2370
    %2858 = vmatpush1.bf16.msra.mxu0 %v2369
    %2859 = vmatprep.subr.bf16.mxu0 %v2378
    %2860 = vmatpush1.bf16.msra.mxu0 %v2377
    %2861 = vmatprep.subr.bf16.mxu0 %v2386
    %2862 = vmatpush1.bf16.msra.mxu0 %v2385
    %2863 = vmatprep.subr.bf16.mxu0 %v2394
    %2864 = vmatpush1.bf16.msra.mxu0 %v2393
    %2865 = vmatprep.subr.bf16.mxu0 %v2402
    %2866 = vmatpush1.bf16.msra.mxu0 %v2401
    %2867 = vmatprep.subr.bf16.mxu0 %v2410
    %2868 = vmatpush1.bf16.msra.mxu0 %v2409
    %2869 = vmatprep.subr.bf16.mxu0 %v2418
    %2870 = vmatpush1.bf16.msra.mxu0 %v2417
    %2871 = vmatprep.subr.bf16.mxu0 %v2426
    %2872 = vmatpush1.bf16.msra.mxu0 %v2425
    %2873 = vmatprep.subr.bf16.mxu0 %v2434
    %2874 = vmatpush1.bf16.msra.mxu0 %v2433
    %2875 = vmatprep.subr.bf16.mxu0 %v2442
    %2876 = vmatpush1.bf16.msra.mxu0 %v2441
    %2877 = vmatprep.subr.bf16.mxu0 %v2450
    %2878 = vmatpush1.bf16.msra.mxu0 %v2449
    %2879 = vmatprep.subr.bf16.mxu0 %v2458
    %2880 = vmatpush1.bf16.msra.mxu0 %v2457
    %2881 = vmatprep.mubr.bf16.mxu0 %v1310
    %2882 = vmatmul.mubr.bf16.gmra.mrb[0].mxu0 %v1309
    %v2883 = vpop.f32.mrb[0].mxu0
    %v2884 = vadd.f32 0.0, %v2883
    %v2885 = vpop.f32.mrb[0].mxu0
    %v2886 = vadd.f32 0.0, %v2885
    %v2887 = vpop.f32.mrb[0].mxu0
    %v2888 = vadd.f32 0.0, %v2887
    %v2889 = vpop.f32.mrb[0].mxu0
    %v2890 = vadd.f32 0.0, %v2889
    %2891 = vdwg.mxu0
    %2892 = vmatprep.subr.bf16.mxu0 %v2466
    %2893 = vmatpush1.bf16.msra.mxu0 %v2465
    %2894 = vmatprep.subr.bf16.mxu0 %v2474
    %2895 = vmatpush1.bf16.msra.mxu0 %v2473
    %2896 = vmatprep.subr.bf16.mxu0 %v2482
    %2897 = vmatpush1.bf16.msra.mxu0 %v2481
    %2898 = vmatprep.subr.bf16.mxu0 %v2490
    %2899 = vmatpush1.bf16.msra.mxu0 %v2489
    %2900 = vmatprep.subr.bf16.mxu0 %v2498
    %2901 = vmatpush1.bf16.msra.mxu0 %v2497
    %2902 = vmatprep.subr.bf16.mxu0 %v2506
    %2903 = vmatpush1.bf16.msra.mxu0 %v2505
    %2904 = vmatprep.subr.bf16.mxu0 %v2514
    %2905 = vmatpush1.bf16.msra.mxu0 %v2513
    %2906 = vmatprep.subr.bf16.mxu0 %v2522
    %2907 = vmatpush1.bf16.msra.mxu0 %v2521
    %2908 = vmatprep.subr.bf16.mxu0 %v2530
    %2909 = vmatpush1.bf16.msra.mxu0 %v2529
    %2910 = vmatprep.subr.bf16.mxu0 %v2538
    %2911 = vmatpush1.bf16.msra.mxu0 %v2537
    %2912 = vmatprep.subr.bf16.mxu0 %v2546
    %2913 = vmatpush1.bf16.msra.mxu0 %v2545
    %2914 = vmatprep.subr.bf16.mxu0 %v2554
    %2915 = vmatpush1.bf16.msra.mxu0 %v2553
    %2916 = vmatprep.subr.bf16.mxu0 %v2562
    %2917 = vmatpush1.bf16.msra.mxu0 %v2561
    %2918 = vmatprep.subr.bf16.mxu0 %v2570
    %2919 = vmatpush1.bf16.msra.mxu0 %v2569
    %2920 = vmatprep.subr.bf16.mxu0 %v2578
    %2921 = vmatpush1.bf16.msra.mxu0 %v2577
    %2922 = vmatprep.subr.bf16.mxu0 %v2586
    %2923 = vmatpush1.bf16.msra.mxu0 %v2585
    %2924 = vmatprep.mubr.bf16.mxu0 %v1312
    %2925 = vmatmul.mubr.bf16.gmra.mrb[0].mxu0 %v1311
    %v2926 = vpop.f32.mrb[0].mxu0
    %v2927 = vadd.f32 %v2884, %v2926
    %v2928 = vpop.f32.mrb[0].mxu0
    %v2929 = vadd.f32 %v2886, %v2928
    %v2930 = vpop.f32.mrb[0].mxu0
    %v2931 = vadd.f32 %v2888, %v2930
    %v2932 = vpop.f32.mrb[0].mxu0
    %v2933 = vadd.f32 %v2890, %v2932
    %2934 = vdwg.mxu0
    %2935 = vmatprep.subr.bf16.mxu0 %v2340
    %2936 = vmatpush1.bf16.msra.mxu0 %v2339
    %2937 = vmatprep.subr.bf16.mxu0 %v2348
    %2938 = vmatpush1.bf16.msra.mxu0 %v2347
    %2939 = vmatprep.subr.bf16.mxu0 %v2356
    %2940 = vmatpush1.bf16.msra.mxu0 %v2355
    %2941 = vmatprep.subr.bf16.mxu0 %v2364
    %2942 = vmatpush1.bf16.msra.mxu0 %v2363
    %2943 = vmatprep.subr.bf16.mxu0 %v2372
    %2944 = vmatpush1.bf16.msra.mxu0 %v2371
    %2945 = vmatprep.subr.bf16.mxu0 %v2380
    %2946 = vmatpush1.bf16.msra.mxu0 %v2379
    %2947 = vmatprep.subr.bf16.mxu0 %v2388
    %2948 = vmatpush1.bf16.msra.mxu0 %v2387
    %2949 = vmatprep.subr.bf16.mxu0 %v2396
    %2950 = vmatpush1.bf16.msra.mxu0 %v2395
    %2951 = vmatprep.subr.bf16.mxu0 %v2404
    %2952 = vmatpush1.bf16.msra.mxu0 %v2403
    %2953 = vmatprep.subr.bf16.mxu0 %v2412
    %2954 = vmatpush1.bf16.msra.mxu0 %v2411
    %2955 = vmatprep.subr.bf16.mxu0 %v2420
    %2956 = vmatpush1.bf16.msra.mxu0 %v2419
    %2957 = vmatprep.subr.bf16.mxu0 %v2428
    %2958 = vmatpush1.bf16.msra.mxu0 %v2427
    %2959 = vmatprep.subr.bf16.mxu0 %v2436
    %2960 = vmatpush1.bf16.msra.mxu0 %v2435
    %2961 = vmatprep.subr.bf16.mxu0 %v2444
    %2962 = vmatpush1.bf16.msra.mxu0 %v2443
    %2963 = vmatprep.subr.bf16.mxu0 %v2452
    %2964 = vmatpush1.bf16.msra.mxu0 %v2451
    %2965 = vmatprep.subr.bf16.mxu0 %v2460
    %2966 = vmatpush1.bf16.msra.mxu0 %v2459
    %2967 = vmatprep.mubr.bf16.mxu0 %v1310
    %2968 = vmatmul.mubr.bf16.gmra.mrb[0].mxu0 %v1309
    %v2969 = vpop.f32.mrb[0].mxu0
    %v2970 = vadd.f32 0.0, %v2969
    %v2971 = vpop.f32.mrb[0].mxu0
    %v2972 = vadd.f32 0.0, %v2971
    %v2973 = vpop.f32.mrb[0].mxu0
    %v2974 = vadd.f32 0.0, %v2973
    %v2975 = vpop.f32.mrb[0].mxu0
    %v2976 = vadd.f32 0.0, %v2975
    %2977 = vdwg.mxu0
    %2978 = vmatprep.subr.bf16.mxu0 %v2468
    %2979 = vmatpush1.bf16.msra.mxu0 %v2467
    %2980 = vmatprep.subr.bf16.mxu0 %v2476
    %2981 = vmatpush1.bf16.msra.mxu0 %v2475
    %2982 = vmatprep.subr.bf16.mxu0 %v2484
    %2983 = vmatpush1.bf16.msra.mxu0 %v2483
    %2984 = vmatprep.subr.bf16.mxu0 %v2492
    %2985 = vmatpush1.bf16.msra.mxu0 %v2491
    %2986 = vmatprep.subr.bf16.mxu0 %v2500
    %2987 = vmatpush1.bf16.msra.mxu0 %v2499
    %2988 = vmatprep.subr.bf16.mxu0 %v2508
    %2989 = vmatpush1.bf16.msra.mxu0 %v2507
    %2990 = vmatprep.subr.bf16.mxu0 %v2516
    %2991 = vmatpush1.bf16.msra.mxu0 %v2515
    %2992 = vmatprep.subr.bf16.mxu0 %v2524
    %2993 = vmatpush1.bf16.msra.mxu0 %v2523
    %2994 = vmatprep.subr.bf16.mxu0 %v2532
    %2995 = vmatpush1.bf16.msra.mxu0 %v2531
    %2996 = vmatprep.subr.bf16.mxu0 %v2540
    %2997 = vmatpush1.bf16.msra.mxu0 %v2539
    %2998 = vmatprep.subr.bf16.mxu0 %v2548
    %2999 = vmatpush1.bf16.msra.mxu0 %v2547
    %3000 = vmatprep.subr.bf16.mxu0 %v2556
    %3001 = vmatpush1.bf16.msra.mxu0 %v2555
    %3002 = vmatprep.subr.bf16.mxu0 %v2564
    %3003 = vmatpush1.bf16.msra.mxu0 %v2563
    %3004 = vmatprep.subr.bf16.mxu0 %v2572
    %3005 = vmatpush1.bf16.msra.mxu0 %v2571
    %3006 = vmatprep.subr.bf16.mxu0 %v2580
    %3007 = vmatpush1.bf16.msra.mxu0 %v2579
    %3008 = vmatprep.subr.bf16.mxu0 %v2588
    %3009 = vmatpush1.bf16.msra.mxu0 %v2587
    %3010 = vmatprep.mubr.bf16.mxu0 %v1312
    %3011 = vmatmul.mubr.bf16.gmra.mrb[0].mxu0 %v1311
    %v3012 = vpop.f32.mrb[0].mxu0
    %v3013 = vadd.f32 %v2970, %v3012
    %v3014 = vpop.f32.mrb[0].mxu0
    %v3015 = vadd.f32 %v2972, %v3014
    %v3016 = vpop.f32.mrb[0].mxu0
    %v3017 = vadd.f32 %v2974, %v3016
    %v3018 = vpop.f32.mrb[0].mxu0
    %v3019 = vadd.f32 %v2976, %v3018
    %3020 = vdwg.mxu0
    %3021 = vmatprep.subr.bf16.mxu0 %v2342
    %3022 = vmatpush1.bf16.msra.mxu0 %v2341
    %3023 = vmatprep.subr.bf16.mxu0 %v2350
    %3024 = vmatpush1.bf16.msra.mxu0 %v2349
    %3025 = vmatprep.subr.bf16.mxu0 %v2358
    %3026 = vmatpush1.bf16.msra.mxu0 %v2357
    %3027 = vmatprep.subr.bf16.mxu0 %v2366
    %3028 = vmatpush1.bf16.msra.mxu0 %v2365
    %3029 = vmatprep.subr.bf16.mxu0 %v2374
    %3030 = vmatpush1.bf16.msra.mxu0 %v2373
    %3031 = vmatprep.subr.bf16.mxu0 %v2382
    %3032 = vmatpush1.bf16.msra.mxu0 %v2381
    %3033 = vmatprep.subr.bf16.mxu0 %v2390
    %3034 = vmatpush1.bf16.msra.mxu0 %v2389
    %3035 = vmatprep.subr.bf16.mxu0 %v2398
    %3036 = vmatpush1.bf16.msra.mxu0 %v2397
    %3037 = vmatprep.subr.bf16.mxu0 %v2406
    %3038 = vmatpush1.bf16.msra.mxu0 %v2405
    %3039 = vmatprep.subr.bf16.mxu0 %v2414
    %3040 = vmatpush1.bf16.msra.mxu0 %v2413
    %3041 = vmatprep.subr.bf16.mxu0 %v2422
    %3042 = vmatpush1.bf16.msra.mxu0 %v2421
    %3043 = vmatprep.subr.bf16.mxu0 %v2430
    %3044 = vmatpush1.bf16.msra.mxu0 %v2429
    %3045 = vmatprep.subr.bf16.mxu0 %v2438
    %3046 = vmatpush1.bf16.msra.mxu0 %v2437
    %3047 = vmatprep.subr.bf16.mxu0 %v2446
    %3048 = vmatpush1.bf16.msra.mxu0 %v2445
    %3049 = vmatprep.subr.bf16.mxu0 %v2454
    %3050 = vmatpush1.bf16.msra.mxu0 %v2453
    %3051 = vmatprep.subr.bf16.mxu0 %v2462
    %3052 = vmatpush1.bf16.msra.mxu0 %v2461
    %3053 = vmatprep.mubr.bf16.mxu0 %v1310
    %3054 = vmatmul.mubr.bf16.gmra.mrb[0].mxu0 %v1309
    %v3055 = vpop.f32.mrb[0].mxu0
    %v3056 = vadd.f32 0.0, %v3055
    %v3057 = vpop.f32.mrb[0].mxu0
    %v3058 = vadd.f32 0.0, %v3057
    %v3059 = vpop.f32.mrb[0].mxu0
    %v3060 = vadd.f32 0.0, %v3059
    %v3061 = vpop.f32.mrb[0].mxu0
    %v3062 = vadd.f32 0.0, %v3061
    %3063 = vdwg.mxu0
    %3064 = vmatprep.subr.bf16.mxu0 %v2470
    %3065 = vmatpush1.bf16.msra.mxu0 %v2469
    %3066 = vmatprep.subr.bf16.mxu0 %v2478
    %3067 = vmatpush1.bf16.msra.mxu0 %v2477
    %3068 = vmatprep.subr.bf16.mxu0 %v2486
    %3069 = vmatpush1.bf16.msra.mxu0 %v2485
    %3070 = vmatprep.subr.bf16.mxu0 %v2494
    %3071 = vmatpush1.bf16.msra.mxu0 %v2493
    %3072 = vmatprep.subr.bf16.mxu0 %v2502
    %3073 = vmatpush1.bf16.msra.mxu0 %v2501
    %3074 = vmatprep.subr.bf16.mxu0 %v2510
    %3075 = vmatpush1.bf16.msra.mxu0 %v2509
    %3076 = vmatprep.subr.bf16.mxu0 %v2518
    %3077 = vmatpush1.bf16.msra.mxu0 %v2517
    %3078 = vmatprep.subr.bf16.mxu0 %v2526
    %3079 = vmatpush1.bf16.msra.mxu0 %v2525
    %3080 = vmatprep.subr.bf16.mxu0 %v2534
    %3081 = vmatpush1.bf16.msra.mxu0 %v2533
    %3082 = vmatprep.subr.bf16.mxu0 %v2542
    %3083 = vmatpush1.bf16.msra.mxu0 %v2541
    %3084 = vmatprep.subr.bf16.mxu0 %v2550
    %3085 = vmatpush1.bf16.msra.mxu0 %v2549
    %3086 = vmatprep.subr.bf16.mxu0 %v2558
    %3087 = vmatpush1.bf16.msra.mxu0 %v2557
    %3088 = vmatprep.subr.bf16.mxu0 %v2566
    %3089 = vmatpush1.bf16.msra.mxu0 %v2565
    %3090 = vmatprep.subr.bf16.mxu0 %v2574
    %3091 = vmatpush1.bf16.msra.mxu0 %v2573
    %3092 = vmatprep.subr.bf16.mxu0 %v2582
    %3093 = vmatpush1.bf16.msra.mxu0 %v2581
    %3094 = vmatprep.subr.bf16.mxu0 %v2590
    %3095 = vmatpush1.bf16.msra.mxu0 %v2589
    %3096 = vmatprep.mubr.bf16.mxu0 %v1312
    %3097 = vmatmul.mubr.bf16.gmra.mrb[0].mxu0 %v1311
    %v3098 = vpop.f32.mrb[0].mxu0
    %v3099 = vadd.f32 %v3056, %v3098
    %v3100 = vpop.f32.mrb[0].mxu0
    %v3101 = vadd.f32 %v3058, %v3100
    %v3102 = vpop.f32.mrb[0].mxu0
    %v3103 = vadd.f32 %v3060, %v3102
    %v3104 = vpop.f32.mrb[0].mxu0
    %v3105 = vadd.f32 %v3062, %v3104
    %3106 = vdwg.mxu0
    %3107 = vmatprep.subr.bf16.mxu0 %v2344
    %3108 = vmatpush1.bf16.msra.mxu0 %v2343
    %3109 = vmatprep.subr.bf16.mxu0 %v2352
    %3110 = vmatpush1.bf16.msra.mxu0 %v2351
    %3111 = vmatprep.subr.bf16.mxu0 %v2360
    %3112 = vmatpush1.bf16.msra.mxu0 %v2359
    %3113 = vmatprep.subr.bf16.mxu0 %v2368
    %3114 = vmatpush1.bf16.msra.mxu0 %v2367
    %3115 = vmatprep.subr.bf16.mxu0 %v2376
    %3116 = vmatpush1.bf16.msra.mxu0 %v2375
    %3117 = vmatprep.subr.bf16.mxu0 %v2384
    %3118 = vmatpush1.bf16.msra.mxu0 %v2383
    %3119 = vmatprep.subr.bf16.mxu0 %v2392
    %3120 = vmatpush1.bf16.msra.mxu0 %v2391
    %3121 = vmatprep.subr.bf16.mxu0 %v2400
    %3122 = vmatpush1.bf16.msra.mxu0 %v2399
    %3123 = vmatprep.subr.bf16.mxu0 %v2408
    %3124 = vmatpush1.bf16.msra.mxu0 %v2407
    %3125 = vmatprep.subr.bf16.mxu0 %v2416
    %3126 = vmatpush1.bf16.msra.mxu0 %v2415
    %3127 = vmatprep.subr.bf16.mxu0 %v2424
    %3128 = vmatpush1.bf16.msra.mxu0 %v2423
    %3129 = vmatprep.subr.bf16.mxu0 %v2432
    %3130 = vmatpush1.bf16.msra.mxu0 %v2431
    %3131 = vmatprep.subr.bf16.mxu0 %v2440
    %3132 = vmatpush1.bf16.msra.mxu0 %v2439
    %3133 = vmatprep.subr.bf16.mxu0 %v2448
    %3134 = vmatpush1.bf16.msra.mxu0 %v2447
    %3135 = vmatprep.subr.bf16.mxu0 %v2456
    %3136 = vmatpush1.bf16.msra.mxu0 %v2455
    %3137 = vmatprep.subr.bf16.mxu0 %v2464
    %3138 = vmatpush1.bf16.msra.mxu0 %v2463
    %3139 = vmatprep.mubr.bf16.mxu0 %v1310
    %3140 = vmatmul.mubr.bf16.gmra.mrb[0].mxu0 %v1309
    %v3141 = vpop.f32.mrb[0].mxu0
    %v3142 = vadd.f32 0.0, %v3141
    %v3143 = vpop.f32.mrb[0].mxu0
    %v3144 = vadd.f32 0.0, %v3143
    %v3145 = vpop.f32.mrb[0].mxu0
    %v3146 = vadd.f32 0.0, %v3145
    %v3147 = vpop.f32.mrb[0].mxu0
    %v3148 = vadd.f32 0.0, %v3147
    %3149 = vdwg.mxu0
    %3150 = vmatprep.subr.bf16.mxu0 %v2472
    %3151 = vmatpush1.bf16.msra.mxu0 %v2471
    %3152 = vmatprep.subr.bf16.mxu0 %v2480
    %3153 = vmatpush1.bf16.msra.mxu0 %v2479
    %3154 = vmatprep.subr.bf16.mxu0 %v2488
    %3155 = vmatpush1.bf16.msra.mxu0 %v2487
    %3156 = vmatprep.subr.bf16.mxu0 %v2496
    %3157 = vmatpush1.bf16.msra.mxu0 %v2495
    %3158 = vmatprep.subr.bf16.mxu0 %v2504
    %3159 = vmatpush1.bf16.msra.mxu0 %v2503
    %3160 = vmatprep.subr.bf16.mxu0 %v2512
    %3161 = vmatpush1.bf16.msra.mxu0 %v2511
    %3162 = vmatprep.subr.bf16.mxu0 %v2520
    %3163 = vmatpush1.bf16.msra.mxu0 %v2519
    %3164 = vmatprep.subr.bf16.mxu0 %v2528
    %3165 = vmatpush1.bf16.msra.mxu0 %v2527
    %3166 = vmatprep.subr.bf16.mxu0 %v2536
    %3167 = vmatpush1.bf16.msra.mxu0 %v2535
    %3168 = vmatprep.subr.bf16.mxu0 %v2544
    %3169 = vmatpush1.bf16.msra.mxu0 %v2543
    %3170 = vmatprep.subr.bf16.mxu0 %v2552
    %3171 = vmatpush1.bf16.msra.mxu0 %v2551
    %3172 = vmatprep.subr.bf16.mxu0 %v2560
    %3173 = vmatpush1.bf16.msra.mxu0 %v2559
    %3174 = vmatprep.subr.bf16.mxu0 %v2568
    %3175 = vmatpush1.bf16.msra.mxu0 %v2567
    %3176 = vmatprep.subr.bf16.mxu0 %v2576
    %3177 = vmatpush1.bf16.msra.mxu0 %v2575
    %3178 = vmatprep.subr.bf16.mxu0 %v2584
    %3179 = vmatpush1.bf16.msra.mxu0 %v2583
    %3180 = vmatprep.subr.bf16.mxu0 %v2592
    %3181 = vmatpush1.bf16.msra.mxu0 %v2591
    %3182 = vmatprep.mubr.bf16.mxu0 %v1312
    %3183 = vmatmul.mubr.bf16.gmra.mrb[0].mxu0 %v1311
    %v3184 = vpop.f32.mrb[0].mxu0
    %v3185 = vadd.f32 %v3142, %v3184
    %v3186 = vpop.f32.mrb[0].mxu0
    %v3187 = vadd.f32 %v3144, %v3186
    %v3188 = vpop.f32.mrb[0].mxu0
    %v3189 = vadd.f32 %v3146, %v3188
    %v3190 = vpop.f32.mrb[0].mxu0
    %v3191 = vadd.f32 %v3148, %v3190
    %3192 = vdwg.mxu0
    %v3193 = vmul.f32 %v2927, %v478
    %v3194 = vmul.f32 %v2929, %v478
    %v3195 = vmul.f32 %v3013, %v478
    %v3196 = vmul.f32 %v3015, %v478
    %v3197 = vmul.f32 %v3099, %v478
    %v3198 = vmul.f32 %v3101, %v478
    %v3199 = vmul.f32 %v3185, %v478
    %v3200 = vmul.f32 %v3187, %v478
    %v3201 = vmul.f32 %v2931, %v483
    %v3202 = vmul.f32 %v2933, %v483
    %v3203 = vmul.f32 %v3017, %v483
    %v3204 = vmul.f32 %v3019, %v483
    %v3205 = vmul.f32 %v3103, %v483
    %v3206 = vmul.f32 %v3105, %v483
    %v3207 = vmul.f32 %v3189, %v483
    %v3208 = vmul.f32 %v3191, %v483
    %v3209 = vadd.f32 %v3193, %v3201
    %v3210 = vrot.slane %v3209, 4
    %v3211 = vadd.f32 %v3209, %v3210
    %v3212 = vrot.slane %v3211, 2
    %v3213 = vadd.f32 %v3211, %v3212
    %v3214 = vrot.slane %v3213, 1
    %v3215 = vadd.f32 %v3213, %v3214
    %v3216 = vadd.f32 %v3194, %v3202
    %v3217 = vrot.slane %v3216, 4
    %v3218 = vadd.f32 %v3216, %v3217
    %v3219 = vrot.slane %v3218, 2
    %v3220 = vadd.f32 %v3218, %v3219
    %v3221 = vrot.slane %v3220, 1
    %v3222 = vadd.f32 %v3220, %v3221
    %v3223 = vadd.f32 %v3195, %v3203
    %v3224 = vrot.slane %v3223, 4
    %v3225 = vadd.f32 %v3223, %v3224
    %v3226 = vrot.slane %v3225, 2
    %v3227 = vadd.f32 %v3225, %v3226
    %v3228 = vrot.slane %v3227, 1
    %v3229 = vadd.f32 %v3227, %v3228
    %v3230 = vadd.f32 %v3196, %v3204
    %v3231 = vrot.slane %v3230, 4
    %v3232 = vadd.f32 %v3230, %v3231
    %v3233 = vrot.slane %v3232, 2
    %v3234 = vadd.f32 %v3232, %v3233
    %v3235 = vrot.slane %v3234, 1
    %v3236 = vadd.f32 %v3234, %v3235
    %v3237 = vadd.f32 %v3197, %v3205
    %v3238 = vrot.slane %v3237, 4
    %v3239 = vadd.f32 %v3237, %v3238
    %v3240 = vrot.slane %v3239, 2
    %v3241 = vadd.f32 %v3239, %v3240
    %v3242 = vrot.slane %v3241, 1
    %v3243 = vadd.f32 %v3241, %v3242
    %v3244 = vadd.f32 %v3198, %v3206
    %v3245 = vrot.slane %v3244, 4
    %v3246 = vadd.f32 %v3244, %v3245
    %v3247 = vrot.slane %v3246, 2
    %v3248 = vadd.f32 %v3246, %v3247
    %v3249 = vrot.slane %v3248, 1
    %v3250 = vadd.f32 %v3248, %v3249
    %v3251 = vadd.f32 %v3199, %v3207
    %v3252 = vrot.slane %v3251, 4
    %v3253 = vadd.f32 %v3251, %v3252
    %v3254 = vrot.slane %v3253, 2
    %v3255 = vadd.f32 %v3253, %v3254
    %v3256 = vrot.slane %v3255, 1
    %v3257 = vadd.f32 %v3255, %v3256
    %v3258 = vadd.f32 %v3200, %v3208
    %v3259 = vrot.slane %v3258, 4
    %v3260 = vadd.f32 %v3258, %v3259
    %v3261 = vrot.slane %v3260, 2
    %v3262 = vadd.f32 %v3260, %v3261
    %v3263 = vrot.slane %v3262, 1
    %v3264 = vadd.f32 %v3262, %v3263
    %v3265 = vmul.f32 %v3215, 0.5
    %v3266 = vmul.f32 %v3222, 0.5
    %v3267 = vmul.f32 %v3229, 0.5
    %v3268 = vmul.f32 %v3236, 0.5
    %v3269 = vmul.f32 %v3243, 0.5
    %v3270 = vmul.f32 %v3250, 0.5
    %v3271 = vmul.f32 %v3257, 0.5
    %v3272 = vmul.f32 %v3264, 0.5
    %v3273 = vmul.f32 %v3193, %v2927
    %v3274 = vmul.f32 %v3194, %v2929
    %v3275 = vmul.f32 %v3195, %v3013
    %v3276 = vmul.f32 %v3196, %v3015
    %v3277 = vmul.f32 %v3197, %v3099
    %v3278 = vmul.f32 %v3198, %v3101
    %v3279 = vmul.f32 %v3199, %v3185
    %v3280 = vmul.f32 %v3200, %v3187
    %v3281 = vmul.f32 %v3201, %v2931
    %v3282 = vmul.f32 %v3202, %v2933
    %v3283 = vmul.f32 %v3203, %v3017
    %v3284 = vmul.f32 %v3204, %v3019
    %v3285 = vmul.f32 %v3205, %v3103
    %v3286 = vmul.f32 %v3206, %v3105
    %v3287 = vmul.f32 %v3207, %v3189
    %v3288 = vmul.f32 %v3208, %v3191
    %v3289 = vadd.f32 %v3273, %v3281
    %v3290 = vrot.slane %v3289, 4
    %v3291 = vadd.f32 %v3289, %v3290
    %v3292 = vrot.slane %v3291, 2
    %v3293 = vadd.f32 %v3291, %v3292
    %v3294 = vrot.slane %v3293, 1
    %v3295 = vadd.f32 %v3293, %v3294
    %v3296 = vadd.f32 %v3274, %v3282
    %v3297 = vrot.slane %v3296, 4
    %v3298 = vadd.f32 %v3296, %v3297
    %v3299 = vrot.slane %v3298, 2
    %v3300 = vadd.f32 %v3298, %v3299
    %v3301 = vrot.slane %v3300, 1
    %v3302 = vadd.f32 %v3300, %v3301
    %v3303 = vadd.f32 %v3275, %v3283
    %v3304 = vrot.slane %v3303, 4
    %v3305 = vadd.f32 %v3303, %v3304
    %v3306 = vrot.slane %v3305, 2
    %v3307 = vadd.f32 %v3305, %v3306
    %v3308 = vrot.slane %v3307, 1
    %v3309 = vadd.f32 %v3307, %v3308
    %v3310 = vadd.f32 %v3276, %v3284
    %v3311 = vrot.slane %v3310, 4
    %v3312 = vadd.f32 %v3310, %v3311
    %v3313 = vrot.slane %v3312, 2
    %v3314 = vadd.f32 %v3312, %v3313
    %v3315 = vrot.slane %v3314, 1
    %v3316 = vadd.f32 %v3314, %v3315
    %v3317 = vadd.f32 %v3277, %v3285
    %v3318 = vrot.slane %v3317, 4
    %v3319 = vadd.f32 %v3317, %v3318
    %v3320 = vrot.slane %v3319, 2
    %v3321 = vadd.f32 %v3319, %v3320
    %v3322 = vrot.slane %v3321, 1
    %v3323 = vadd.f32 %v3321, %v3322
    %v3324 = vadd.f32 %v3278, %v3286
    %v3325 = vrot.slane %v3324, 4
    %v3326 = vadd.f32 %v3324, %v3325
    %v3327 = vrot.slane %v3326, 2
    %v3328 = vadd.f32 %v3326, %v3327
    %v3329 = vrot.slane %v3328, 1
    %v3330 = vadd.f32 %v3328, %v3329
    %v3331 = vadd.f32 %v3279, %v3287
    %v3332 = vrot.slane %v3331, 4
    %v3333 = vadd.f32 %v3331, %v3332
    %v3334 = vrot.slane %v3333, 2
    %v3335 = vadd.f32 %v3333, %v3334
    %v3336 = vrot.slane %v3335, 1
    %v3337 = vadd.f32 %v3335, %v3336
    %v3338 = vadd.f32 %v3280, %v3288
    %v3339 = vrot.slane %v3338, 4
    %v3340 = vadd.f32 %v3338, %v3339
    %v3341 = vrot.slane %v3340, 2
    %v3342 = vadd.f32 %v3340, %v3341
    %v3343 = vrot.slane %v3342, 1
    %v3344 = vadd.f32 %v3342, %v3343
    %v3345 = vmul.f32 %v3295, 0.5
    %v3346 = vmul.f32 %v3302, 0.5
    %v3347 = vmul.f32 %v3309, 0.5
    %v3348 = vmul.f32 %v3316, 0.5
    %v3349 = vmul.f32 %v3323, 0.5
    %v3350 = vmul.f32 %v3330, 0.5
    %v3351 = vmul.f32 %v3337, 0.5
    %v3352 = vmul.f32 %v3344, 0.5
    %v3353 = vmul.f32 %v3265, %v3265
    %v3354 = vmul.f32 %v3266, %v3266
    %v3355 = vmul.f32 %v3267, %v3267
    %v3356 = vmul.f32 %v3268, %v3268
    %v3357 = vmul.f32 %v3269, %v3269
    %v3358 = vmul.f32 %v3270, %v3270
    %v3359 = vmul.f32 %v3271, %v3271
    %v3360 = vmul.f32 %v3272, %v3272
    %v3361 = vsub.f32 %v3345, %v3353
    %v3362 = vsub.f32 %v3346, %v3354
    %v3363 = vsub.f32 %v3347, %v3355
    %v3364 = vsub.f32 %v3348, %v3356
    %v3365 = vsub.f32 %v3349, %v3357
    %v3366 = vsub.f32 %v3350, %v3358
    %v3367 = vsub.f32 %v3351, %v3359
    %v3368 = vsub.f32 %v3352, %v3360
    %v3369 = vld [vmem:[#allocation16] sm:$0xff]
    %v3370 = vadd.f32 %v3361, 0.8
    %v3371 = vadd.f32 %v3362, 0.8
    %v3372 = vadd.f32 %v3363, 0.8
    %v3373 = vadd.f32 %v3364, 0.8
    %v3374 = vadd.f32 %v3365, 0.8
    %v3375 = vadd.f32 %v3366, 0.8
    %v3376 = vadd.f32 %v3367, 0.8
    %v3377 = vadd.f32 %v3368, 0.8
    %v3378 = vrsqrt.pop %v3370
    %v3379 = vrsqrt.pop %v3371
    %v3380 = vrsqrt.pop %v3372
    %v3381 = vrsqrt.pop %v3373
    %v3382 = vrsqrt.pop %v3374
    %v3383 = vrsqrt.pop %v3375
    %v3384 = vrsqrt.pop %v3376
    %v3385 = vrsqrt.pop %v3377
    %v3394 = vcombine.low %v3378, %v3379
    %v3395 = vcombine.low %v3380, %v3381
    %v3396 = vcombine.low %v3382, %v3383
    %v3397 = vcombine.low %v3384, %v3385
    %v3399 = vunpack.c.l.s4 1966171168
    %v3400 = vunpack.c.0.s8 %v3399
    %v3401 = vlaneseq
    %v3402 = vshrl.u32 %v3401, 7
    %v3403 = vsub.s32 %v3400, %v3402
    %v3404 = vrot.slane %v3394, %v3403
    %v3406 = vunpack.c.l.s4 1966171168
    %v3407 = vunpack.c.0.s8 %v3406
    %v3408 = vlaneseq
    %v3409 = vshrl.u32 %v3408, 7
    %v3410 = vsub.s32 %v3407, %v3409
    %v3411 = vrot.slane %v3395, %v3410
    %v3413 = vunpack.c.l.s4 1966171168
    %v3414 = vunpack.c.0.s8 %v3413
    %v3415 = vlaneseq
    %v3416 = vshrl.u32 %v3415, 7
    %v3417 = vsub.s32 %v3414, %v3416
    %v3418 = vrot.slane %v3396, %v3417
    %v3420 = vunpack.c.l.s4 1966171168
    %v3421 = vunpack.c.0.s8 %v3420
    %v3422 = vlaneseq
    %v3423 = vshrl.u32 %v3422, 7
    %v3424 = vsub.s32 %v3421, %v3423
    %v3425 = vrot.slane %v3397, %v3424
    %v3426 = vcombine.low %v3404, %v3411
    %v3427 = vcombine.low %v3418, %v3425
    %v3429 = vunpack.c.l.s4 1966171168
    %v3430 = vunpack.c.0.s8 %v3429
    %v3431 = vlaneseq
    %v3432 = vshrl.u32 %v3431, 7
    %v3433 = vsub.s32 %v3430, %v3432
    %v3434 = vrot.slane %v3426, %v3433
    %v3436 = vunpack.c.l.s4 1966171168
    %v3437 = vunpack.c.0.s8 %v3436
    %v3438 = vlaneseq
    %v3439 = vshrl.u32 %v3438, 7
    %v3440 = vsub.s32 %v3437, %v3439
    %v3441 = vrot.slane %v3427, %v3440
    %v3442 = vcombine.low %v3434, %v3441
    %v3444 = vmul.f32 %v3369, %v3442
    %v3445 = vld [vmem:[#allocation18] sm:$0xff]
    %v3447 = vlaneseq
    %v3448 = vshrl.u32 %v3447, 7
    %v3449 = vsub.s32 0, %v3448
    %v3450 = vrot.slane %v3444, %v3449
    %v3451 = vlaneseq
    %v3452 = vshrl.u32 %v3451, 7
    %v3453 = vsub.s32 1, %v3452
    %v3454 = vrot.slane %v3444, %v3453
    %v3455 = vlaneseq
    %v3456 = vshrl.u32 %v3455, 7
    %v3457 = vsub.s32 2, %v3456
    %v3458 = vrot.slane %v3444, %v3457
    %v3459 = vlaneseq
    %v3460 = vshrl.u32 %v3459, 7
    %v3461 = vsub.s32 3, %v3460
    %v3462 = vrot.slane %v3444, %v3461
    %v3463 = vlaneseq
    %v3464 = vshrl.u32 %v3463, 7
    %v3465 = vsub.s32 4, %v3464
    %v3466 = vrot.slane %v3444, %v3465
    %v3467 = vlaneseq
    %v3468 = vshrl.u32 %v3467, 7
    %v3469 = vsub.s32 5, %v3468
    %v3470 = vrot.slane %v3444, %v3469
    %v3471 = vlaneseq
    %v3472 = vshrl.u32 %v3471, 7
    %v3473 = vsub.s32 6, %v3472
    %v3474 = vrot.slane %v3444, %v3473
    %v3475 = vlaneseq
    %v3476 = vshrl.u32 %v3475, 7
    %v3477 = vsub.s32 7, %v3476
    %v3478 = vrot.slane %v3444, %v3477
    %v3487 = vmul.f32 %v3265, %v3450
    %v3488 = vmul.f32 %v3266, %v3454
    %v3489 = vmul.f32 %v3267, %v3458
    %v3490 = vmul.f32 %v3268, %v3462
    %v3491 = vmul.f32 %v3269, %v3466
    %v3492 = vmul.f32 %v3270, %v3470
    %v3493 = vmul.f32 %v3271, %v3474
    %v3494 = vmul.f32 %v3272, %v3478
    %v3503 = vcombine.low %v3487, %v3488
    %v3504 = vcombine.low %v3489, %v3490
    %v3505 = vcombine.low %v3491, %v3492
    %v3506 = vcombine.low %v3493, %v3494
    %v3508 = vunpack.c.l.s4 1966171168
    %v3509 = vunpack.c.0.s8 %v3508
    %v3510 = vlaneseq
    %v3511 = vshrl.u32 %v3510, 7
    %v3512 = vsub.s32 %v3509, %v3511
    %v3513 = vrot.slane %v3503, %v3512
    %v3515 = vunpack.c.l.s4 1966171168
    %v3516 = vunpack.c.0.s8 %v3515
    %v3517 = vlaneseq
    %v3518 = vshrl.u32 %v3517, 7
    %v3519 = vsub.s32 %v3516, %v3518
    %v3520 = vrot.slane %v3504, %v3519
    %v3522 = vunpack.c.l.s4 1966171168
    %v3523 = vunpack.c.0.s8 %v3522
    %v3524 = vlaneseq
    %v3525 = vshrl.u32 %v3524, 7
    %v3526 = vsub.s32 %v3523, %v3525
    %v3527 = vrot.slane %v3505, %v3526
    %v3529 = vunpack.c.l.s4 1966171168
    %v3530 = vunpack.c.0.s8 %v3529
    %v3531 = vlaneseq
    %v3532 = vshrl.u32 %v3531, 7
    %v3533 = vsub.s32 %v3530, %v3532
    %v3534 = vrot.slane %v3506, %v3533
    %v3535 = vcombine.low %v3513, %v3520
    %v3536 = vcombine.low %v3527, %v3534
    %v3538 = vunpack.c.l.s4 1966171168
    %v3539 = vunpack.c.0.s8 %v3538
    %v3540 = vlaneseq
    %v3541 = vshrl.u32 %v3540, 7
    %v3542 = vsub.s32 %v3539, %v3541
    %v3543 = vrot.slane %v3535, %v3542
    %v3545 = vunpack.c.l.s4 1966171168
    %v3546 = vunpack.c.0.s8 %v3545
    %v3547 = vlaneseq
    %v3548 = vshrl.u32 %v3547, 7
    %v3549 = vsub.s32 %v3546, %v3548
    %v3550 = vrot.slane %v3536, %v3549
    %v3551 = vcombine.low %v3543, %v3550
    %v3553 = vsub.f32 %v3445, %v3551
    %v3554 = vmul.f32 %v2927, %v3450
    %v3555 = vmul.f32 %v2929, %v3454
    %v3556 = vmul.f32 %v3013, %v3458
    %v3557 = vmul.f32 %v3015, %v3462
    %v3558 = vmul.f32 %v3099, %v3466
    %v3559 = vmul.f32 %v3101, %v3470
    %v3560 = vmul.f32 %v3185, %v3474
    %v3561 = vmul.f32 %v3187, %v3478
    %v3562 = vmul.f32 %v2931, %v3450
    %v3563 = vmul.f32 %v2933, %v3454
    %v3564 = vmul.f32 %v3017, %v3458
    %v3565 = vmul.f32 %v3019, %v3462
    %v3566 = vmul.f32 %v3103, %v3466
    %v3567 = vmul.f32 %v3105, %v3470
    %v3568 = vmul.f32 %v3189, %v3474
    %v3569 = vmul.f32 %v3191, %v3478
    %v3571 = vlaneseq
    %v3572 = vshrl.u32 %v3571, 7
    %v3573 = vsub.s32 0, %v3572
    %v3574 = vrot.slane %v3553, %v3573
    %v3575 = vlaneseq
    %v3576 = vshrl.u32 %v3575, 7
    %v3577 = vsub.s32 1, %v3576
    %v3578 = vrot.slane %v3553, %v3577
    %v3579 = vlaneseq
    %v3580 = vshrl.u32 %v3579, 7
    %v3581 = vsub.s32 2, %v3580
    %v3582 = vrot.slane %v3553, %v3581
    %v3583 = vlaneseq
    %v3584 = vshrl.u32 %v3583, 7
    %v3585 = vsub.s32 3, %v3584
    %v3586 = vrot.slane %v3553, %v3585
    %v3587 = vlaneseq
    %v3588 = vshrl.u32 %v3587, 7
    %v3589 = vsub.s32 4, %v3588
    %v3590 = vrot.slane %v3553, %v3589
    %v3591 = vlaneseq
    %v3592 = vshrl.u32 %v3591, 7
    %v3593 = vsub.s32 5, %v3592
    %v3594 = vrot.slane %v3553, %v3593
    %v3595 = vlaneseq
    %v3596 = vshrl.u32 %v3595, 7
    %v3597 = vsub.s32 6, %v3596
    %v3598 = vrot.slane %v3553, %v3597
    %v3599 = vlaneseq
    %v3600 = vshrl.u32 %v3599, 7
    %v3601 = vsub.s32 7, %v3600
    %v3602 = vrot.slane %v3553, %v3601
    %v3611 = vadd.f32 %v3554, %v3574
    %v3612 = vadd.f32 %v3555, %v3578
    %v3613 = vadd.f32 %v3556, %v3582
    %v3614 = vadd.f32 %v3557, %v3586
    %v3615 = vadd.f32 %v3558, %v3590
    %v3616 = vadd.f32 %v3559, %v3594
    %v3617 = vadd.f32 %v3560, %v3598
    %v3618 = vadd.f32 %v3561, %v3602
    %v3619 = vadd.f32 %v3562, %v3574
    %v3620 = vadd.f32 %v3563, %v3578
    %v3621 = vadd.f32 %v3564, %v3582
    %v3622 = vadd.f32 %v3565, %v3586
    %v3623 = vadd.f32 %v3566, %v3590
    %v3624 = vadd.f32 %v3567, %v3594
    %v3625 = vadd.f32 %v3568, %v3598
    %v3626 = vadd.f32 %v3569, %v3602
    %v3627 = vmax.f32 %v3611, 0.0
    %v3628 = vmax.f32 %v3612, 0.0
    %v3629 = vmax.f32 %v3613, 0.0
    %v3630 = vmax.f32 %v3614, 0.0
    %v3631 = vmax.f32 %v3615, 0.0
    %v3632 = vmax.f32 %v3616, 0.0
    %v3633 = vmax.f32 %v3617, 0.0
    %v3634 = vmax.f32 %v3618, 0.0
    %v3635 = vmax.f32 %v3619, 0.0
    %v3636 = vmax.f32 %v3620, 0.0
    %v3637 = vmax.f32 %v3621, 0.0
    %v3638 = vmax.f32 %v3622, 0.0
    %v3639 = vmax.f32 %v3623, 0.0
    %v3640 = vmax.f32 %v3624, 0.0
    %v3641 = vmax.f32 %v3625, 0.0
    %v3642 = vmax.f32 %v3626, 0.0
    %v3643 = vpack.c.bf16 %v3635, %v3627
    %v3644 = vpack.c.bf16 %v3636, %v3628
    %v3645 = vpack.c.bf16 %v3637, %v3629
    %v3646 = vpack.c.bf16 %v3638, %v3630
    %v3647 = vpack.c.bf16 %v3639, %v3631
    %v3648 = vpack.c.bf16 %v3640, %v3632
    %v3649 = vpack.c.bf16 %v3641, %v3633
    %v3650 = vpack.c.bf16 %v3642, %v3634
    %v3651 = vld [vmem:[#allocation19] sm:$0xff]
    %v3652 = vld [vmem:[#allocation19 + $0x8] sm:$0xff]
    %v3653 = vld [vmem:[#allocation19 + $0x10] sm:$0xff]
    %v3654 = vld [vmem:[#allocation19 + $0x18] sm:$0xff]
    %v3655 = vld [vmem:[#allocation19 + $0x20] sm:$0xff]
    %v3656 = vld [vmem:[#allocation19 + $0x28] sm:$0xff]
    %v3657 = vld [vmem:[#allocation19 + $0x30] sm:$0xff]
    %v3658 = vld [vmem:[#allocation19 + $0x38] sm:$0xff]
    %v3659 = vld [vmem:[#allocation19 + $0x40] sm:$0xff]
    %v3660 = vld [vmem:[#allocation19 + $0x48] sm:$0xff]
    %v3661 = vld [vmem:[#allocation19 + $0x50] sm:$0xff]
    %v3662 = vld [vmem:[#allocation19 + $0x58] sm:$0xff]
    %v3663 = vld [vmem:[#allocation19 + $0x60] sm:$0xff]
    %v3664 = vld [vmem:[#allocation19 + $0x68] sm:$0xff]
    %v3665 = vld [vmem:[#allocation19 + $0x70] sm:$0xff]
    %v3666 = vld [vmem:[#allocation19 + $0x78] sm:$0xff]
    %v3667 = vld [vmem:[#allocation19 + $0x80] sm:$0xff]
    %v3668 = vld [vmem:[#allocation19 + $0x88] sm:$0xff]
    %v3669 = vld [vmem:[#allocation19 + $0x90] sm:$0xff]
    %v3670 = vld [vmem:[#allocation19 + $0x98] sm:$0xff]
    %v3671 = vld [vmem:[#allocation19 + $0xa0] sm:$0xff]
    %v3672 = vld [vmem:[#allocation19 + $0xa8] sm:$0xff]
    %v3673 = vld [vmem:[#allocation19 + $0xb0] sm:$0xff]
    %v3674 = vld [vmem:[#allocation19 + $0xb8] sm:$0xff]
    %v3675 = vld [vmem:[#allocation19 + $0xc0] sm:$0xff]
    %v3676 = vld [vmem:[#allocation19 + $0xc8] sm:$0xff]
    %v3677 = vld [vmem:[#allocation19 + $0xd0] sm:$0xff]
    %v3678 = vld [vmem:[#allocation19 + $0xd8] sm:$0xff]
    %v3679 = vld [vmem:[#allocation19 + $0xe0] sm:$0xff]
    %v3680 = vld [vmem:[#allocation19 + $0xe8] sm:$0xff]
    %v3681 = vld [vmem:[#allocation19 + $0xf0] sm:$0xff]
    %v3682 = vld [vmem:[#allocation19 + $0xf8] sm:$0xff]
    %v3683 = vld [vmem:[#allocation19 + $0x100] sm:$0xff]
    %v3684 = vld [vmem:[#allocation19 + $0x108] sm:$0xff]
    %v3685 = vld [vmem:[#allocation19 + $0x110] sm:$0xff]
    %v3686 = vld [vmem:[#allocation19 + $0x118] sm:$0xff]
    %v3687 = vld [vmem:[#allocation19 + $0x120] sm:$0xff]
    %v3688 = vld [vmem:[#allocation19 + $0x128] sm:$0xff]
    %v3689 = vld [vmem:[#allocation19 + $0x130] sm:$0xff]
    %v3690 = vld [vmem:[#allocation19 + $0x138] sm:$0xff]
    %v3691 = vld [vmem:[#allocation19 + $0x140] sm:$0xff]
    %v3692 = vld [vmem:[#allocation19 + $0x148] sm:$0xff]
    %v3693 = vld [vmem:[#allocation19 + $0x150] sm:$0xff]
    %v3694 = vld [vmem:[#allocation19 + $0x158] sm:$0xff]
    %v3695 = vld [vmem:[#allocation19 + $0x160] sm:$0xff]
    %v3696 = vld [vmem:[#allocation19 + $0x168] sm:$0xff]
    %v3697 = vld [vmem:[#allocation19 + $0x170] sm:$0xff]
    %v3698 = vld [vmem:[#allocation19 + $0x178] sm:$0xff]
    %v3699 = vld [vmem:[#allocation19 + $0x180] sm:$0xff]
    %v3700 = vld [vmem:[#allocation19 + $0x188] sm:$0xff]
    %v3701 = vld [vmem:[#allocation19 + $0x190] sm:$0xff]
    %v3702 = vld [vmem:[#allocation19 + $0x198] sm:$0xff]
    %v3703 = vld [vmem:[#allocation19 + $0x1a0] sm:$0xff]
    %v3704 = vld [vmem:[#allocation19 + $0x1a8] sm:$0xff]
    %v3705 = vld [vmem:[#allocation19 + $0x1b0] sm:$0xff]
    %v3706 = vld [vmem:[#allocation19 + $0x1b8] sm:$0xff]
    %v3707 = vld [vmem:[#allocation19 + $0x1c0] sm:$0xff]
    %v3708 = vld [vmem:[#allocation19 + $0x1c8] sm:$0xff]
    %v3709 = vld [vmem:[#allocation19 + $0x1d0] sm:$0xff]
    %v3710 = vld [vmem:[#allocation19 + $0x1d8] sm:$0xff]
    %v3711 = vld [vmem:[#allocation19 + $0x1e0] sm:$0xff]
    %v3712 = vld [vmem:[#allocation19 + $0x1e8] sm:$0xff]
    %v3713 = vld [vmem:[#allocation19 + $0x1f0] sm:$0xff]
    %v3714 = vld [vmem:[#allocation19 + $0x1f8] sm:$0xff]
    %v3715 = vld [vmem:[#allocation19 + $0x200] sm:$0xff]
    %v3716 = vld [vmem:[#allocation19 + $0x208] sm:$0xff]
    %v3717 = vld [vmem:[#allocation19 + $0x210] sm:$0xff]
    %v3718 = vld [vmem:[#allocation19 + $0x218] sm:$0xff]
    %v3719 = vld [vmem:[#allocation19 + $0x220] sm:$0xff]
    %v3720 = vld [vmem:[#allocation19 + $0x228] sm:$0xff]
    %v3721 = vld [vmem:[#allocation19 + $0x230] sm:$0xff]
    %v3722 = vld [vmem:[#allocation19 + $0x238] sm:$0xff]
    %v3723 = vld [vmem:[#allocation19 + $0x240] sm:$0xff]
    %v3724 = vld [vmem:[#allocation19 + $0x248] sm:$0xff]
    %v3725 = vld [vmem:[#allocation19 + $0x250] sm:$0xff]
    %v3726 = vld [vmem:[#allocation19 + $0x258] sm:$0xff]
    %v3727 = vld [vmem:[#allocation19 + $0x260] sm:$0xff]
    %v3728 = vld [vmem:[#allocation19 + $0x268] sm:$0xff]
    %v3729 = vld [vmem:[#allocation19 + $0x270] sm:$0xff]
    %v3730 = vld [vmem:[#allocation19 + $0x278] sm:$0xff]
    %v3731 = vld [vmem:[#allocation19 + $0x280] sm:$0xff]
    %v3732 = vld [vmem:[#allocation19 + $0x288] sm:$0xff]
    %v3733 = vld [vmem:[#allocation19 + $0x290] sm:$0xff]
    %v3734 = vld [vmem:[#allocation19 + $0x298] sm:$0xff]
    %v3735 = vld [vmem:[#allocation19 + $0x2a0] sm:$0xff]
    %v3736 = vld [vmem:[#allocation19 + $0x2a8] sm:$0xff]
    %v3737 = vld [vmem:[#allocation19 + $0x2b0] sm:$0xff]
    %v3738 = vld [vmem:[#allocation19 + $0x2b8] sm:$0xff]
    %v3739 = vld [vmem:[#allocation19 + $0x2c0] sm:$0xff]
    %v3740 = vld [vmem:[#allocation19 + $0x2c8] sm:$0xff]
    %v3741 = vld [vmem:[#allocation19 + $0x2d0] sm:$0xff]
    %v3742 = vld [vmem:[#allocation19 + $0x2d8] sm:$0xff]
    %v3743 = vld [vmem:[#allocation19 + $0x2e0] sm:$0xff]
    %v3744 = vld [vmem:[#allocation19 + $0x2e8] sm:$0xff]
    %v3745 = vld [vmem:[#allocation19 + $0x2f0] sm:$0xff]
    %v3746 = vld [vmem:[#allocation19 + $0x2f8] sm:$0xff]
    %v3747 = vld [vmem:[#allocation19 + $0x300] sm:$0xff]
    %v3748 = vld [vmem:[#allocation19 + $0x308] sm:$0xff]
    %v3749 = vld [vmem:[#allocation19 + $0x310] sm:$0xff]
    %v3750 = vld [vmem:[#allocation19 + $0x318] sm:$0xff]
    %v3751 = vld [vmem:[#allocation19 + $0x320] sm:$0xff]
    %v3752 = vld [vmem:[#allocation19 + $0x328] sm:$0xff]
    %v3753 = vld [vmem:[#allocation19 + $0x330] sm:$0xff]
    %v3754 = vld [vmem:[#allocation19 + $0x338] sm:$0xff]
    %v3755 = vld [vmem:[#allocation19 + $0x340] sm:$0xff]
    %v3756 = vld [vmem:[#allocation19 + $0x348] sm:$0xff]
    %v3757 = vld [vmem:[#allocation19 + $0x350] sm:$0xff]
    %v3758 = vld [vmem:[#allocation19 + $0x358] sm:$0xff]
    %v3759 = vld [vmem:[#allocation19 + $0x360] sm:$0xff]
    %v3760 = vld [vmem:[#allocation19 + $0x368] sm:$0xff]
    %v3761 = vld [vmem:[#allocation19 + $0x370] sm:$0xff]
    %v3762 = vld [vmem:[#allocation19 + $0x378] sm:$0xff]
    %v3763 = vld [vmem:[#allocation19 + $0x380] sm:$0xff]
    %v3764 = vld [vmem:[#allocation19 + $0x388] sm:$0xff]
    %v3765 = vld [vmem:[#allocation19 + $0x390] sm:$0xff]
    %v3766 = vld [vmem:[#allocation19 + $0x398] sm:$0xff]
    %v3767 = vld [vmem:[#allocation19 + $0x3a0] sm:$0xff]
    %v3768 = vld [vmem:[#allocation19 + $0x3a8] sm:$0xff]
    %v3769 = vld [vmem:[#allocation19 + $0x3b0] sm:$0xff]
    %v3770 = vld [vmem:[#allocation19 + $0x3b8] sm:$0xff]
    %v3771 = vld [vmem:[#allocation19 + $0x3c0] sm:$0xff]
    %v3772 = vld [vmem:[#allocation19 + $0x3c8] sm:$0xff]
    %v3773 = vld [vmem:[#allocation19 + $0x3d0] sm:$0xff]
    %v3774 = vld [vmem:[#allocation19 + $0x3d8] sm:$0xff]
    %v3775 = vld [vmem:[#allocation19 + $0x3e0] sm:$0xff]
    %v3776 = vld [vmem:[#allocation19 + $0x3e8] sm:$0xff]
    %v3777 = vld [vmem:[#allocation19 + $0x3f0] sm:$0xff]
    %v3778 = vld [vmem:[#allocation19 + $0x3f8] sm:$0xff]
    %v3779 = vld [vmem:[#allocation19 + $0x400] sm:$0xff]
    %v3780 = vld [vmem:[#allocation19 + $0x408] sm:$0xff]
    %v3781 = vld [vmem:[#allocation19 + $0x410] sm:$0xff]
    %v3782 = vld [vmem:[#allocation19 + $0x418] sm:$0xff]
    %v3783 = vld [vmem:[#allocation19 + $0x420] sm:$0xff]
    %v3784 = vld [vmem:[#allocation19 + $0x428] sm:$0xff]
    %v3785 = vld [vmem:[#allocation19 + $0x430] sm:$0xff]
    %v3786 = vld [vmem:[#allocation19 + $0x438] sm:$0xff]
    %v3787 = vld [vmem:[#allocation19 + $0x440] sm:$0xff]
    %v3788 = vld [vmem:[#allocation19 + $0x448] sm:$0xff]
    %v3789 = vld [vmem:[#allocation19 + $0x450] sm:$0xff]
    %v3790 = vld [vmem:[#allocation19 + $0x458] sm:$0xff]
    %v3791 = vld [vmem:[#allocation19 + $0x460] sm:$0xff]
    %v3792 = vld [vmem:[#allocation19 + $0x468] sm:$0xff]
    %v3793 = vld [vmem:[#allocation19 + $0x470] sm:$0xff]
    %v3794 = vld [vmem:[#allocation19 + $0x478] sm:$0xff]
    %v3795 = vld [vmem:[#allocation19 + $0x480] sm:$0xff]
    %v3796 = vld [vmem:[#allocation19 + $0x488] sm:$0xff]
    %v3797 = vld [vmem:[#allocation19 + $0x490] sm:$0xff]
    %v3798 = vld [vmem:[#allocation19 + $0x498] sm:$0xff]
    %v3799 = vld [vmem:[#allocation19 + $0x4a0] sm:$0xff]
    %v3800 = vld [vmem:[#allocation19 + $0x4a8] sm:$0xff]
    %v3801 = vld [vmem:[#allocation19 + $0x4b0] sm:$0xff]
    %v3802 = vld [vmem:[#allocation19 + $0x4b8] sm:$0xff]
    %v3803 = vld [vmem:[#allocation19 + $0x4c0] sm:$0xff]
    %v3804 = vld [vmem:[#allocation19 + $0x4c8] sm:$0xff]
    %v3805 = vld [vmem:[#allocation19 + $0x4d0] sm:$0xff]
    %v3806 = vld [vmem:[#allocation19 + $0x4d8] sm:$0xff]
    %v3807 = vld [vmem:[#allocation19 + $0x4e0] sm:$0xff]
    %v3808 = vld [vmem:[#allocation19 + $0x4e8] sm:$0xff]
    %v3809 = vld [vmem:[#allocation19 + $0x4f0] sm:$0xff]
    %v3810 = vld [vmem:[#allocation19 + $0x4f8] sm:$0xff]
    %v3811 = vld [vmem:[#allocation19 + $0x500] sm:$0xff]
    %v3812 = vld [vmem:[#allocation19 + $0x508] sm:$0xff]
    %v3813 = vld [vmem:[#allocation19 + $0x510] sm:$0xff]
    %v3814 = vld [vmem:[#allocation19 + $0x518] sm:$0xff]
    %v3815 = vld [vmem:[#allocation19 + $0x520] sm:$0xff]
    %v3816 = vld [vmem:[#allocation19 + $0x528] sm:$0xff]
    %v3817 = vld [vmem:[#allocation19 + $0x530] sm:$0xff]
    %v3818 = vld [vmem:[#allocation19 + $0x538] sm:$0xff]
    %v3819 = vld [vmem:[#allocation19 + $0x540] sm:$0xff]
    %v3820 = vld [vmem:[#allocation19 + $0x548] sm:$0xff]
    %v3821 = vld [vmem:[#allocation19 + $0x550] sm:$0xff]
    %v3822 = vld [vmem:[#allocation19 + $0x558] sm:$0xff]
    %v3823 = vld [vmem:[#allocation19 + $0x560] sm:$0xff]
    %v3824 = vld [vmem:[#allocation19 + $0x568] sm:$0xff]
    %v3825 = vld [vmem:[#allocation19 + $0x570] sm:$0xff]
    %v3826 = vld [vmem:[#allocation19 + $0x578] sm:$0xff]
    %v3827 = vld [vmem:[#allocation19 + $0x580] sm:$0xff]
    %v3828 = vld [vmem:[#allocation19 + $0x588] sm:$0xff]
    %v3829 = vld [vmem:[#allocation19 + $0x590] sm:$0xff]
    %v3830 = vld [vmem:[#allocation19 + $0x598] sm:$0xff]
    %v3831 = vld [vmem:[#allocation19 + $0x5a0] sm:$0xff]
    %v3832 = vld [vmem:[#allocation19 + $0x5a8] sm:$0xff]
    %v3833 = vld [vmem:[#allocation19 + $0x5b0] sm:$0xff]
    %v3834 = vld [vmem:[#allocation19 + $0x5b8] sm:$0xff]
    %v3835 = vld [vmem:[#allocation19 + $0x5c0] sm:$0xff]
    %v3836 = vld [vmem:[#allocation19 + $0x5c8] sm:$0xff]
    %v3837 = vld [vmem:[#allocation19 + $0x5d0] sm:$0xff]
    %v3838 = vld [vmem:[#allocation19 + $0x5d8] sm:$0xff]
    %v3839 = vld [vmem:[#allocation19 + $0x5e0] sm:$0xff]
    %v3840 = vld [vmem:[#allocation19 + $0x5e8] sm:$0xff]
    %v3841 = vld [vmem:[#allocation19 + $0x5f0] sm:$0xff]
    %v3842 = vld [vmem:[#allocation19 + $0x5f8] sm:$0xff]
    %v3843 = vld [vmem:[#allocation19 + $0x600] sm:$0xff]
    %v3844 = vld [vmem:[#allocation19 + $0x608] sm:$0xff]
    %v3845 = vld [vmem:[#allocation19 + $0x610] sm:$0xff]
    %v3846 = vld [vmem:[#allocation19 + $0x618] sm:$0xff]
    %v3847 = vld [vmem:[#allocation19 + $0x620] sm:$0xff]
    %v3848 = vld [vmem:[#allocation19 + $0x628] sm:$0xff]
    %v3849 = vld [vmem:[#allocation19 + $0x630] sm:$0xff]
    %v3850 = vld [vmem:[#allocation19 + $0x638] sm:$0xff]
    %v3851 = vld [vmem:[#allocation19 + $0x640] sm:$0xff]
    %v3852 = vld [vmem:[#allocation19 + $0x648] sm:$0xff]
    %v3853 = vld [vmem:[#allocation19 + $0x650] sm:$0xff]
    %v3854 = vld [vmem:[#allocation19 + $0x658] sm:$0xff]
    %v3855 = vld [vmem:[#allocation19 + $0x660] sm:$0xff]
    %v3856 = vld [vmem:[#allocation19 + $0x668] sm:$0xff]
    %v3857 = vld [vmem:[#allocation19 + $0x670] sm:$0xff]
    %v3858 = vld [vmem:[#allocation19 + $0x678] sm:$0xff]
    %v3859 = vld [vmem:[#allocation19 + $0x680] sm:$0xff]
    %v3860 = vld [vmem:[#allocation19 + $0x688] sm:$0xff]
    %v3861 = vld [vmem:[#allocation19 + $0x690] sm:$0xff]
    %v3862 = vld [vmem:[#allocation19 + $0x698] sm:$0xff]
    %v3863 = vld [vmem:[#allocation19 + $0x6a0] sm:$0xff]
    %v3864 = vld [vmem:[#allocation19 + $0x6a8] sm:$0xff]
    %v3865 = vld [vmem:[#allocation19 + $0x6b0] sm:$0xff]
    %v3866 = vld [vmem:[#allocation19 + $0x6b8] sm:$0xff]
    %v3867 = vld [vmem:[#allocation19 + $0x6c0] sm:$0xff]
    %v3868 = vld [vmem:[#allocation19 + $0x6c8] sm:$0xff]
    %v3869 = vld [vmem:[#allocation19 + $0x6d0] sm:$0xff]
    %v3870 = vld [vmem:[#allocation19 + $0x6d8] sm:$0xff]
    %v3871 = vld [vmem:[#allocation19 + $0x6e0] sm:$0xff]
    %v3872 = vld [vmem:[#allocation19 + $0x6e8] sm:$0xff]
    %v3873 = vld [vmem:[#allocation19 + $0x6f0] sm:$0xff]
    %v3874 = vld [vmem:[#allocation19 + $0x6f8] sm:$0xff]
    %v3875 = vld [vmem:[#allocation19 + $0x700] sm:$0xff]
    %v3876 = vld [vmem:[#allocation19 + $0x708] sm:$0xff]
    %v3877 = vld [vmem:[#allocation19 + $0x710] sm:$0xff]
    %v3878 = vld [vmem:[#allocation19 + $0x718] sm:$0xff]
    %v3879 = vld [vmem:[#allocation19 + $0x720] sm:$0xff]
    %v3880 = vld [vmem:[#allocation19 + $0x728] sm:$0xff]
    %v3881 = vld [vmem:[#allocation19 + $0x730] sm:$0xff]
    %v3882 = vld [vmem:[#allocation19 + $0x738] sm:$0xff]
    %v3883 = vld [vmem:[#allocation19 + $0x740] sm:$0xff]
    %v3884 = vld [vmem:[#allocation19 + $0x748] sm:$0xff]
    %v3885 = vld [vmem:[#allocation19 + $0x750] sm:$0xff]
    %v3886 = vld [vmem:[#allocation19 + $0x758] sm:$0xff]
    %v3887 = vld [vmem:[#allocation19 + $0x760] sm:$0xff]
    %v3888 = vld [vmem:[#allocation19 + $0x768] sm:$0xff]
    %v3889 = vld [vmem:[#allocation19 + $0x770] sm:$0xff]
    %v3890 = vld [vmem:[#allocation19 + $0x778] sm:$0xff]
    %v3891 = vld [vmem:[#allocation19 + $0x780] sm:$0xff]
    %v3892 = vld [vmem:[#allocation19 + $0x788] sm:$0xff]
    %v3893 = vld [vmem:[#allocation19 + $0x790] sm:$0xff]
    %v3894 = vld [vmem:[#allocation19 + $0x798] sm:$0xff]
    %v3895 = vld [vmem:[#allocation19 + $0x7a0] sm:$0xff]
    %v3896 = vld [vmem:[#allocation19 + $0x7a8] sm:$0xff]
    %v3897 = vld [vmem:[#allocation19 + $0x7b0] sm:$0xff]
    %v3898 = vld [vmem:[#allocation19 + $0x7b8] sm:$0xff]
    %v3899 = vld [vmem:[#allocation19 + $0x7c0] sm:$0xff]
    %v3900 = vld [vmem:[#allocation19 + $0x7c8] sm:$0xff]
    %v3901 = vld [vmem:[#allocation19 + $0x7d0] sm:$0xff]
    %v3902 = vld [vmem:[#allocation19 + $0x7d8] sm:$0xff]
    %v3903 = vld [vmem:[#allocation19 + $0x7e0] sm:$0xff]
    %v3904 = vld [vmem:[#allocation19 + $0x7e8] sm:$0xff]
    %v3905 = vld [vmem:[#allocation19 + $0x7f0] sm:$0xff]
    %v3906 = vld [vmem:[#allocation19 + $0x7f8] sm:$0xff]
    %v3907 = vld [vmem:[#allocation19 + $0x800] sm:$0xff]
    %v3908 = vld [vmem:[#allocation19 + $0x808] sm:$0xff]
    %v3909 = vld [vmem:[#allocation19 + $0x810] sm:$0xff]
    %v3910 = vld [vmem:[#allocation19 + $0x818] sm:$0xff]
    %v3911 = vld [vmem:[#allocation19 + $0x820] sm:$0xff]
    %v3912 = vld [vmem:[#allocation19 + $0x828] sm:$0xff]
    %v3913 = vld [vmem:[#allocation19 + $0x830] sm:$0xff]
    %v3914 = vld [vmem:[#allocation19 + $0x838] sm:$0xff]
    %v3915 = vld [vmem:[#allocation19 + $0x840] sm:$0xff]
    %v3916 = vld [vmem:[#allocation19 + $0x848] sm:$0xff]
    %v3917 = vld [vmem:[#allocation19 + $0x850] sm:$0xff]
    %v3918 = vld [vmem:[#allocation19 + $0x858] sm:$0xff]
    %v3919 = vld [vmem:[#allocation19 + $0x860] sm:$0xff]
    %v3920 = vld [vmem:[#allocation19 + $0x868] sm:$0xff]
    %v3921 = vld [vmem:[#allocation19 + $0x870] sm:$0xff]
    %v3922 = vld [vmem:[#allocation19 + $0x878] sm:$0xff]
    %v3923 = vld [vmem:[#allocation19 + $0x880] sm:$0xff]
    %v3924 = vld [vmem:[#allocation19 + $0x888] sm:$0xff]
    %v3925 = vld [vmem:[#allocation19 + $0x890] sm:$0xff]
    %v3926 = vld [vmem:[#allocation19 + $0x898] sm:$0xff]
    %v3927 = vld [vmem:[#allocation19 + $0x8a0] sm:$0xff]
    %v3928 = vld [vmem:[#allocation19 + $0x8a8] sm:$0xff]
    %v3929 = vld [vmem:[#allocation19 + $0x8b0] sm:$0xff]
    %v3930 = vld [vmem:[#allocation19 + $0x8b8] sm:$0xff]
    %v3931 = vld [vmem:[#allocation19 + $0x8c0] sm:$0xff]
    %v3932 = vld [vmem:[#allocation19 + $0x8c8] sm:$0xff]
    %v3933 = vld [vmem:[#allocation19 + $0x8d0] sm:$0xff]
    %v3934 = vld [vmem:[#allocation19 + $0x8d8] sm:$0xff]
    %v3935 = vld [vmem:[#allocation19 + $0x8e0] sm:$0xff]
    %v3936 = vld [vmem:[#allocation19 + $0x8e8] sm:$0xff]
    %v3937 = vld [vmem:[#allocation19 + $0x8f0] sm:$0xff]
    %v3938 = vld [vmem:[#allocation19 + $0x8f8] sm:$0xff]
    %v3939 = vld [vmem:[#allocation19 + $0x900] sm:$0xff]
    %v3940 = vld [vmem:[#allocation19 + $0x908] sm:$0xff]
    %v3941 = vld [vmem:[#allocation19 + $0x910] sm:$0xff]
    %v3942 = vld [vmem:[#allocation19 + $0x918] sm:$0xff]
    %v3943 = vld [vmem:[#allocation19 + $0x920] sm:$0xff]
    %v3944 = vld [vmem:[#allocation19 + $0x928] sm:$0xff]
    %v3945 = vld [vmem:[#allocation19 + $0x930] sm:$0xff]
    %v3946 = vld [vmem:[#allocation19 + $0x938] sm:$0xff]
    %v3947 = vld [vmem:[#allocation19 + $0x940] sm:$0xff]
    %v3948 = vld [vmem:[#allocation19 + $0x948] sm:$0xff]
    %v3949 = vld [vmem:[#allocation19 + $0x950] sm:$0xff]
    %v3950 = vld [vmem:[#allocation19 + $0x958] sm:$0xff]
    %v3951 = vld [vmem:[#allocation19 + $0x960] sm:$0xff]
    %v3952 = vld [vmem:[#allocation19 + $0x968] sm:$0xff]
    %v3953 = vld [vmem:[#allocation19 + $0x970] sm:$0xff]
    %v3954 = vld [vmem:[#allocation19 + $0x978] sm:$0xff]
    %v3955 = vld [vmem:[#allocation19 + $0x980] sm:$0xff]
    %v3956 = vld [vmem:[#allocation19 + $0x988] sm:$0xff]
    %v3957 = vld [vmem:[#allocation19 + $0x990] sm:$0xff]
    %v3958 = vld [vmem:[#allocation19 + $0x998] sm:$0xff]
    %v3959 = vld [vmem:[#allocation19 + $0x9a0] sm:$0xff]
    %v3960 = vld [vmem:[#allocation19 + $0x9a8] sm:$0xff]
    %v3961 = vld [vmem:[#allocation19 + $0x9b0] sm:$0xff]
    %v3962 = vld [vmem:[#allocation19 + $0x9b8] sm:$0xff]
    %v3963 = vld [vmem:[#allocation19 + $0x9c0] sm:$0xff]
    %v3964 = vld [vmem:[#allocation19 + $0x9c8] sm:$0xff]
    %v3965 = vld [vmem:[#allocation19 + $0x9d0] sm:$0xff]
    %v3966 = vld [vmem:[#allocation19 + $0x9d8] sm:$0xff]
    %v3967 = vld [vmem:[#allocation19 + $0x9e0] sm:$0xff]
    %v3968 = vld [vmem:[#allocation19 + $0x9e8] sm:$0xff]
    %v3969 = vld [vmem:[#allocation19 + $0x9f0] sm:$0xff]
    %v3970 = vld [vmem:[#allocation19 + $0x9f8] sm:$0xff]
    %v3971 = vld [vmem:[#allocation19 + $0xa00] sm:$0xff]
    %v3972 = vld [vmem:[#allocation19 + $0xa08] sm:$0xff]
    %v3973 = vld [vmem:[#allocation19 + $0xa10] sm:$0xff]
    %v3974 = vld [vmem:[#allocation19 + $0xa18] sm:$0xff]
    %v3975 = vld [vmem:[#allocation19 + $0xa20] sm:$0xff]
    %v3976 = vld [vmem:[#allocation19 + $0xa28] sm:$0xff]
    %v3977 = vld [vmem:[#allocation19 + $0xa30] sm:$0xff]
    %v3978 = vld [vmem:[#allocation19 + $0xa38] sm:$0xff]
    %v3979 = vld [vmem:[#allocation19 + $0xa40] sm:$0xff]
    %v3980 = vld [vmem:[#allocation19 + $0xa48] sm:$0xff]
    %v3981 = vld [vmem:[#allocation19 + $0xa50] sm:$0xff]
    %v3982 = vld [vmem:[#allocation19 + $0xa58] sm:$0xff]
    %v3983 = vld [vmem:[#allocation19 + $0xa60] sm:$0xff]
    %v3984 = vld [vmem:[#allocation19 + $0xa68] sm:$0xff]
    %v3985 = vld [vmem:[#allocation19 + $0xa70] sm:$0xff]
    %v3986 = vld [vmem:[#allocation19 + $0xa78] sm:$0xff]
    %v3987 = vld [vmem:[#allocation19 + $0xa80] sm:$0xff]
    %v3988 = vld [vmem:[#allocation19 + $0xa88] sm:$0xff]
    %v3989 = vld [vmem:[#allocation19 + $0xa90] sm:$0xff]
    %v3990 = vld [vmem:[#allocation19 + $0xa98] sm:$0xff]
    %v3991 = vld [vmem:[#allocation19 + $0xaa0] sm:$0xff]
    %v3992 = vld [vmem:[#allocation19 + $0xaa8] sm:$0xff]
    %v3993 = vld [vmem:[#allocation19 + $0xab0] sm:$0xff]
    %v3994 = vld [vmem:[#allocation19 + $0xab8] sm:$0xff]
    %v3995 = vld [vmem:[#allocation19 + $0xac0] sm:$0xff]
    %v3996 = vld [vmem:[#allocation19 + $0xac8] sm:$0xff]
    %v3997 = vld [vmem:[#allocation19 + $0xad0] sm:$0xff]
    %v3998 = vld [vmem:[#allocation19 + $0xad8] sm:$0xff]
    %v3999 = vld [vmem:[#allocation19 + $0xae0] sm:$0xff]
    %v4000 = vld [vmem:[#allocation19 + $0xae8] sm:$0xff]
    %v4001 = vld [vmem:[#allocation19 + $0xaf0] sm:$0xff]
    %v4002 = vld [vmem:[#allocation19 + $0xaf8] sm:$0xff]
    %v4003 = vld [vmem:[#allocation19 + $0xb00] sm:$0xff]
    %v4004 = vld [vmem:[#allocation19 + $0xb08] sm:$0xff]
    %v4005 = vld [vmem:[#allocation19 + $0xb10] sm:$0xff]
    %v4006 = vld [vmem:[#allocation19 + $0xb18] sm:$0xff]
    %v4007 = vld [vmem:[#allocation19 + $0xb20] sm:$0xff]
    %v4008 = vld [vmem:[#allocation19 + $0xb28] sm:$0xff]
    %v4009 = vld [vmem:[#allocation19 + $0xb30] sm:$0xff]
    %v4010 = vld [vmem:[#allocation19 + $0xb38] sm:$0xff]
    %v4011 = vld [vmem:[#allocation19 + $0xb40] sm:$0xff]
    %v4012 = vld [vmem:[#allocation19 + $0xb48] sm:$0xff]
    %v4013 = vld [vmem:[#allocation19 + $0xb50] sm:$0xff]
    %v4014 = vld [vmem:[#allocation19 + $0xb58] sm:$0xff]
    %v4015 = vld [vmem:[#allocation19 + $0xb60] sm:$0xff]
    %v4016 = vld [vmem:[#allocation19 + $0xb68] sm:$0xff]
    %v4017 = vld [vmem:[#allocation19 + $0xb70] sm:$0xff]
    %v4018 = vld [vmem:[#allocation19 + $0xb78] sm:$0xff]
    %v4019 = vld [vmem:[#allocation19 + $0xb80] sm:$0xff]
    %v4020 = vld [vmem:[#allocation19 + $0xb88] sm:$0xff]
    %v4021 = vld [vmem:[#allocation19 + $0xb90] sm:$0xff]
    %v4022 = vld [vmem:[#allocation19 + $0xb98] sm:$0xff]
    %v4023 = vld [vmem:[#allocation19 + $0xba0] sm:$0xff]
    %v4024 = vld [vmem:[#allocation19 + $0xba8] sm:$0xff]
    %v4025 = vld [vmem:[#allocation19 + $0xbb0] sm:$0xff]
    %v4026 = vld [vmem:[#allocation19 + $0xbb8] sm:$0xff]
    %v4027 = vld [vmem:[#allocation19 + $0xbc0] sm:$0xff]
    %v4028 = vld [vmem:[#allocation19 + $0xbc8] sm:$0xff]
    %v4029 = vld [vmem:[#allocation19 + $0xbd0] sm:$0xff]
    %v4030 = vld [vmem:[#allocation19 + $0xbd8] sm:$0xff]
    %v4031 = vld [vmem:[#allocation19 + $0xbe0] sm:$0xff]
    %v4032 = vld [vmem:[#allocation19 + $0xbe8] sm:$0xff]
    %v4033 = vld [vmem:[#allocation19 + $0xbf0] sm:$0xff]
    %v4034 = vld [vmem:[#allocation19 + $0xbf8] sm:$0xff]
    %v4035 = vld [vmem:[#allocation19 + $0xc00] sm:$0xff]
    %v4036 = vld [vmem:[#allocation19 + $0xc08] sm:$0xff]
    %v4037 = vld [vmem:[#allocation19 + $0xc10] sm:$0xff]
    %v4038 = vld [vmem:[#allocation19 + $0xc18] sm:$0xff]
    %v4039 = vld [vmem:[#allocation19 + $0xc20] sm:$0xff]
    %v4040 = vld [vmem:[#allocation19 + $0xc28] sm:$0xff]
    %v4041 = vld [vmem:[#allocation19 + $0xc30] sm:$0xff]
    %v4042 = vld [vmem:[#allocation19 + $0xc38] sm:$0xff]
    %v4043 = vld [vmem:[#allocation19 + $0xc40] sm:$0xff]
    %v4044 = vld [vmem:[#allocation19 + $0xc48] sm:$0xff]
    %v4045 = vld [vmem:[#allocation19 + $0xc50] sm:$0xff]
    %v4046 = vld [vmem:[#allocation19 + $0xc58] sm:$0xff]
    %v4047 = vld [vmem:[#allocation19 + $0xc60] sm:$0xff]
    %v4048 = vld [vmem:[#allocation19 + $0xc68] sm:$0xff]
    %v4049 = vld [vmem:[#allocation19 + $0xc70] sm:$0xff]
    %v4050 = vld [vmem:[#allocation19 + $0xc78] sm:$0xff]
    %v4051 = vld [vmem:[#allocation19 + $0xc80] sm:$0xff]
    %v4052 = vld [vmem:[#allocation19 + $0xc88] sm:$0xff]
    %v4053 = vld [vmem:[#allocation19 + $0xc90] sm:$0xff]
    %v4054 = vld [vmem:[#allocation19 + $0xc98] sm:$0xff]
    %v4055 = vld [vmem:[#allocation19 + $0xca0] sm:$0xff]
    %v4056 = vld [vmem:[#allocation19 + $0xca8] sm:$0xff]
    %v4057 = vld [vmem:[#allocation19 + $0xcb0] sm:$0xff]
    %v4058 = vld [vmem:[#allocation19 + $0xcb8] sm:$0xff]
    %v4059 = vld [vmem:[#allocation19 + $0xcc0] sm:$0xff]
    %v4060 = vld [vmem:[#allocation19 + $0xcc8] sm:$0xff]
    %v4061 = vld [vmem:[#allocation19 + $0xcd0] sm:$0xff]
    %v4062 = vld [vmem:[#allocation19 + $0xcd8] sm:$0xff]
    %v4063 = vld [vmem:[#allocation19 + $0xce0] sm:$0xff]
    %v4064 = vld [vmem:[#allocation19 + $0xce8] sm:$0xff]
    %v4065 = vld [vmem:[#allocation19 + $0xcf0] sm:$0xff]
    %v4066 = vld [vmem:[#allocation19 + $0xcf8] sm:$0xff]
    %v4067 = vld [vmem:[#allocation19 + $0xd00] sm:$0xff]
    %v4068 = vld [vmem:[#allocation19 + $0xd08] sm:$0xff]
    %v4069 = vld [vmem:[#allocation19 + $0xd10] sm:$0xff]
    %v4070 = vld [vmem:[#allocation19 + $0xd18] sm:$0xff]
    %v4071 = vld [vmem:[#allocation19 + $0xd20] sm:$0xff]
    %v4072 = vld [vmem:[#allocation19 + $0xd28] sm:$0xff]
    %v4073 = vld [vmem:[#allocation19 + $0xd30] sm:$0xff]
    %v4074 = vld [vmem:[#allocation19 + $0xd38] sm:$0xff]
    %v4075 = vld [vmem:[#allocation19 + $0xd40] sm:$0xff]
    %v4076 = vld [vmem:[#allocation19 + $0xd48] sm:$0xff]
    %v4077 = vld [vmem:[#allocation19 + $0xd50] sm:$0xff]
    %v4078 = vld [vmem:[#allocation19 + $0xd58] sm:$0xff]
    %v4079 = vld [vmem:[#allocation19 + $0xd60] sm:$0xff]
    %v4080 = vld [vmem:[#allocation19 + $0xd68] sm:$0xff]
    %v4081 = vld [vmem:[#allocation19 + $0xd70] sm:$0xff]
    %v4082 = vld [vmem:[#allocation19 + $0xd78] sm:$0xff]
    %v4083 = vld [vmem:[#allocation19 + $0xd80] sm:$0xff]
    %v4084 = vld [vmem:[#allocation19 + $0xd88] sm:$0xff]
    %v4085 = vld [vmem:[#allocation19 + $0xd90] sm:$0xff]
    %v4086 = vld [vmem:[#allocation19 + $0xd98] sm:$0xff]
    %v4087 = vld [vmem:[#allocation19 + $0xda0] sm:$0xff]
    %v4088 = vld [vmem:[#allocation19 + $0xda8] sm:$0xff]
    %v4089 = vld [vmem:[#allocation19 + $0xdb0] sm:$0xff]
    %v4090 = vld [vmem:[#allocation19 + $0xdb8] sm:$0xff]
    %v4091 = vld [vmem:[#allocation19 + $0xdc0] sm:$0xff]
    %v4092 = vld [vmem:[#allocation19 + $0xdc8] sm:$0xff]
    %v4093 = vld [vmem:[#allocation19 + $0xdd0] sm:$0xff]
    %v4094 = vld [vmem:[#allocation19 + $0xdd8] sm:$0xff]
    %v4095 = vld [vmem:[#allocation19 + $0xde0] sm:$0xff]
    %v4096 = vld [vmem:[#allocation19 + $0xde8] sm:$0xff]
    %v4097 = vld [vmem:[#allocation19 + $0xdf0] sm:$0xff]
    %v4098 = vld [vmem:[#allocation19 + $0xdf8] sm:$0xff]
    %v4099 = vld [vmem:[#allocation19 + $0xe00] sm:$0xff]
    %v4100 = vld [vmem:[#allocation19 + $0xe08] sm:$0xff]
    %v4101 = vld [vmem:[#allocation19 + $0xe10] sm:$0xff]
    %v4102 = vld [vmem:[#allocation19 + $0xe18] sm:$0xff]
    %v4103 = vld [vmem:[#allocation19 + $0xe20] sm:$0xff]
    %v4104 = vld [vmem:[#allocation19 + $0xe28] sm:$0xff]
    %v4105 = vld [vmem:[#allocation19 + $0xe30] sm:$0xff]
    %v4106 = vld [vmem:[#allocation19 + $0xe38] sm:$0xff]
    %v4107 = vld [vmem:[#allocation19 + $0xe40] sm:$0xff]
    %v4108 = vld [vmem:[#allocation19 + $0xe48] sm:$0xff]
    %v4109 = vld [vmem:[#allocation19 + $0xe50] sm:$0xff]
    %v4110 = vld [vmem:[#allocation19 + $0xe58] sm:$0xff]
    %v4111 = vld [vmem:[#allocation19 + $0xe60] sm:$0xff]
    %v4112 = vld [vmem:[#allocation19 + $0xe68] sm:$0xff]
    %v4113 = vld [vmem:[#allocation19 + $0xe70] sm:$0xff]
    %v4114 = vld [vmem:[#allocation19 + $0xe78] sm:$0xff]
    %v4115 = vld [vmem:[#allocation19 + $0xe80] sm:$0xff]
    %v4116 = vld [vmem:[#allocation19 + $0xe88] sm:$0xff]
    %v4117 = vld [vmem:[#allocation19 + $0xe90] sm:$0xff]
    %v4118 = vld [vmem:[#allocation19 + $0xe98] sm:$0xff]
    %v4119 = vld [vmem:[#allocation19 + $0xea0] sm:$0xff]
    %v4120 = vld [vmem:[#allocation19 + $0xea8] sm:$0xff]
    %v4121 = vld [vmem:[#allocation19 + $0xeb0] sm:$0xff]
    %v4122 = vld [vmem:[#allocation19 + $0xeb8] sm:$0xff]
    %v4123 = vld [vmem:[#allocation19 + $0xec0] sm:$0xff]
    %v4124 = vld [vmem:[#allocation19 + $0xec8] sm:$0xff]
    %v4125 = vld [vmem:[#allocation19 + $0xed0] sm:$0xff]
    %v4126 = vld [vmem:[#allocation19 + $0xed8] sm:$0xff]
    %v4127 = vld [vmem:[#allocation19 + $0xee0] sm:$0xff]
    %v4128 = vld [vmem:[#allocation19 + $0xee8] sm:$0xff]
    %v4129 = vld [vmem:[#allocation19 + $0xef0] sm:$0xff]
    %v4130 = vld [vmem:[#allocation19 + $0xef8] sm:$0xff]
    %v4131 = vld [vmem:[#allocation19 + $0xf00] sm:$0xff]
    %v4132 = vld [vmem:[#allocation19 + $0xf08] sm:$0xff]
    %v4133 = vld [vmem:[#allocation19 + $0xf10] sm:$0xff]
    %v4134 = vld [vmem:[#allocation19 + $0xf18] sm:$0xff]
    %v4135 = vld [vmem:[#allocation19 + $0xf20] sm:$0xff]
    %v4136 = vld [vmem:[#allocation19 + $0xf28] sm:$0xff]
    %v4137 = vld [vmem:[#allocation19 + $0xf30] sm:$0xff]
    %v4138 = vld [vmem:[#allocation19 + $0xf38] sm:$0xff]
    %v4139 = vld [vmem:[#allocation19 + $0xf40] sm:$0xff]
    %v4140 = vld [vmem:[#allocation19 + $0xf48] sm:$0xff]
    %v4141 = vld [vmem:[#allocation19 + $0xf50] sm:$0xff]
    %v4142 = vld [vmem:[#allocation19 + $0xf58] sm:$0xff]
    %v4143 = vld [vmem:[#allocation19 + $0xf60] sm:$0xff]
    %v4144 = vld [vmem:[#allocation19 + $0xf68] sm:$0xff]
    %v4145 = vld [vmem:[#allocation19 + $0xf70] sm:$0xff]
    %v4146 = vld [vmem:[#allocation19 + $0xf78] sm:$0xff]
    %v4147 = vld [vmem:[#allocation19 + $0xf80] sm:$0xff]
    %v4148 = vld [vmem:[#allocation19 + $0xf88] sm:$0xff]
    %v4149 = vld [vmem:[#allocation19 + $0xf90] sm:$0xff]
    %v4150 = vld [vmem:[#allocation19 + $0xf98] sm:$0xff]
    %v4151 = vld [vmem:[#allocation19 + $0xfa0] sm:$0xff]
    %v4152 = vld [vmem:[#allocation19 + $0xfa8] sm:$0xff]
    %v4153 = vld [vmem:[#allocation19 + $0xfb0] sm:$0xff]
    %v4154 = vld [vmem:[#allocation19 + $0xfb8] sm:$0xff]
    %v4155 = vld [vmem:[#allocation19 + $0xfc0] sm:$0xff]
    %v4156 = vld [vmem:[#allocation19 + $0xfc8] sm:$0xff]
    %v4157 = vld [vmem:[#allocation19 + $0xfd0] sm:$0xff]
    %v4158 = vld [vmem:[#allocation19 + $0xfd8] sm:$0xff]
    %v4159 = vld [vmem:[#allocation19 + $0xfe0] sm:$0xff]
    %v4160 = vld [vmem:[#allocation19 + $0xfe8] sm:$0xff]
    %v4161 = vld [vmem:[#allocation19 + $0xff0] sm:$0xff]
    %v4162 = vld [vmem:[#allocation19 + $0xff8] sm:$0xff]
    %v4163 = vld [vmem:[#allocation21] sm:$0xff]
    %v4165 = vlaneseq
    %v4166 = vshrl.u32 %v4165, 7
    %v4167 = vsub.s32 0, %v4166
    %v4168 = vrot.slane %v4163, %v4167
    %v4169 = vlaneseq
    %v4170 = vshrl.u32 %v4169, 7
    %v4171 = vsub.s32 1, %v4170
    %v4172 = vrot.slane %v4163, %v4171
    %v4173 = vlaneseq
    %v4174 = vshrl.u32 %v4173, 7
    %v4175 = vsub.s32 2, %v4174
    %v4176 = vrot.slane %v4163, %v4175
    %v4177 = vlaneseq
    %v4178 = vshrl.u32 %v4177, 7
    %v4179 = vsub.s32 3, %v4178
    %v4180 = vrot.slane %v4163, %v4179
    %v4181 = vlaneseq
    %v4182 = vshrl.u32 %v4181, 7
    %v4183 = vsub.s32 4, %v4182
    %v4184 = vrot.slane %v4163, %v4183
    %v4185 = vlaneseq
    %v4186 = vshrl.u32 %v4185, 7
    %v4187 = vsub.s32 5, %v4186
    %v4188 = vrot.slane %v4163, %v4187
    %v4189 = vlaneseq
    %v4190 = vshrl.u32 %v4189, 7
    %v4191 = vsub.s32 6, %v4190
    %v4192 = vrot.slane %v4163, %v4191
    %v4193 = vlaneseq
    %v4194 = vshrl.u32 %v4193, 7
    %v4195 = vsub.s32 7, %v4194
    %v4196 = vrot.slane %v4163, %v4195
    %v4717 = vunpack.c.l.b16 %v3651
    %v4718 = vunpack.c.h.b16 %v3651
    %v4719 = vunpack.c.l.b16 %v3652
    %v4720 = vunpack.c.h.b16 %v3652
    %v4721 = vunpack.c.l.b16 %v3653
    %v4722 = vunpack.c.h.b16 %v3653
    %v4723 = vunpack.c.l.b16 %v3654
    %v4724 = vunpack.c.h.b16 %v3654
    %v4725 = vunpack.c.l.b16 %v3655
    %v4726 = vunpack.c.h.b16 %v3655
    %v4727 = vunpack.c.l.b16 %v3656
    %v4728 = vunpack.c.h.b16 %v3656
    %v4729 = vunpack.c.l.b16 %v3657
    %v4730 = vunpack.c.h.b16 %v3657
    %v4731 = vunpack.c.l.b16 %v3658
    %v4732 = vunpack.c.h.b16 %v3658
    %v4733 = vunpack.c.l.b16 %v3659
    %v4734 = vunpack.c.h.b16 %v3659
    %v4735 = vunpack.c.l.b16 %v3660
    %v4736 = vunpack.c.h.b16 %v3660
    %v4737 = vunpack.c.l.b16 %v3661
    %v4738 = vunpack.c.h.b16 %v3661
    %v4739 = vunpack.c.l.b16 %v3662
    %v4740 = vunpack.c.h.b16 %v3662
    %v4741 = vunpack.c.l.b16 %v3663
    %v4742 = vunpack.c.h.b16 %v3663
    %v4743 = vunpack.c.l.b16 %v3664
    %v4744 = vunpack.c.h.b16 %v3664
    %v4745 = vunpack.c.l.b16 %v3665
    %v4746 = vunpack.c.h.b16 %v3665
    %v4747 = vunpack.c.l.b16 %v3666
    %v4748 = vunpack.c.h.b16 %v3666
    %v4749 = vunpack.c.l.b16 %v3667
    %v4750 = vunpack.c.h.b16 %v3667
    %v4751 = vunpack.c.l.b16 %v3668
    %v4752 = vunpack.c.h.b16 %v3668
    %v4753 = vunpack.c.l.b16 %v3669
    %v4754 = vunpack.c.h.b16 %v3669
    %v4755 = vunpack.c.l.b16 %v3670
    %v4756 = vunpack.c.h.b16 %v3670
    %v4757 = vunpack.c.l.b16 %v3671
    %v4758 = vunpack.c.h.b16 %v3671
    %v4759 = vunpack.c.l.b16 %v3672
    %v4760 = vunpack.c.h.b16 %v3672
    %v4761 = vunpack.c.l.b16 %v3673
    %v4762 = vunpack.c.h.b16 %v3673
    %v4763 = vunpack.c.l.b16 %v3674
    %v4764 = vunpack.c.h.b16 %v3674
    %v4765 = vunpack.c.l.b16 %v3675
    %v4766 = vunpack.c.h.b16 %v3675
    %v4767 = vunpack.c.l.b16 %v3676
    %v4768 = vunpack.c.h.b16 %v3676
    %v4769 = vunpack.c.l.b16 %v3677
    %v4770 = vunpack.c.h.b16 %v3677
    %v4771 = vunpack.c.l.b16 %v3678
    %v4772 = vunpack.c.h.b16 %v3678
    %v4773 = vunpack.c.l.b16 %v3679
    %v4774 = vunpack.c.h.b16 %v3679
    %v4775 = vunpack.c.l.b16 %v3680
    %v4776 = vunpack.c.h.b16 %v3680
    %v4777 = vunpack.c.l.b16 %v3681
    %v4778 = vunpack.c.h.b16 %v3681
    %v4779 = vunpack.c.l.b16 %v3682
    %v4780 = vunpack.c.h.b16 %v3682
    %v4781 = vunpack.c.l.b16 %v3683
    %v4782 = vunpack.c.h.b16 %v3683
    %v4783 = vunpack.c.l.b16 %v3684
    %v4784 = vunpack.c.h.b16 %v3684
    %v4785 = vunpack.c.l.b16 %v3685
    %v4786 = vunpack.c.h.b16 %v3685
    %v4787 = vunpack.c.l.b16 %v3686
    %v4788 = vunpack.c.h.b16 %v3686
    %v4789 = vunpack.c.l.b16 %v3687
    %v4790 = vunpack.c.h.b16 %v3687
    %v4791 = vunpack.c.l.b16 %v3688
    %v4792 = vunpack.c.h.b16 %v3688
    %v4793 = vunpack.c.l.b16 %v3689
    %v4794 = vunpack.c.h.b16 %v3689
    %v4795 = vunpack.c.l.b16 %v3690
    %v4796 = vunpack.c.h.b16 %v3690
    %v4797 = vunpack.c.l.b16 %v3691
    %v4798 = vunpack.c.h.b16 %v3691
    %v4799 = vunpack.c.l.b16 %v3692
    %v4800 = vunpack.c.h.b16 %v3692
    %v4801 = vunpack.c.l.b16 %v3693
    %v4802 = vunpack.c.h.b16 %v3693
    %v4803 = vunpack.c.l.b16 %v3694
    %v4804 = vunpack.c.h.b16 %v3694
    %v4805 = vunpack.c.l.b16 %v3695
    %v4806 = vunpack.c.h.b16 %v3695
    %v4807 = vunpack.c.l.b16 %v3696
    %v4808 = vunpack.c.h.b16 %v3696
    %v4809 = vunpack.c.l.b16 %v3697
    %v4810 = vunpack.c.h.b16 %v3697
    %v4811 = vunpack.c.l.b16 %v3698
    %v4812 = vunpack.c.h.b16 %v3698
    %v4813 = vunpack.c.l.b16 %v3699
    %v4814 = vunpack.c.h.b16 %v3699
    %v4815 = vunpack.c.l.b16 %v3700
    %v4816 = vunpack.c.h.b16 %v3700
    %v4817 = vunpack.c.l.b16 %v3701
    %v4818 = vunpack.c.h.b16 %v3701
    %v4819 = vunpack.c.l.b16 %v3702
    %v4820 = vunpack.c.h.b16 %v3702
    %v4821 = vunpack.c.l.b16 %v3703
    %v4822 = vunpack.c.h.b16 %v3703
    %v4823 = vunpack.c.l.b16 %v3704
    %v4824 = vunpack.c.h.b16 %v3704
    %v4825 = vunpack.c.l.b16 %v3705
    %v4826 = vunpack.c.h.b16 %v3705
    %v4827 = vunpack.c.l.b16 %v3706
    %v4828 = vunpack.c.h.b16 %v3706
    %v4829 = vunpack.c.l.b16 %v3707
    %v4830 = vunpack.c.h.b16 %v3707
    %v4831 = vunpack.c.l.b16 %v3708
    %v4832 = vunpack.c.h.b16 %v3708
    %v4833 = vunpack.c.l.b16 %v3709
    %v4834 = vunpack.c.h.b16 %v3709
    %v4835 = vunpack.c.l.b16 %v3710
    %v4836 = vunpack.c.h.b16 %v3710
    %v4837 = vunpack.c.l.b16 %v3711
    %v4838 = vunpack.c.h.b16 %v3711
    %v4839 = vunpack.c.l.b16 %v3712
    %v4840 = vunpack.c.h.b16 %v3712
    %v4841 = vunpack.c.l.b16 %v3713
    %v4842 = vunpack.c.h.b16 %v3713
    %v4843 = vunpack.c.l.b16 %v3714
    %v4844 = vunpack.c.h.b16 %v3714
    %v4845 = vunpack.c.l.b16 %v3715
    %v4846 = vunpack.c.h.b16 %v3715
    %v4847 = vunpack.c.l.b16 %v3716
    %v4848 = vunpack.c.h.b16 %v3716
    %v4849 = vunpack.c.l.b16 %v3717
    %v4850 = vunpack.c.h.b16 %v3717
    %v4851 = vunpack.c.l.b16 %v3718
    %v4852 = vunpack.c.h.b16 %v3718
    %v4853 = vunpack.c.l.b16 %v3719
    %v4854 = vunpack.c.h.b16 %v3719
    %v4855 = vunpack.c.l.b16 %v3720
    %v4856 = vunpack.c.h.b16 %v3720
    %v4857 = vunpack.c.l.b16 %v3721
    %v4858 = vunpack.c.h.b16 %v3721
    %v4859 = vunpack.c.l.b16 %v3722
    %v4860 = vunpack.c.h.b16 %v3722
    %v4861 = vunpack.c.l.b16 %v3723
    %v4862 = vunpack.c.h.b16 %v3723
    %v4863 = vunpack.c.l.b16 %v3724
    %v4864 = vunpack.c.h.b16 %v3724
    %v4865 = vunpack.c.l.b16 %v3725
    %v4866 = vunpack.c.h.b16 %v3725
    %v4867 = vunpack.c.l.b16 %v3726
    %v4868 = vunpack.c.h.b16 %v3726
    %v4869 = vunpack.c.l.b16 %v3727
    %v4870 = vunpack.c.h.b16 %v3727
    %v4871 = vunpack.c.l.b16 %v3728
    %v4872 = vunpack.c.h.b16 %v3728
    %v4873 = vunpack.c.l.b16 %v3729
    %v4874 = vunpack.c.h.b16 %v3729
    %v4875 = vunpack.c.l.b16 %v3730
    %v4876 = vunpack.c.h.b16 %v3730
    %v4877 = vunpack.c.l.b16 %v3731
    %v4878 = vunpack.c.h.b16 %v3731
    %v4879 = vunpack.c.l.b16 %v3732
    %v4880 = vunpack.c.h.b16 %v3732
    %v4881 = vunpack.c.l.b16 %v3733
    %v4882 = vunpack.c.h.b16 %v3733
    %v4883 = vunpack.c.l.b16 %v3734
    %v4884 = vunpack.c.h.b16 %v3734
    %v4885 = vunpack.c.l.b16 %v3735
    %v4886 = vunpack.c.h.b16 %v3735
    %v4887 = vunpack.c.l.b16 %v3736
    %v4888 = vunpack.c.h.b16 %v3736
    %v4889 = vunpack.c.l.b16 %v3737
    %v4890 = vunpack.c.h.b16 %v3737
    %v4891 = vunpack.c.l.b16 %v3738
    %v4892 = vunpack.c.h.b16 %v3738
    %v4893 = vunpack.c.l.b16 %v3739
    %v4894 = vunpack.c.h.b16 %v3739
    %v4895 = vunpack.c.l.b16 %v3740
    %v4896 = vunpack.c.h.b16 %v3740
    %v4897 = vunpack.c.l.b16 %v3741
    %v4898 = vunpack.c.h.b16 %v3741
    %v4899 = vunpack.c.l.b16 %v3742
    %v4900 = vunpack.c.h.b16 %v3742
    %v4901 = vunpack.c.l.b16 %v3743
    %v4902 = vunpack.c.h.b16 %v3743
    %v4903 = vunpack.c.l.b16 %v3744
    %v4904 = vunpack.c.h.b16 %v3744
    %v4905 = vunpack.c.l.b16 %v3745
    %v4906 = vunpack.c.h.b16 %v3745
    %v4907 = vunpack.c.l.b16 %v3746
    %v4908 = vunpack.c.h.b16 %v3746
    %v4909 = vunpack.c.l.b16 %v3747
    %v4910 = vunpack.c.h.b16 %v3747
    %v4911 = vunpack.c.l.b16 %v3748
    %v4912 = vunpack.c.h.b16 %v3748
    %v4913 = vunpack.c.l.b16 %v3749
    %v4914 = vunpack.c.h.b16 %v3749
    %v4915 = vunpack.c.l.b16 %v3750
    %v4916 = vunpack.c.h.b16 %v3750
    %v4917 = vunpack.c.l.b16 %v3751
    %v4918 = vunpack.c.h.b16 %v3751
    %v4919 = vunpack.c.l.b16 %v3752
    %v4920 = vunpack.c.h.b16 %v3752
    %v4921 = vunpack.c.l.b16 %v3753
    %v4922 = vunpack.c.h.b16 %v3753
    %v4923 = vunpack.c.l.b16 %v3754
    %v4924 = vunpack.c.h.b16 %v3754
    %v4925 = vunpack.c.l.b16 %v3755
    %v4926 = vunpack.c.h.b16 %v3755
    %v4927 = vunpack.c.l.b16 %v3756
    %v4928 = vunpack.c.h.b16 %v3756
    %v4929 = vunpack.c.l.b16 %v3757
    %v4930 = vunpack.c.h.b16 %v3757
    %v4931 = vunpack.c.l.b16 %v3758
    %v4932 = vunpack.c.h.b16 %v3758
    %v4933 = vunpack.c.l.b16 %v3759
    %v4934 = vunpack.c.h.b16 %v3759
    %v4935 = vunpack.c.l.b16 %v3760
    %v4936 = vunpack.c.h.b16 %v3760
    %v4937 = vunpack.c.l.b16 %v3761
    %v4938 = vunpack.c.h.b16 %v3761
    %v4939 = vunpack.c.l.b16 %v3762
    %v4940 = vunpack.c.h.b16 %v3762
    %v4941 = vunpack.c.l.b16 %v3763
    %v4942 = vunpack.c.h.b16 %v3763
    %v4943 = vunpack.c.l.b16 %v3764
    %v4944 = vunpack.c.h.b16 %v3764
    %v4945 = vunpack.c.l.b16 %v3765
    %v4946 = vunpack.c.h.b16 %v3765
    %v4947 = vunpack.c.l.b16 %v3766
    %v4948 = vunpack.c.h.b16 %v3766
    %v4949 = vunpack.c.l.b16 %v3767
    %v4950 = vunpack.c.h.b16 %v3767
    %v4951 = vunpack.c.l.b16 %v3768
    %v4952 = vunpack.c.h.b16 %v3768
    %v4953 = vunpack.c.l.b16 %v3769
    %v4954 = vunpack.c.h.b16 %v3769
    %v4955 = vunpack.c.l.b16 %v3770
    %v4956 = vunpack.c.h.b16 %v3770
    %v4957 = vunpack.c.l.b16 %v3771
    %v4958 = vunpack.c.h.b16 %v3771
    %v4959 = vunpack.c.l.b16 %v3772
    %v4960 = vunpack.c.h.b16 %v3772
    %v4961 = vunpack.c.l.b16 %v3773
    %v4962 = vunpack.c.h.b16 %v3773
    %v4963 = vunpack.c.l.b16 %v3774
    %v4964 = vunpack.c.h.b16 %v3774
    %v4965 = vunpack.c.l.b16 %v3775
    %v4966 = vunpack.c.h.b16 %v3775
    %v4967 = vunpack.c.l.b16 %v3776
    %v4968 = vunpack.c.h.b16 %v3776
    %v4969 = vunpack.c.l.b16 %v3777
    %v4970 = vunpack.c.h.b16 %v3777
    %v4971 = vunpack.c.l.b16 %v3778
    %v4972 = vunpack.c.h.b16 %v3778
    %v4973 = vunpack.c.l.b16 %v3779
    %v4974 = vunpack.c.h.b16 %v3779
    %v4975 = vunpack.c.l.b16 %v3780
    %v4976 = vunpack.c.h.b16 %v3780
    %v4977 = vunpack.c.l.b16 %v3781
    %v4978 = vunpack.c.h.b16 %v3781
    %v4979 = vunpack.c.l.b16 %v3782
    %v4980 = vunpack.c.h.b16 %v3782
    %v4981 = vunpack.c.l.b16 %v3783
    %v4982 = vunpack.c.h.b16 %v3783
    %v4983 = vunpack.c.l.b16 %v3784
    %v4984 = vunpack.c.h.b16 %v3784
    %v4985 = vunpack.c.l.b16 %v3785
    %v4986 = vunpack.c.h.b16 %v3785
    %v4987 = vunpack.c.l.b16 %v3786
    %v4988 = vunpack.c.h.b16 %v3786
    %v4989 = vunpack.c.l.b16 %v3787
    %v4990 = vunpack.c.h.b16 %v3787
    %v4991 = vunpack.c.l.b16 %v3788
    %v4992 = vunpack.c.h.b16 %v3788
    %v4993 = vunpack.c.l.b16 %v3789
    %v4994 = vunpack.c.h.b16 %v3789
    %v4995 = vunpack.c.l.b16 %v3790
    %v4996 = vunpack.c.h.b16 %v3790
    %v4997 = vunpack.c.l.b16 %v3791
    %v4998 = vunpack.c.h.b16 %v3791
    %v4999 = vunpack.c.l.b16 %v3792
    %v5000 = vunpack.c.h.b16 %v3792
    %v5001 = vunpack.c.l.b16 %v3793
    %v5002 = vunpack.c.h.b16 %v3793
    %v5003 = vunpack.c.l.b16 %v3794
    %v5004 = vunpack.c.h.b16 %v3794
    %v5005 = vunpack.c.l.b16 %v3795
    %v5006 = vunpack.c.h.b16 %v3795
    %v5007 = vunpack.c.l.b16 %v3796
    %v5008 = vunpack.c.h.b16 %v3796
    %v5009 = vunpack.c.l.b16 %v3797
    %v5010 = vunpack.c.h.b16 %v3797
    %v5011 = vunpack.c.l.b16 %v3798
    %v5012 = vunpack.c.h.b16 %v3798
    %v5013 = vunpack.c.l.b16 %v3799
    %v5014 = vunpack.c.h.b16 %v3799
    %v5015 = vunpack.c.l.b16 %v3800
    %v5016 = vunpack.c.h.b16 %v3800
    %v5017 = vunpack.c.l.b16 %v3801
    %v5018 = vunpack.c.h.b16 %v3801
    %v5019 = vunpack.c.l.b16 %v3802
    %v5020 = vunpack.c.h.b16 %v3802
    %v5021 = vunpack.c.l.b16 %v3803
    %v5022 = vunpack.c.h.b16 %v3803
    %v5023 = vunpack.c.l.b16 %v3804
    %v5024 = vunpack.c.h.b16 %v3804
    %v5025 = vunpack.c.l.b16 %v3805
    %v5026 = vunpack.c.h.b16 %v3805
    %v5027 = vunpack.c.l.b16 %v3806
    %v5028 = vunpack.c.h.b16 %v3806
    %v5029 = vunpack.c.l.b16 %v3807
    %v5030 = vunpack.c.h.b16 %v3807
    %v5031 = vunpack.c.l.b16 %v3808
    %v5032 = vunpack.c.h.b16 %v3808
    %v5033 = vunpack.c.l.b16 %v3809
    %v5034 = vunpack.c.h.b16 %v3809
    %v5035 = vunpack.c.l.b16 %v3810
    %v5036 = vunpack.c.h.b16 %v3810
    %v5037 = vunpack.c.l.b16 %v3811
    %v5038 = vunpack.c.h.b16 %v3811
    %v5039 = vunpack.c.l.b16 %v3812
    %v5040 = vunpack.c.h.b16 %v3812
    %v5041 = vunpack.c.l.b16 %v3813
    %v5042 = vunpack.c.h.b16 %v3813
    %v5043 = vunpack.c.l.b16 %v3814
    %v5044 = vunpack.c.h.b16 %v3814
    %v5045 = vunpack.c.l.b16 %v3815
    %v5046 = vunpack.c.h.b16 %v3815
    %v5047 = vunpack.c.l.b16 %v3816
    %v5048 = vunpack.c.h.b16 %v3816
    %v5049 = vunpack.c.l.b16 %v3817
    %v5050 = vunpack.c.h.b16 %v3817
    %v5051 = vunpack.c.l.b16 %v3818
    %v5052 = vunpack.c.h.b16 %v3818
    %v5053 = vunpack.c.l.b16 %v3819
    %v5054 = vunpack.c.h.b16 %v3819
    %v5055 = vunpack.c.l.b16 %v3820
    %v5056 = vunpack.c.h.b16 %v3820
    %v5057 = vunpack.c.l.b16 %v3821
    %v5058 = vunpack.c.h.b16 %v3821
    %v5059 = vunpack.c.l.b16 %v3822
    %v5060 = vunpack.c.h.b16 %v3822
    %v5061 = vunpack.c.l.b16 %v3823
    %v5062 = vunpack.c.h.b16 %v3823
    %v5063 = vunpack.c.l.b16 %v3824
    %v5064 = vunpack.c.h.b16 %v3824
    %v5065 = vunpack.c.l.b16 %v3825
    %v5066 = vunpack.c.h.b16 %v3825
    %v5067 = vunpack.c.l.b16 %v3826
    %v5068 = vunpack.c.h.b16 %v3826
    %v5069 = vunpack.c.l.b16 %v3827
    %v5070 = vunpack.c.h.b16 %v3827
    %v5071 = vunpack.c.l.b16 %v3828
    %v5072 = vunpack.c.h.b16 %v3828
    %v5073 = vunpack.c.l.b16 %v3829
    %v5074 = vunpack.c.h.b16 %v3829
    %v5075 = vunpack.c.l.b16 %v3830
    %v5076 = vunpack.c.h.b16 %v3830
    %v5077 = vunpack.c.l.b16 %v3831
    %v5078 = vunpack.c.h.b16 %v3831
    %v5079 = vunpack.c.l.b16 %v3832
    %v5080 = vunpack.c.h.b16 %v3832
    %v5081 = vunpack.c.l.b16 %v3833
    %v5082 = vunpack.c.h.b16 %v3833
    %v5083 = vunpack.c.l.b16 %v3834
    %v5084 = vunpack.c.h.b16 %v3834
    %v5085 = vunpack.c.l.b16 %v3835
    %v5086 = vunpack.c.h.b16 %v3835
    %v5087 = vunpack.c.l.b16 %v3836
    %v5088 = vunpack.c.h.b16 %v3836
    %v5089 = vunpack.c.l.b16 %v3837
    %v5090 = vunpack.c.h.b16 %v3837
    %v5091 = vunpack.c.l.b16 %v3838
    %v5092 = vunpack.c.h.b16 %v3838
    %v5093 = vunpack.c.l.b16 %v3839
    %v5094 = vunpack.c.h.b16 %v3839
    %v5095 = vunpack.c.l.b16 %v3840
    %v5096 = vunpack.c.h.b16 %v3840
    %v5097 = vunpack.c.l.b16 %v3841
    %v5098 = vunpack.c.h.b16 %v3841
    %v5099 = vunpack.c.l.b16 %v3842
    %v5100 = vunpack.c.h.b16 %v3842
    %v5101 = vunpack.c.l.b16 %v3843
    %v5102 = vunpack.c.h.b16 %v3843
    %v5103 = vunpack.c.l.b16 %v3844
    %v5104 = vunpack.c.h.b16 %v3844
    %v5105 = vunpack.c.l.b16 %v3845
    %v5106 = vunpack.c.h.b16 %v3845
    %v5107 = vunpack.c.l.b16 %v3846
    %v5108 = vunpack.c.h.b16 %v3846
    %v5109 = vunpack.c.l.b16 %v3847
    %v5110 = vunpack.c.h.b16 %v3847
    %v5111 = vunpack.c.l.b16 %v3848
    %v5112 = vunpack.c.h.b16 %v3848
    %v5113 = vunpack.c.l.b16 %v3849
    %v5114 = vunpack.c.h.b16 %v3849
    %v5115 = vunpack.c.l.b16 %v3850
    %v5116 = vunpack.c.h.b16 %v3850
    %v5117 = vunpack.c.l.b16 %v3851
    %v5118 = vunpack.c.h.b16 %v3851
    %v5119 = vunpack.c.l.b16 %v3852
    %v5120 = vunpack.c.h.b16 %v3852
    %v5121 = vunpack.c.l.b16 %v3853
    %v5122 = vunpack.c.h.b16 %v3853
    %v5123 = vunpack.c.l.b16 %v3854
    %v5124 = vunpack.c.h.b16 %v3854
    %v5125 = vunpack.c.l.b16 %v3855
    %v5126 = vunpack.c.h.b16 %v3855
    %v5127 = vunpack.c.l.b16 %v3856
    %v5128 = vunpack.c.h.b16 %v3856
    %v5129 = vunpack.c.l.b16 %v3857
    %v5130 = vunpack.c.h.b16 %v3857
    %v5131 = vunpack.c.l.b16 %v3858
    %v5132 = vunpack.c.h.b16 %v3858
    %v5133 = vunpack.c.l.b16 %v3859
    %v5134 = vunpack.c.h.b16 %v3859
    %v5135 = vunpack.c.l.b16 %v3860
    %v5136 = vunpack.c.h.b16 %v3860
    %v5137 = vunpack.c.l.b16 %v3861
    %v5138 = vunpack.c.h.b16 %v3861
    %v5139 = vunpack.c.l.b16 %v3862
    %v5140 = vunpack.c.h.b16 %v3862
    %v5141 = vunpack.c.l.b16 %v3863
    %v5142 = vunpack.c.h.b16 %v3863
    %v5143 = vunpack.c.l.b16 %v3864
    %v5144 = vunpack.c.h.b16 %v3864
    %v5145 = vunpack.c.l.b16 %v3865
    %v5146 = vunpack.c.h.b16 %v3865
    %v5147 = vunpack.c.l.b16 %v3866
    %v5148 = vunpack.c.h.b16 %v3866
    %v5149 = vunpack.c.l.b16 %v3867
    %v5150 = vunpack.c.h.b16 %v3867
    %v5151 = vunpack.c.l.b16 %v3868
    %v5152 = vunpack.c.h.b16 %v3868
    %v5153 = vunpack.c.l.b16 %v3869
    %v5154 = vunpack.c.h.b16 %v3869
    %v5155 = vunpack.c.l.b16 %v3870
    %v5156 = vunpack.c.h.b16 %v3870
    %v5157 = vunpack.c.l.b16 %v3871
    %v5158 = vunpack.c.h.b16 %v3871
    %v5159 = vunpack.c.l.b16 %v3872
    %v5160 = vunpack.c.h.b16 %v3872
    %v5161 = vunpack.c.l.b16 %v3873
    %v5162 = vunpack.c.h.b16 %v3873
    %v5163 = vunpack.c.l.b16 %v3874
    %v5164 = vunpack.c.h.b16 %v3874
    %v5165 = vunpack.c.l.b16 %v3875
    %v5166 = vunpack.c.h.b16 %v3875
    %v5167 = vunpack.c.l.b16 %v3876
    %v5168 = vunpack.c.h.b16 %v3876
    %v5169 = vunpack.c.l.b16 %v3877
    %v5170 = vunpack.c.h.b16 %v3877
    %v5171 = vunpack.c.l.b16 %v3878
    %v5172 = vunpack.c.h.b16 %v3878
    %v5173 = vunpack.c.l.b16 %v3879
    %v5174 = vunpack.c.h.b16 %v3879
    %v5175 = vunpack.c.l.b16 %v3880
    %v5176 = vunpack.c.h.b16 %v3880
    %v5177 = vunpack.c.l.b16 %v3881
    %v5178 = vunpack.c.h.b16 %v3881
    %v5179 = vunpack.c.l.b16 %v3882
    %v5180 = vunpack.c.h.b16 %v3882
    %v5181 = vunpack.c.l.b16 %v3883
    %v5182 = vunpack.c.h.b16 %v3883
    %v5183 = vunpack.c.l.b16 %v3884
    %v5184 = vunpack.c.h.b16 %v3884
    %v5185 = vunpack.c.l.b16 %v3885
    %v5186 = vunpack.c.h.b16 %v3885
    %v5187 = vunpack.c.l.b16 %v3886
    %v5188 = vunpack.c.h.b16 %v3886
    %v5189 = vunpack.c.l.b16 %v3887
    %v5190 = vunpack.c.h.b16 %v3887
    %v5191 = vunpack.c.l.b16 %v3888
    %v5192 = vunpack.c.h.b16 %v3888
    %v5193 = vunpack.c.l.b16 %v3889
    %v5194 = vunpack.c.h.b16 %v3889
    %v5195 = vunpack.c.l.b16 %v3890
    %v5196 = vunpack.c.h.b16 %v3890
    %v5197 = vunpack.c.l.b16 %v3891
    %v5198 = vunpack.c.h.b16 %v3891
    %v5199 = vunpack.c.l.b16 %v3892
    %v5200 = vunpack.c.h.b16 %v3892
    %v5201 = vunpack.c.l.b16 %v3893
    %v5202 = vunpack.c.h.b16 %v3893
    %v5203 = vunpack.c.l.b16 %v3894
    %v5204 = vunpack.c.h.b16 %v3894
    %v5205 = vunpack.c.l.b16 %v3895
    %v5206 = vunpack.c.h.b16 %v3895
    %v5207 = vunpack.c.l.b16 %v3896
    %v5208 = vunpack.c.h.b16 %v3896
    %v5209 = vunpack.c.l.b16 %v3897
    %v5210 = vunpack.c.h.b16 %v3897
    %v5211 = vunpack.c.l.b16 %v3898
    %v5212 = vunpack.c.h.b16 %v3898
    %v5213 = vunpack.c.l.b16 %v3899
    %v5214 = vunpack.c.h.b16 %v3899
    %v5215 = vunpack.c.l.b16 %v3900
    %v5216 = vunpack.c.h.b16 %v3900
    %v5217 = vunpack.c.l.b16 %v3901
    %v5218 = vunpack.c.h.b16 %v3901
    %v5219 = vunpack.c.l.b16 %v3902
    %v5220 = vunpack.c.h.b16 %v3902
    %v5221 = vunpack.c.l.b16 %v3903
    %v5222 = vunpack.c.h.b16 %v3903
    %v5223 = vunpack.c.l.b16 %v3904
    %v5224 = vunpack.c.h.b16 %v3904
    %v5225 = vunpack.c.l.b16 %v3905
    %v5226 = vunpack.c.h.b16 %v3905
    %v5227 = vunpack.c.l.b16 %v3906
    %v5228 = vunpack.c.h.b16 %v3906
    %v5229 = vunpack.c.l.b16 %v3907
    %v5230 = vunpack.c.h.b16 %v3907
    %v5231 = vunpack.c.l.b16 %v3908
    %v5232 = vunpack.c.h.b16 %v3908
    %v5233 = vunpack.c.l.b16 %v3909
    %v5234 = vunpack.c.h.b16 %v3909
    %v5235 = vunpack.c.l.b16 %v3910
    %v5236 = vunpack.c.h.b16 %v3910
    %v5237 = vunpack.c.l.b16 %v3911
    %v5238 = vunpack.c.h.b16 %v3911
    %v5239 = vunpack.c.l.b16 %v3912
    %v5240 = vunpack.c.h.b16 %v3912
    %v5241 = vunpack.c.l.b16 %v3913
    %v5242 = vunpack.c.h.b16 %v3913
    %v5243 = vunpack.c.l.b16 %v3914
    %v5244 = vunpack.c.h.b16 %v3914
    %v5245 = vunpack.c.l.b16 %v3915
    %v5246 = vunpack.c.h.b16 %v3915
    %v5247 = vunpack.c.l.b16 %v3916
    %v5248 = vunpack.c.h.b16 %v3916
    %v5249 = vunpack.c.l.b16 %v3917
    %v5250 = vunpack.c.h.b16 %v3917
    %v5251 = vunpack.c.l.b16 %v3918
    %v5252 = vunpack.c.h.b16 %v3918
    %v5253 = vunpack.c.l.b16 %v3919
    %v5254 = vunpack.c.h.b16 %v3919
    %v5255 = vunpack.c.l.b16 %v3920
    %v5256 = vunpack.c.h.b16 %v3920
    %v5257 = vunpack.c.l.b16 %v3921
    %v5258 = vunpack.c.h.b16 %v3921
    %v5259 = vunpack.c.l.b16 %v3922
    %v5260 = vunpack.c.h.b16 %v3922
    %v5261 = vunpack.c.l.b16 %v3923
    %v5262 = vunpack.c.h.b16 %v3923
    %v5263 = vunpack.c.l.b16 %v3924
    %v5264 = vunpack.c.h.b16 %v3924
    %v5265 = vunpack.c.l.b16 %v3925
    %v5266 = vunpack.c.h.b16 %v3925
    %v5267 = vunpack.c.l.b16 %v3926
    %v5268 = vunpack.c.h.b16 %v3926
    %v5269 = vunpack.c.l.b16 %v3927
    %v5270 = vunpack.c.h.b16 %v3927
    %v5271 = vunpack.c.l.b16 %v3928
    %v5272 = vunpack.c.h.b16 %v3928
    %v5273 = vunpack.c.l.b16 %v3929
    %v5274 = vunpack.c.h.b16 %v3929
    %v5275 = vunpack.c.l.b16 %v3930
    %v5276 = vunpack.c.h.b16 %v3930
    %v5277 = vunpack.c.l.b16 %v3931
    %v5278 = vunpack.c.h.b16 %v3931
    %v5279 = vunpack.c.l.b16 %v3932
    %v5280 = vunpack.c.h.b16 %v3932
    %v5281 = vunpack.c.l.b16 %v3933
    %v5282 = vunpack.c.h.b16 %v3933
    %v5283 = vunpack.c.l.b16 %v3934
    %v5284 = vunpack.c.h.b16 %v3934
    %v5285 = vunpack.c.l.b16 %v3935
    %v5286 = vunpack.c.h.b16 %v3935
    %v5287 = vunpack.c.l.b16 %v3936
    %v5288 = vunpack.c.h.b16 %v3936
    %v5289 = vunpack.c.l.b16 %v3937
    %v5290 = vunpack.c.h.b16 %v3937
    %v5291 = vunpack.c.l.b16 %v3938
    %v5292 = vunpack.c.h.b16 %v3938
    %v5293 = vunpack.c.l.b16 %v3939
    %v5294 = vunpack.c.h.b16 %v3939
    %v5295 = vunpack.c.l.b16 %v3940
    %v5296 = vunpack.c.h.b16 %v3940
    %v5297 = vunpack.c.l.b16 %v3941
    %v5298 = vunpack.c.h.b16 %v3941
    %v5299 = vunpack.c.l.b16 %v3942
    %v5300 = vunpack.c.h.b16 %v3942
    %v5301 = vunpack.c.l.b16 %v3943
    %v5302 = vunpack.c.h.b16 %v3943
    %v5303 = vunpack.c.l.b16 %v3944
    %v5304 = vunpack.c.h.b16 %v3944
    %v5305 = vunpack.c.l.b16 %v3945
    %v5306 = vunpack.c.h.b16 %v3945
    %v5307 = vunpack.c.l.b16 %v3946
    %v5308 = vunpack.c.h.b16 %v3946
    %v5309 = vunpack.c.l.b16 %v3947
    %v5310 = vunpack.c.h.b16 %v3947
    %v5311 = vunpack.c.l.b16 %v3948
    %v5312 = vunpack.c.h.b16 %v3948
    %v5313 = vunpack.c.l.b16 %v3949
    %v5314 = vunpack.c.h.b16 %v3949
    %v5315 = vunpack.c.l.b16 %v3950
    %v5316 = vunpack.c.h.b16 %v3950
    %v5317 = vunpack.c.l.b16 %v3951
    %v5318 = vunpack.c.h.b16 %v3951
    %v5319 = vunpack.c.l.b16 %v3952
    %v5320 = vunpack.c.h.b16 %v3952
    %v5321 = vunpack.c.l.b16 %v3953
    %v5322 = vunpack.c.h.b16 %v3953
    %v5323 = vunpack.c.l.b16 %v3954
    %v5324 = vunpack.c.h.b16 %v3954
    %v5325 = vunpack.c.l.b16 %v3955
    %v5326 = vunpack.c.h.b16 %v3955
    %v5327 = vunpack.c.l.b16 %v3956
    %v5328 = vunpack.c.h.b16 %v3956
    %v5329 = vunpack.c.l.b16 %v3957
    %v5330 = vunpack.c.h.b16 %v3957
    %v5331 = vunpack.c.l.b16 %v3958
    %v5332 = vunpack.c.h.b16 %v3958
    %v5333 = vunpack.c.l.b16 %v3959
    %v5334 = vunpack.c.h.b16 %v3959
    %v5335 = vunpack.c.l.b16 %v3960
    %v5336 = vunpack.c.h.b16 %v3960
    %v5337 = vunpack.c.l.b16 %v3961
    %v5338 = vunpack.c.h.b16 %v3961
    %v5339 = vunpack.c.l.b16 %v3962
    %v5340 = vunpack.c.h.b16 %v3962
    %v5341 = vunpack.c.l.b16 %v3963
    %v5342 = vunpack.c.h.b16 %v3963
    %v5343 = vunpack.c.l.b16 %v3964
    %v5344 = vunpack.c.h.b16 %v3964
    %v5345 = vunpack.c.l.b16 %v3965
    %v5346 = vunpack.c.h.b16 %v3965
    %v5347 = vunpack.c.l.b16 %v3966
    %v5348 = vunpack.c.h.b16 %v3966
    %v5349 = vunpack.c.l.b16 %v3967
    %v5350 = vunpack.c.h.b16 %v3967
    %v5351 = vunpack.c.l.b16 %v3968
    %v5352 = vunpack.c.h.b16 %v3968
    %v5353 = vunpack.c.l.b16 %v3969
    %v5354 = vunpack.c.h.b16 %v3969
    %v5355 = vunpack.c.l.b16 %v3970
    %v5356 = vunpack.c.h.b16 %v3970
    %v5357 = vunpack.c.l.b16 %v3971
    %v5358 = vunpack.c.h.b16 %v3971
    %v5359 = vunpack.c.l.b16 %v3972
    %v5360 = vunpack.c.h.b16 %v3972
    %v5361 = vunpack.c.l.b16 %v3973
    %v5362 = vunpack.c.h.b16 %v3973
    %v5363 = vunpack.c.l.b16 %v3974
    %v5364 = vunpack.c.h.b16 %v3974
    %v5365 = vunpack.c.l.b16 %v3975
    %v5366 = vunpack.c.h.b16 %v3975
    %v5367 = vunpack.c.l.b16 %v3976
    %v5368 = vunpack.c.h.b16 %v3976
    %v5369 = vunpack.c.l.b16 %v3977
    %v5370 = vunpack.c.h.b16 %v3977
    %v5371 = vunpack.c.l.b16 %v3978
    %v5372 = vunpack.c.h.b16 %v3978
    %v5373 = vunpack.c.l.b16 %v3979
    %v5374 = vunpack.c.h.b16 %v3979
    %v5375 = vunpack.c.l.b16 %v3980
    %v5376 = vunpack.c.h.b16 %v3980
    %v5377 = vunpack.c.l.b16 %v3981
    %v5378 = vunpack.c.h.b16 %v3981
    %v5379 = vunpack.c.l.b16 %v3982
    %v5380 = vunpack.c.h.b16 %v3982
    %v5381 = vunpack.c.l.b16 %v3983
    %v5382 = vunpack.c.h.b16 %v3983
    %v5383 = vunpack.c.l.b16 %v3984
    %v5384 = vunpack.c.h.b16 %v3984
    %v5385 = vunpack.c.l.b16 %v3985
    %v5386 = vunpack.c.h.b16 %v3985
    %v5387 = vunpack.c.l.b16 %v3986
    %v5388 = vunpack.c.h.b16 %v3986
    %v5389 = vunpack.c.l.b16 %v3987
    %v5390 = vunpack.c.h.b16 %v3987
    %v5391 = vunpack.c.l.b16 %v3988
    %v5392 = vunpack.c.h.b16 %v3988
    %v5393 = vunpack.c.l.b16 %v3989
    %v5394 = vunpack.c.h.b16 %v3989
    %v5395 = vunpack.c.l.b16 %v3990
    %v5396 = vunpack.c.h.b16 %v3990
    %v5397 = vunpack.c.l.b16 %v3991
    %v5398 = vunpack.c.h.b16 %v3991
    %v5399 = vunpack.c.l.b16 %v3992
    %v5400 = vunpack.c.h.b16 %v3992
    %v5401 = vunpack.c.l.b16 %v3993
    %v5402 = vunpack.c.h.b16 %v3993
    %v5403 = vunpack.c.l.b16 %v3994
    %v5404 = vunpack.c.h.b16 %v3994
    %v5405 = vunpack.c.l.b16 %v3995
    %v5406 = vunpack.c.h.b16 %v3995
    %v5407 = vunpack.c.l.b16 %v3996
    %v5408 = vunpack.c.h.b16 %v3996
    %v5409 = vunpack.c.l.b16 %v3997
    %v5410 = vunpack.c.h.b16 %v3997
    %v5411 = vunpack.c.l.b16 %v3998
    %v5412 = vunpack.c.h.b16 %v3998
    %v5413 = vunpack.c.l.b16 %v3999
    %v5414 = vunpack.c.h.b16 %v3999
    %v5415 = vunpack.c.l.b16 %v4000
    %v5416 = vunpack.c.h.b16 %v4000
    %v5417 = vunpack.c.l.b16 %v4001
    %v5418 = vunpack.c.h.b16 %v4001
    %v5419 = vunpack.c.l.b16 %v4002
    %v5420 = vunpack.c.h.b16 %v4002
    %v5421 = vunpack.c.l.b16 %v4003
    %v5422 = vunpack.c.h.b16 %v4003
    %v5423 = vunpack.c.l.b16 %v4004
    %v5424 = vunpack.c.h.b16 %v4004
    %v5425 = vunpack.c.l.b16 %v4005
    %v5426 = vunpack.c.h.b16 %v4005
    %v5427 = vunpack.c.l.b16 %v4006
    %v5428 = vunpack.c.h.b16 %v4006
    %v5429 = vunpack.c.l.b16 %v4007
    %v5430 = vunpack.c.h.b16 %v4007
    %v5431 = vunpack.c.l.b16 %v4008
    %v5432 = vunpack.c.h.b16 %v4008
    %v5433 = vunpack.c.l.b16 %v4009
    %v5434 = vunpack.c.h.b16 %v4009
    %v5435 = vunpack.c.l.b16 %v4010
    %v5436 = vunpack.c.h.b16 %v4010
    %v5437 = vunpack.c.l.b16 %v4011
    %v5438 = vunpack.c.h.b16 %v4011
    %v5439 = vunpack.c.l.b16 %v4012
    %v5440 = vunpack.c.h.b16 %v4012
    %v5441 = vunpack.c.l.b16 %v4013
    %v5442 = vunpack.c.h.b16 %v4013
    %v5443 = vunpack.c.l.b16 %v4014
    %v5444 = vunpack.c.h.b16 %v4014
    %v5445 = vunpack.c.l.b16 %v4015
    %v5446 = vunpack.c.h.b16 %v4015
    %v5447 = vunpack.c.l.b16 %v4016
    %v5448 = vunpack.c.h.b16 %v4016
    %v5449 = vunpack.c.l.b16 %v4017
    %v5450 = vunpack.c.h.b16 %v4017
    %v5451 = vunpack.c.l.b16 %v4018
    %v5452 = vunpack.c.h.b16 %v4018
    %v5453 = vunpack.c.l.b16 %v4019
    %v5454 = vunpack.c.h.b16 %v4019
    %v5455 = vunpack.c.l.b16 %v4020
    %v5456 = vunpack.c.h.b16 %v4020
    %v5457 = vunpack.c.l.b16 %v4021
    %v5458 = vunpack.c.h.b16 %v4021
    %v5459 = vunpack.c.l.b16 %v4022
    %v5460 = vunpack.c.h.b16 %v4022
    %v5461 = vunpack.c.l.b16 %v4023
    %v5462 = vunpack.c.h.b16 %v4023
    %v5463 = vunpack.c.l.b16 %v4024
    %v5464 = vunpack.c.h.b16 %v4024
    %v5465 = vunpack.c.l.b16 %v4025
    %v5466 = vunpack.c.h.b16 %v4025
    %v5467 = vunpack.c.l.b16 %v4026
    %v5468 = vunpack.c.h.b16 %v4026
    %v5469 = vunpack.c.l.b16 %v4027
    %v5470 = vunpack.c.h.b16 %v4027
    %v5471 = vunpack.c.l.b16 %v4028
    %v5472 = vunpack.c.h.b16 %v4028
    %v5473 = vunpack.c.l.b16 %v4029
    %v5474 = vunpack.c.h.b16 %v4029
    %v5475 = vunpack.c.l.b16 %v4030
    %v5476 = vunpack.c.h.b16 %v4030
    %v5477 = vunpack.c.l.b16 %v4031
    %v5478 = vunpack.c.h.b16 %v4031
    %v5479 = vunpack.c.l.b16 %v4032
    %v5480 = vunpack.c.h.b16 %v4032
    %v5481 = vunpack.c.l.b16 %v4033
    %v5482 = vunpack.c.h.b16 %v4033
    %v5483 = vunpack.c.l.b16 %v4034
    %v5484 = vunpack.c.h.b16 %v4034
    %v5485 = vunpack.c.l.b16 %v4035
    %v5486 = vunpack.c.h.b16 %v4035
    %v5487 = vunpack.c.l.b16 %v4036
    %v5488 = vunpack.c.h.b16 %v4036
    %v5489 = vunpack.c.l.b16 %v4037
    %v5490 = vunpack.c.h.b16 %v4037
    %v5491 = vunpack.c.l.b16 %v4038
    %v5492 = vunpack.c.h.b16 %v4038
    %v5493 = vunpack.c.l.b16 %v4039
    %v5494 = vunpack.c.h.b16 %v4039
    %v5495 = vunpack.c.l.b16 %v4040
    %v5496 = vunpack.c.h.b16 %v4040
    %v5497 = vunpack.c.l.b16 %v4041
    %v5498 = vunpack.c.h.b16 %v4041
    %v5499 = vunpack.c.l.b16 %v4042
    %v5500 = vunpack.c.h.b16 %v4042
    %v5501 = vunpack.c.l.b16 %v4043
    %v5502 = vunpack.c.h.b16 %v4043
    %v5503 = vunpack.c.l.b16 %v4044
    %v5504 = vunpack.c.h.b16 %v4044
    %v5505 = vunpack.c.l.b16 %v4045
    %v5506 = vunpack.c.h.b16 %v4045
    %v5507 = vunpack.c.l.b16 %v4046
    %v5508 = vunpack.c.h.b16 %v4046
    %v5509 = vunpack.c.l.b16 %v4047
    %v5510 = vunpack.c.h.b16 %v4047
    %v5511 = vunpack.c.l.b16 %v4048
    %v5512 = vunpack.c.h.b16 %v4048
    %v5513 = vunpack.c.l.b16 %v4049
    %v5514 = vunpack.c.h.b16 %v4049
    %v5515 = vunpack.c.l.b16 %v4050
    %v5516 = vunpack.c.h.b16 %v4050
    %v5517 = vunpack.c.l.b16 %v4051
    %v5518 = vunpack.c.h.b16 %v4051
    %v5519 = vunpack.c.l.b16 %v4052
    %v5520 = vunpack.c.h.b16 %v4052
    %v5521 = vunpack.c.l.b16 %v4053
    %v5522 = vunpack.c.h.b16 %v4053
    %v5523 = vunpack.c.l.b16 %v4054
    %v5524 = vunpack.c.h.b16 %v4054
    %v5525 = vunpack.c.l.b16 %v4055
    %v5526 = vunpack.c.h.b16 %v4055
    %v5527 = vunpack.c.l.b16 %v4056
    %v5528 = vunpack.c.h.b16 %v4056
    %v5529 = vunpack.c.l.b16 %v4057
    %v5530 = vunpack.c.h.b16 %v4057
    %v5531 = vunpack.c.l.b16 %v4058
    %v5532 = vunpack.c.h.b16 %v4058
    %v5533 = vunpack.c.l.b16 %v4059
    %v5534 = vunpack.c.h.b16 %v4059
    %v5535 = vunpack.c.l.b16 %v4060
    %v5536 = vunpack.c.h.b16 %v4060
    %v5537 = vunpack.c.l.b16 %v4061
    %v5538 = vunpack.c.h.b16 %v4061
    %v5539 = vunpack.c.l.b16 %v4062
    %v5540 = vunpack.c.h.b16 %v4062
    %v5541 = vunpack.c.l.b16 %v4063
    %v5542 = vunpack.c.h.b16 %v4063
    %v5543 = vunpack.c.l.b16 %v4064
    %v5544 = vunpack.c.h.b16 %v4064
    %v5545 = vunpack.c.l.b16 %v4065
    %v5546 = vunpack.c.h.b16 %v4065
    %v5547 = vunpack.c.l.b16 %v4066
    %v5548 = vunpack.c.h.b16 %v4066
    %v5549 = vunpack.c.l.b16 %v4067
    %v5550 = vunpack.c.h.b16 %v4067
    %v5551 = vunpack.c.l.b16 %v4068
    %v5552 = vunpack.c.h.b16 %v4068
    %v5553 = vunpack.c.l.b16 %v4069
    %v5554 = vunpack.c.h.b16 %v4069
    %v5555 = vunpack.c.l.b16 %v4070
    %v5556 = vunpack.c.h.b16 %v4070
    %v5557 = vunpack.c.l.b16 %v4071
    %v5558 = vunpack.c.h.b16 %v4071
    %v5559 = vunpack.c.l.b16 %v4072
    %v5560 = vunpack.c.h.b16 %v4072
    %v5561 = vunpack.c.l.b16 %v4073
    %v5562 = vunpack.c.h.b16 %v4073
    %v5563 = vunpack.c.l.b16 %v4074
    %v5564 = vunpack.c.h.b16 %v4074
    %v5565 = vunpack.c.l.b16 %v4075
    %v5566 = vunpack.c.h.b16 %v4075
    %v5567 = vunpack.c.l.b16 %v4076
    %v5568 = vunpack.c.h.b16 %v4076
    %v5569 = vunpack.c.l.b16 %v4077
    %v5570 = vunpack.c.h.b16 %v4077
    %v5571 = vunpack.c.l.b16 %v4078
    %v5572 = vunpack.c.h.b16 %v4078
    %v5573 = vunpack.c.l.b16 %v4079
    %v5574 = vunpack.c.h.b16 %v4079
    %v5575 = vunpack.c.l.b16 %v4080
    %v5576 = vunpack.c.h.b16 %v4080
    %v5577 = vunpack.c.l.b16 %v4081
    %v5578 = vunpack.c.h.b16 %v4081
    %v5579 = vunpack.c.l.b16 %v4082
    %v5580 = vunpack.c.h.b16 %v4082
    %v5581 = vunpack.c.l.b16 %v4083
    %v5582 = vunpack.c.h.b16 %v4083
    %v5583 = vunpack.c.l.b16 %v4084
    %v5584 = vunpack.c.h.b16 %v4084
    %v5585 = vunpack.c.l.b16 %v4085
    %v5586 = vunpack.c.h.b16 %v4085
    %v5587 = vunpack.c.l.b16 %v4086
    %v5588 = vunpack.c.h.b16 %v4086
    %v5589 = vunpack.c.l.b16 %v4087
    %v5590 = vunpack.c.h.b16 %v4087
    %v5591 = vunpack.c.l.b16 %v4088
    %v5592 = vunpack.c.h.b16 %v4088
    %v5593 = vunpack.c.l.b16 %v4089
    %v5594 = vunpack.c.h.b16 %v4089
    %v5595 = vunpack.c.l.b16 %v4090
    %v5596 = vunpack.c.h.b16 %v4090
    %v5597 = vunpack.c.l.b16 %v4091
    %v5598 = vunpack.c.h.b16 %v4091
    %v5599 = vunpack.c.l.b16 %v4092
    %v5600 = vunpack.c.h.b16 %v4092
    %v5601 = vunpack.c.l.b16 %v4093
    %v5602 = vunpack.c.h.b16 %v4093
    %v5603 = vunpack.c.l.b16 %v4094
    %v5604 = vunpack.c.h.b16 %v4094
    %v5605 = vunpack.c.l.b16 %v4095
    %v5606 = vunpack.c.h.b16 %v4095
    %v5607 = vunpack.c.l.b16 %v4096
    %v5608 = vunpack.c.h.b16 %v4096
    %v5609 = vunpack.c.l.b16 %v4097
    %v5610 = vunpack.c.h.b16 %v4097
    %v5611 = vunpack.c.l.b16 %v4098
    %v5612 = vunpack.c.h.b16 %v4098
    %v5613 = vunpack.c.l.b16 %v4099
    %v5614 = vunpack.c.h.b16 %v4099
    %v5615 = vunpack.c.l.b16 %v4100
    %v5616 = vunpack.c.h.b16 %v4100
    %v5617 = vunpack.c.l.b16 %v4101
    %v5618 = vunpack.c.h.b16 %v4101
    %v5619 = vunpack.c.l.b16 %v4102
    %v5620 = vunpack.c.h.b16 %v4102
    %v5621 = vunpack.c.l.b16 %v4103
    %v5622 = vunpack.c.h.b16 %v4103
    %v5623 = vunpack.c.l.b16 %v4104
    %v5624 = vunpack.c.h.b16 %v4104
    %v5625 = vunpack.c.l.b16 %v4105
    %v5626 = vunpack.c.h.b16 %v4105
    %v5627 = vunpack.c.l.b16 %v4106
    %v5628 = vunpack.c.h.b16 %v4106
    %v5629 = vunpack.c.l.b16 %v4107
    %v5630 = vunpack.c.h.b16 %v4107
    %v5631 = vunpack.c.l.b16 %v4108
    %v5632 = vunpack.c.h.b16 %v4108
    %v5633 = vunpack.c.l.b16 %v4109
    %v5634 = vunpack.c.h.b16 %v4109
    %v5635 = vunpack.c.l.b16 %v4110
    %v5636 = vunpack.c.h.b16 %v4110
    %v5637 = vunpack.c.l.b16 %v4111
    %v5638 = vunpack.c.h.b16 %v4111
    %v5639 = vunpack.c.l.b16 %v4112
    %v5640 = vunpack.c.h.b16 %v4112
    %v5641 = vunpack.c.l.b16 %v4113
    %v5642 = vunpack.c.h.b16 %v4113
    %v5643 = vunpack.c.l.b16 %v4114
    %v5644 = vunpack.c.h.b16 %v4114
    %v5645 = vunpack.c.l.b16 %v4115
    %v5646 = vunpack.c.h.b16 %v4115
    %v5647 = vunpack.c.l.b16 %v4116
    %v5648 = vunpack.c.h.b16 %v4116
    %v5649 = vunpack.c.l.b16 %v4117
    %v5650 = vunpack.c.h.b16 %v4117
    %v5651 = vunpack.c.l.b16 %v4118
    %v5652 = vunpack.c.h.b16 %v4118
    %v5653 = vunpack.c.l.b16 %v4119
    %v5654 = vunpack.c.h.b16 %v4119
    %v5655 = vunpack.c.l.b16 %v4120
    %v5656 = vunpack.c.h.b16 %v4120
    %v5657 = vunpack.c.l.b16 %v4121
    %v5658 = vunpack.c.h.b16 %v4121
    %v5659 = vunpack.c.l.b16 %v4122
    %v5660 = vunpack.c.h.b16 %v4122
    %v5661 = vunpack.c.l.b16 %v4123
    %v5662 = vunpack.c.h.b16 %v4123
    %v5663 = vunpack.c.l.b16 %v4124
    %v5664 = vunpack.c.h.b16 %v4124
    %v5665 = vunpack.c.l.b16 %v4125
    %v5666 = vunpack.c.h.b16 %v4125
    %v5667 = vunpack.c.l.b16 %v4126
    %v5668 = vunpack.c.h.b16 %v4126
    %v5669 = vunpack.c.l.b16 %v4127
    %v5670 = vunpack.c.h.b16 %v4127
    %v5671 = vunpack.c.l.b16 %v4128
    %v5672 = vunpack.c.h.b16 %v4128
    %v5673 = vunpack.c.l.b16 %v4129
    %v5674 = vunpack.c.h.b16 %v4129
    %v5675 = vunpack.c.l.b16 %v4130
    %v5676 = vunpack.c.h.b16 %v4130
    %v5677 = vunpack.c.l.b16 %v4131
    %v5678 = vunpack.c.h.b16 %v4131
    %v5679 = vunpack.c.l.b16 %v4132
    %v5680 = vunpack.c.h.b16 %v4132
    %v5681 = vunpack.c.l.b16 %v4133
    %v5682 = vunpack.c.h.b16 %v4133
    %v5683 = vunpack.c.l.b16 %v4134
    %v5684 = vunpack.c.h.b16 %v4134
    %v5685 = vunpack.c.l.b16 %v4135
    %v5686 = vunpack.c.h.b16 %v4135
    %v5687 = vunpack.c.l.b16 %v4136
    %v5688 = vunpack.c.h.b16 %v4136
    %v5689 = vunpack.c.l.b16 %v4137
    %v5690 = vunpack.c.h.b16 %v4137
    %v5691 = vunpack.c.l.b16 %v4138
    %v5692 = vunpack.c.h.b16 %v4138
    %v5693 = vunpack.c.l.b16 %v4139
    %v5694 = vunpack.c.h.b16 %v4139
    %v5695 = vunpack.c.l.b16 %v4140
    %v5696 = vunpack.c.h.b16 %v4140
    %v5697 = vunpack.c.l.b16 %v4141
    %v5698 = vunpack.c.h.b16 %v4141
    %v5699 = vunpack.c.l.b16 %v4142
    %v5700 = vunpack.c.h.b16 %v4142
    %v5701 = vunpack.c.l.b16 %v4143
    %v5702 = vunpack.c.h.b16 %v4143
    %v5703 = vunpack.c.l.b16 %v4144
    %v5704 = vunpack.c.h.b16 %v4144
    %v5705 = vunpack.c.l.b16 %v4145
    %v5706 = vunpack.c.h.b16 %v4145
    %v5707 = vunpack.c.l.b16 %v4146
    %v5708 = vunpack.c.h.b16 %v4146
    %v5709 = vunpack.c.l.b16 %v4147
    %v5710 = vunpack.c.h.b16 %v4147
    %v5711 = vunpack.c.l.b16 %v4148
    %v5712 = vunpack.c.h.b16 %v4148
    %v5713 = vunpack.c.l.b16 %v4149
    %v5714 = vunpack.c.h.b16 %v4149
    %v5715 = vunpack.c.l.b16 %v4150
    %v5716 = vunpack.c.h.b16 %v4150
    %v5717 = vunpack.c.l.b16 %v4151
    %v5718 = vunpack.c.h.b16 %v4151
    %v5719 = vunpack.c.l.b16 %v4152
    %v5720 = vunpack.c.h.b16 %v4152
    %v5721 = vunpack.c.l.b16 %v4153
    %v5722 = vunpack.c.h.b16 %v4153
    %v5723 = vunpack.c.l.b16 %v4154
    %v5724 = vunpack.c.h.b16 %v4154
    %v5725 = vunpack.c.l.b16 %v4155
    %v5726 = vunpack.c.h.b16 %v4155
    %v5727 = vunpack.c.l.b16 %v4156
    %v5728 = vunpack.c.h.b16 %v4156
    %v5729 = vunpack.c.l.b16 %v4157
    %v5730 = vunpack.c.h.b16 %v4157
    %v5731 = vunpack.c.l.b16 %v4158
    %v5732 = vunpack.c.h.b16 %v4158
    %v5733 = vunpack.c.l.b16 %v4159
    %v5734 = vunpack.c.h.b16 %v4159
    %v5735 = vunpack.c.l.b16 %v4160
    %v5736 = vunpack.c.h.b16 %v4160
    %v5737 = vunpack.c.l.b16 %v4161
    %v5738 = vunpack.c.h.b16 %v4161
    %v5739 = vunpack.c.l.b16 %v4162
    %v5740 = vunpack.c.h.b16 %v4162
    %v5741 = vpack.c.b16 %v4725, %v4717
    %v5742 = vpack.c.b16 %v4726, %v4718
    %v5743 = vpack.c.b16 %v4727, %v4719
    %v5744 = vpack.c.b16 %v4728, %v4720
    %v5745 = vpack.c.b16 %v4729, %v4721
    %v5746 = vpack.c.b16 %v4730, %v4722
    %v5747 = vpack.c.b16 %v4731, %v4723
    %v5748 = vpack.c.b16 %v4732, %v4724
    %v5749 = vpack.c.b16 %v4741, %v4733
    %v5750 = vpack.c.b16 %v4742, %v4734
    %v5751 = vpack.c.b16 %v4743, %v4735
    %v5752 = vpack.c.b16 %v4744, %v4736
    %v5753 = vpack.c.b16 %v4745, %v4737
    %v5754 = vpack.c.b16 %v4746, %v4738
    %v5755 = vpack.c.b16 %v4747, %v4739
    %v5756 = vpack.c.b16 %v4748, %v4740
    %v5757 = vpack.c.b16 %v4757, %v4749
    %v5758 = vpack.c.b16 %v4758, %v4750
    %v5759 = vpack.c.b16 %v4759, %v4751
    %v5760 = vpack.c.b16 %v4760, %v4752
    %v5761 = vpack.c.b16 %v4761, %v4753
    %v5762 = vpack.c.b16 %v4762, %v4754
    %v5763 = vpack.c.b16 %v4763, %v4755
    %v5764 = vpack.c.b16 %v4764, %v4756
    %v5765 = vpack.c.b16 %v4773, %v4765
    %v5766 = vpack.c.b16 %v4774, %v4766
    %v5767 = vpack.c.b16 %v4775, %v4767
    %v5768 = vpack.c.b16 %v4776, %v4768
    %v5769 = vpack.c.b16 %v4777, %v4769
    %v5770 = vpack.c.b16 %v4778, %v4770
    %v5771 = vpack.c.b16 %v4779, %v4771
    %v5772 = vpack.c.b16 %v4780, %v4772
    %v5773 = vpack.c.b16 %v4789, %v4781
    %v5774 = vpack.c.b16 %v4790, %v4782
    %v5775 = vpack.c.b16 %v4791, %v4783
    %v5776 = vpack.c.b16 %v4792, %v4784
    %v5777 = vpack.c.b16 %v4793, %v4785
    %v5778 = vpack.c.b16 %v4794, %v4786
    %v5779 = vpack.c.b16 %v4795, %v4787
    %v5780 = vpack.c.b16 %v4796, %v4788
    %v5781 = vpack.c.b16 %v4805, %v4797
    %v5782 = vpack.c.b16 %v4806, %v4798
    %v5783 = vpack.c.b16 %v4807, %v4799
    %v5784 = vpack.c.b16 %v4808, %v4800
    %v5785 = vpack.c.b16 %v4809, %v4801
    %v5786 = vpack.c.b16 %v4810, %v4802
    %v5787 = vpack.c.b16 %v4811, %v4803
    %v5788 = vpack.c.b16 %v4812, %v4804
    %v5789 = vpack.c.b16 %v4821, %v4813
    %v5790 = vpack.c.b16 %v4822, %v4814
    %v5791 = vpack.c.b16 %v4823, %v4815
    %v5792 = vpack.c.b16 %v4824, %v4816
    %v5793 = vpack.c.b16 %v4825, %v4817
    %v5794 = vpack.c.b16 %v4826, %v4818
    %v5795 = vpack.c.b16 %v4827, %v4819
    %v5796 = vpack.c.b16 %v4828, %v4820
    %v5797 = vpack.c.b16 %v4837, %v4829
    %v5798 = vpack.c.b16 %v4838, %v4830
    %v5799 = vpack.c.b16 %v4839, %v4831
    %v5800 = vpack.c.b16 %v4840, %v4832
    %v5801 = vpack.c.b16 %v4841, %v4833
    %v5802 = vpack.c.b16 %v4842, %v4834
    %v5803 = vpack.c.b16 %v4843, %v4835
    %v5804 = vpack.c.b16 %v4844, %v4836
    %v5805 = vpack.c.b16 %v4853, %v4845
    %v5806 = vpack.c.b16 %v4854, %v4846
    %v5807 = vpack.c.b16 %v4855, %v4847
    %v5808 = vpack.c.b16 %v4856, %v4848
    %v5809 = vpack.c.b16 %v4857, %v4849
    %v5810 = vpack.c.b16 %v4858, %v4850
    %v5811 = vpack.c.b16 %v4859, %v4851
    %v5812 = vpack.c.b16 %v4860, %v4852
    %v5813 = vpack.c.b16 %v4869, %v4861
    %v5814 = vpack.c.b16 %v4870, %v4862
    %v5815 = vpack.c.b16 %v4871, %v4863
    %v5816 = vpack.c.b16 %v4872, %v4864
    %v5817 = vpack.c.b16 %v4873, %v4865
    %v5818 = vpack.c.b16 %v4874, %v4866
    %v5819 = vpack.c.b16 %v4875, %v4867
    %v5820 = vpack.c.b16 %v4876, %v4868
    %v5821 = vpack.c.b16 %v4885, %v4877
    %v5822 = vpack.c.b16 %v4886, %v4878
    %v5823 = vpack.c.b16 %v4887, %v4879
    %v5824 = vpack.c.b16 %v4888, %v4880
    %v5825 = vpack.c.b16 %v4889, %v4881
    %v5826 = vpack.c.b16 %v4890, %v4882
    %v5827 = vpack.c.b16 %v4891, %v4883
    %v5828 = vpack.c.b16 %v4892, %v4884
    %v5829 = vpack.c.b16 %v4901, %v4893
    %v5830 = vpack.c.b16 %v4902, %v4894
    %v5831 = vpack.c.b16 %v4903, %v4895
    %v5832 = vpack.c.b16 %v4904, %v4896
    %v5833 = vpack.c.b16 %v4905, %v4897
    %v5834 = vpack.c.b16 %v4906, %v4898
    %v5835 = vpack.c.b16 %v4907, %v4899
    %v5836 = vpack.c.b16 %v4908, %v4900
    %v5837 = vpack.c.b16 %v4917, %v4909
    %v5838 = vpack.c.b16 %v4918, %v4910
    %v5839 = vpack.c.b16 %v4919, %v4911
    %v5840 = vpack.c.b16 %v4920, %v4912
    %v5841 = vpack.c.b16 %v4921, %v4913
    %v5842 = vpack.c.b16 %v4922, %v4914
    %v5843 = vpack.c.b16 %v4923, %v4915
    %v5844 = vpack.c.b16 %v4924, %v4916
    %v5845 = vpack.c.b16 %v4933, %v4925
    %v5846 = vpack.c.b16 %v4934, %v4926
    %v5847 = vpack.c.b16 %v4935, %v4927
    %v5848 = vpack.c.b16 %v4936, %v4928
    %v5849 = vpack.c.b16 %v4937, %v4929
    %v5850 = vpack.c.b16 %v4938, %v4930
    %v5851 = vpack.c.b16 %v4939, %v4931
    %v5852 = vpack.c.b16 %v4940, %v4932
    %v5853 = vpack.c.b16 %v4949, %v4941
    %v5854 = vpack.c.b16 %v4950, %v4942
    %v5855 = vpack.c.b16 %v4951, %v4943
    %v5856 = vpack.c.b16 %v4952, %v4944
    %v5857 = vpack.c.b16 %v4953, %v4945
    %v5858 = vpack.c.b16 %v4954, %v4946
    %v5859 = vpack.c.b16 %v4955, %v4947
    %v5860 = vpack.c.b16 %v4956, %v4948
    %v5861 = vpack.c.b16 %v4965, %v4957
    %v5862 = vpack.c.b16 %v4966, %v4958
    %v5863 = vpack.c.b16 %v4967, %v4959
    %v5864 = vpack.c.b16 %v4968, %v4960
    %v5865 = vpack.c.b16 %v4969, %v4961
    %v5866 = vpack.c.b16 %v4970, %v4962
    %v5867 = vpack.c.b16 %v4971, %v4963
    %v5868 = vpack.c.b16 %v4972, %v4964
    %v5869 = vpack.c.b16 %v4981, %v4973
    %v5870 = vpack.c.b16 %v4982, %v4974
    %v5871 = vpack.c.b16 %v4983, %v4975
    %v5872 = vpack.c.b16 %v4984, %v4976
    %v5873 = vpack.c.b16 %v4985, %v4977
    %v5874 = vpack.c.b16 %v4986, %v4978
    %v5875 = vpack.c.b16 %v4987, %v4979
    %v5876 = vpack.c.b16 %v4988, %v4980
    %v5877 = vpack.c.b16 %v4997, %v4989
    %v5878 = vpack.c.b16 %v4998, %v4990
    %v5879 = vpack.c.b16 %v4999, %v4991
    %v5880 = vpack.c.b16 %v5000, %v4992
    %v5881 = vpack.c.b16 %v5001, %v4993
    %v5882 = vpack.c.b16 %v5002, %v4994
    %v5883 = vpack.c.b16 %v5003, %v4995
    %v5884 = vpack.c.b16 %v5004, %v4996
    %v5885 = vpack.c.b16 %v5013, %v5005
    %v5886 = vpack.c.b16 %v5014, %v5006
    %v5887 = vpack.c.b16 %v5015, %v5007
    %v5888 = vpack.c.b16 %v5016, %v5008
    %v5889 = vpack.c.b16 %v5017, %v5009
    %v5890 = vpack.c.b16 %v5018, %v5010
    %v5891 = vpack.c.b16 %v5019, %v5011
    %v5892 = vpack.c.b16 %v5020, %v5012
    %v5893 = vpack.c.b16 %v5029, %v5021
    %v5894 = vpack.c.b16 %v5030, %v5022
    %v5895 = vpack.c.b16 %v5031, %v5023
    %v5896 = vpack.c.b16 %v5032, %v5024
    %v5897 = vpack.c.b16 %v5033, %v5025
    %v5898 = vpack.c.b16 %v5034, %v5026
    %v5899 = vpack.c.b16 %v5035, %v5027
    %v5900 = vpack.c.b16 %v5036, %v5028
    %v5901 = vpack.c.b16 %v5045, %v5037
    %v5902 = vpack.c.b16 %v5046, %v5038
    %v5903 = vpack.c.b16 %v5047, %v5039
    %v5904 = vpack.c.b16 %v5048, %v5040
    %v5905 = vpack.c.b16 %v5049, %v5041
    %v5906 = vpack.c.b16 %v5050, %v5042
    %v5907 = vpack.c.b16 %v5051, %v5043
    %v5908 = vpack.c.b16 %v5052, %v5044
    %v5909 = vpack.c.b16 %v5061, %v5053
    %v5910 = vpack.c.b16 %v5062, %v5054
    %v5911 = vpack.c.b16 %v5063, %v5055
    %v5912 = vpack.c.b16 %v5064, %v5056
    %v5913 = vpack.c.b16 %v5065, %v5057
    %v5914 = vpack.c.b16 %v5066, %v5058
    %v5915 = vpack.c.b16 %v5067, %v5059
    %v5916 = vpack.c.b16 %v5068, %v5060
    %v5917 = vpack.c.b16 %v5077, %v5069
    %v5918 = vpack.c.b16 %v5078, %v5070
    %v5919 = vpack.c.b16 %v5079, %v5071
    %v5920 = vpack.c.b16 %v5080, %v5072
    %v5921 = vpack.c.b16 %v5081, %v5073
    %v5922 = vpack.c.b16 %v5082, %v5074
    %v5923 = vpack.c.b16 %v5083, %v5075
    %v5924 = vpack.c.b16 %v5084, %v5076
    %v5925 = vpack.c.b16 %v5093, %v5085
    %v5926 = vpack.c.b16 %v5094, %v5086
    %v5927 = vpack.c.b16 %v5095, %v5087
    %v5928 = vpack.c.b16 %v5096, %v5088
    %v5929 = vpack.c.b16 %v5097, %v5089
    %v5930 = vpack.c.b16 %v5098, %v5090
    %v5931 = vpack.c.b16 %v5099, %v5091
    %v5932 = vpack.c.b16 %v5100, %v5092
    %v5933 = vpack.c.b16 %v5109, %v5101
    %v5934 = vpack.c.b16 %v5110, %v5102
    %v5935 = vpack.c.b16 %v5111, %v5103
    %v5936 = vpack.c.b16 %v5112, %v5104
    %v5937 = vpack.c.b16 %v5113, %v5105
    %v5938 = vpack.c.b16 %v5114, %v5106
    %v5939 = vpack.c.b16 %v5115, %v5107
    %v5940 = vpack.c.b16 %v5116, %v5108
    %v5941 = vpack.c.b16 %v5125, %v5117
    %v5942 = vpack.c.b16 %v5126, %v5118
    %v5943 = vpack.c.b16 %v5127, %v5119
    %v5944 = vpack.c.b16 %v5128, %v5120
    %v5945 = vpack.c.b16 %v5129, %v5121
    %v5946 = vpack.c.b16 %v5130, %v5122
    %v5947 = vpack.c.b16 %v5131, %v5123
    %v5948 = vpack.c.b16 %v5132, %v5124
    %v5949 = vpack.c.b16 %v5141, %v5133
    %v5950 = vpack.c.b16 %v5142, %v5134
    %v5951 = vpack.c.b16 %v5143, %v5135
    %v5952 = vpack.c.b16 %v5144, %v5136
    %v5953 = vpack.c.b16 %v5145, %v5137
    %v5954 = vpack.c.b16 %v5146, %v5138
    %v5955 = vpack.c.b16 %v5147, %v5139
    %v5956 = vpack.c.b16 %v5148, %v5140
    %v5957 = vpack.c.b16 %v5157, %v5149
    %v5958 = vpack.c.b16 %v5158, %v5150
    %v5959 = vpack.c.b16 %v5159, %v5151
    %v5960 = vpack.c.b16 %v5160, %v5152
    %v5961 = vpack.c.b16 %v5161, %v5153
    %v5962 = vpack.c.b16 %v5162, %v5154
    %v5963 = vpack.c.b16 %v5163, %v5155
    %v5964 = vpack.c.b16 %v5164, %v5156
    %v5965 = vpack.c.b16 %v5173, %v5165
    %v5966 = vpack.c.b16 %v5174, %v5166
    %v5967 = vpack.c.b16 %v5175, %v5167
    %v5968 = vpack.c.b16 %v5176, %v5168
    %v5969 = vpack.c.b16 %v5177, %v5169
    %v5970 = vpack.c.b16 %v5178, %v5170
    %v5971 = vpack.c.b16 %v5179, %v5171
    %v5972 = vpack.c.b16 %v5180, %v5172
    %v5973 = vpack.c.b16 %v5189, %v5181
    %v5974 = vpack.c.b16 %v5190, %v5182
    %v5975 = vpack.c.b16 %v5191, %v5183
    %v5976 = vpack.c.b16 %v5192, %v5184
    %v5977 = vpack.c.b16 %v5193, %v5185
    %v5978 = vpack.c.b16 %v5194, %v5186
    %v5979 = vpack.c.b16 %v5195, %v5187
    %v5980 = vpack.c.b16 %v5196, %v5188
    %v5981 = vpack.c.b16 %v5205, %v5197
    %v5982 = vpack.c.b16 %v5206, %v5198
    %v5983 = vpack.c.b16 %v5207, %v5199
    %v5984 = vpack.c.b16 %v5208, %v5200
    %v5985 = vpack.c.b16 %v5209, %v5201
    %v5986 = vpack.c.b16 %v5210, %v5202
    %v5987 = vpack.c.b16 %v5211, %v5203
    %v5988 = vpack.c.b16 %v5212, %v5204
    %v5989 = vpack.c.b16 %v5221, %v5213
    %v5990 = vpack.c.b16 %v5222, %v5214
    %v5991 = vpack.c.b16 %v5223, %v5215
    %v5992 = vpack.c.b16 %v5224, %v5216
    %v5993 = vpack.c.b16 %v5225, %v5217
    %v5994 = vpack.c.b16 %v5226, %v5218
    %v5995 = vpack.c.b16 %v5227, %v5219
    %v5996 = vpack.c.b16 %v5228, %v5220
    %v5997 = vpack.c.b16 %v5237, %v5229
    %v5998 = vpack.c.b16 %v5238, %v5230
    %v5999 = vpack.c.b16 %v5239, %v5231
    %v6000 = vpack.c.b16 %v5240, %v5232
    %v6001 = vpack.c.b16 %v5241, %v5233
    %v6002 = vpack.c.b16 %v5242, %v5234
    %v6003 = vpack.c.b16 %v5243, %v5235
    %v6004 = vpack.c.b16 %v5244, %v5236
    %v6005 = vpack.c.b16 %v5253, %v5245
    %v6006 = vpack.c.b16 %v5254, %v5246
    %v6007 = vpack.c.b16 %v5255, %v5247
    %v6008 = vpack.c.b16 %v5256, %v5248
    %v6009 = vpack.c.b16 %v5257, %v5249
    %v6010 = vpack.c.b16 %v5258, %v5250
    %v6011 = vpack.c.b16 %v5259, %v5251
    %v6012 = vpack.c.b16 %v5260, %v5252
    %v6013 = vpack.c.b16 %v5269, %v5261
    %v6014 = vpack.c.b16 %v5270, %v5262
    %v6015 = vpack.c.b16 %v5271, %v5263
    %v6016 = vpack.c.b16 %v5272, %v5264
    %v6017 = vpack.c.b16 %v5273, %v5265
    %v6018 = vpack.c.b16 %v5274, %v5266
    %v6019 = vpack.c.b16 %v5275, %v5267
    %v6020 = vpack.c.b16 %v5276, %v5268
    %v6021 = vpack.c.b16 %v5285, %v5277
    %v6022 = vpack.c.b16 %v5286, %v5278
    %v6023 = vpack.c.b16 %v5287, %v5279
    %v6024 = vpack.c.b16 %v5288, %v5280
    %v6025 = vpack.c.b16 %v5289, %v5281
    %v6026 = vpack.c.b16 %v5290, %v5282
    %v6027 = vpack.c.b16 %v5291, %v5283
    %v6028 = vpack.c.b16 %v5292, %v5284
    %v6029 = vpack.c.b16 %v5301, %v5293
    %v6030 = vpack.c.b16 %v5302, %v5294
    %v6031 = vpack.c.b16 %v5303, %v5295
    %v6032 = vpack.c.b16 %v5304, %v5296
    %v6033 = vpack.c.b16 %v5305, %v5297
    %v6034 = vpack.c.b16 %v5306, %v5298
    %v6035 = vpack.c.b16 %v5307, %v5299
    %v6036 = vpack.c.b16 %v5308, %v5300
    %v6037 = vpack.c.b16 %v5317, %v5309
    %v6038 = vpack.c.b16 %v5318, %v5310
    %v6039 = vpack.c.b16 %v5319, %v5311
    %v6040 = vpack.c.b16 %v5320, %v5312
    %v6041 = vpack.c.b16 %v5321, %v5313
    %v6042 = vpack.c.b16 %v5322, %v5314
    %v6043 = vpack.c.b16 %v5323, %v5315
    %v6044 = vpack.c.b16 %v5324, %v5316
    %v6045 = vpack.c.b16 %v5333, %v5325
    %v6046 = vpack.c.b16 %v5334, %v5326
    %v6047 = vpack.c.b16 %v5335, %v5327
    %v6048 = vpack.c.b16 %v5336, %v5328
    %v6049 = vpack.c.b16 %v5337, %v5329
    %v6050 = vpack.c.b16 %v5338, %v5330
    %v6051 = vpack.c.b16 %v5339, %v5331
    %v6052 = vpack.c.b16 %v5340, %v5332
    %v6053 = vpack.c.b16 %v5349, %v5341
    %v6054 = vpack.c.b16 %v5350, %v5342
    %v6055 = vpack.c.b16 %v5351, %v5343
    %v6056 = vpack.c.b16 %v5352, %v5344
    %v6057 = vpack.c.b16 %v5353, %v5345
    %v6058 = vpack.c.b16 %v5354, %v5346
    %v6059 = vpack.c.b16 %v5355, %v5347
    %v6060 = vpack.c.b16 %v5356, %v5348
    %v6061 = vpack.c.b16 %v5365, %v5357
    %v6062 = vpack.c.b16 %v5366, %v5358
    %v6063 = vpack.c.b16 %v5367, %v5359
    %v6064 = vpack.c.b16 %v5368, %v5360
    %v6065 = vpack.c.b16 %v5369, %v5361
    %v6066 = vpack.c.b16 %v5370, %v5362
    %v6067 = vpack.c.b16 %v5371, %v5363
    %v6068 = vpack.c.b16 %v5372, %v5364
    %v6069 = vpack.c.b16 %v5381, %v5373
    %v6070 = vpack.c.b16 %v5382, %v5374
    %v6071 = vpack.c.b16 %v5383, %v5375
    %v6072 = vpack.c.b16 %v5384, %v5376
    %v6073 = vpack.c.b16 %v5385, %v5377
    %v6074 = vpack.c.b16 %v5386, %v5378
    %v6075 = vpack.c.b16 %v5387, %v5379
    %v6076 = vpack.c.b16 %v5388, %v5380
    %v6077 = vpack.c.b16 %v5397, %v5389
    %v6078 = vpack.c.b16 %v5398, %v5390
    %v6079 = vpack.c.b16 %v5399, %v5391
    %v6080 = vpack.c.b16 %v5400, %v5392
    %v6081 = vpack.c.b16 %v5401, %v5393
    %v6082 = vpack.c.b16 %v5402, %v5394
    %v6083 = vpack.c.b16 %v5403, %v5395
    %v6084 = vpack.c.b16 %v5404, %v5396
    %v6085 = vpack.c.b16 %v5413, %v5405
    %v6086 = vpack.c.b16 %v5414, %v5406
    %v6087 = vpack.c.b16 %v5415, %v5407
    %v6088 = vpack.c.b16 %v5416, %v5408
    %v6089 = vpack.c.b16 %v5417, %v5409
    %v6090 = vpack.c.b16 %v5418, %v5410
    %v6091 = vpack.c.b16 %v5419, %v5411
    %v6092 = vpack.c.b16 %v5420, %v5412
    %v6093 = vpack.c.b16 %v5429, %v5421
    %v6094 = vpack.c.b16 %v5430, %v5422
    %v6095 = vpack.c.b16 %v5431, %v5423
    %v6096 = vpack.c.b16 %v5432, %v5424
    %v6097 = vpack.c.b16 %v5433, %v5425
    %v6098 = vpack.c.b16 %v5434, %v5426
    %v6099 = vpack.c.b16 %v5435, %v5427
    %v6100 = vpack.c.b16 %v5436, %v5428
    %v6101 = vpack.c.b16 %v5445, %v5437
    %v6102 = vpack.c.b16 %v5446, %v5438
    %v6103 = vpack.c.b16 %v5447, %v5439
    %v6104 = vpack.c.b16 %v5448, %v5440
    %v6105 = vpack.c.b16 %v5449, %v5441
    %v6106 = vpack.c.b16 %v5450, %v5442
    %v6107 = vpack.c.b16 %v5451, %v5443
    %v6108 = vpack.c.b16 %v5452, %v5444
    %v6109 = vpack.c.b16 %v5461, %v5453
    %v6110 = vpack.c.b16 %v5462, %v5454
    %v6111 = vpack.c.b16 %v5463, %v5455
    %v6112 = vpack.c.b16 %v5464, %v5456
    %v6113 = vpack.c.b16 %v5465, %v5457
    %v6114 = vpack.c.b16 %v5466, %v5458
    %v6115 = vpack.c.b16 %v5467, %v5459
    %v6116 = vpack.c.b16 %v5468, %v5460
    %v6117 = vpack.c.b16 %v5477, %v5469
    %v6118 = vpack.c.b16 %v5478, %v5470
    %v6119 = vpack.c.b16 %v5479, %v5471
    %v6120 = vpack.c.b16 %v5480, %v5472
    %v6121 = vpack.c.b16 %v5481, %v5473
    %v6122 = vpack.c.b16 %v5482, %v5474
    %v6123 = vpack.c.b16 %v5483, %v5475
    %v6124 = vpack.c.b16 %v5484, %v5476
    %v6125 = vpack.c.b16 %v5493, %v5485
    %v6126 = vpack.c.b16 %v5494, %v5486
    %v6127 = vpack.c.b16 %v5495, %v5487
    %v6128 = vpack.c.b16 %v5496, %v5488
    %v6129 = vpack.c.b16 %v5497, %v5489
    %v6130 = vpack.c.b16 %v5498, %v5490
    %v6131 = vpack.c.b16 %v5499, %v5491
    %v6132 = vpack.c.b16 %v5500, %v5492
    %v6133 = vpack.c.b16 %v5509, %v5501
    %v6134 = vpack.c.b16 %v5510, %v5502
    %v6135 = vpack.c.b16 %v5511, %v5503
    %v6136 = vpack.c.b16 %v5512, %v5504
    %v6137 = vpack.c.b16 %v5513, %v5505
    %v6138 = vpack.c.b16 %v5514, %v5506
    %v6139 = vpack.c.b16 %v5515, %v5507
    %v6140 = vpack.c.b16 %v5516, %v5508
    %v6141 = vpack.c.b16 %v5525, %v5517
    %v6142 = vpack.c.b16 %v5526, %v5518
    %v6143 = vpack.c.b16 %v5527, %v5519
    %v6144 = vpack.c.b16 %v5528, %v5520
    %v6145 = vpack.c.b16 %v5529, %v5521
    %v6146 = vpack.c.b16 %v5530, %v5522
    %v6147 = vpack.c.b16 %v5531, %v5523
    %v6148 = vpack.c.b16 %v5532, %v5524
    %v6149 = vpack.c.b16 %v5541, %v5533
    %v6150 = vpack.c.b16 %v5542, %v5534
    %v6151 = vpack.c.b16 %v5543, %v5535
    %v6152 = vpack.c.b16 %v5544, %v5536
    %v6153 = vpack.c.b16 %v5545, %v5537
    %v6154 = vpack.c.b16 %v5546, %v5538
    %v6155 = vpack.c.b16 %v5547, %v5539
    %v6156 = vpack.c.b16 %v5548, %v5540
    %v6157 = vpack.c.b16 %v5557, %v5549
    %v6158 = vpack.c.b16 %v5558, %v5550
    %v6159 = vpack.c.b16 %v5559, %v5551
    %v6160 = vpack.c.b16 %v5560, %v5552
    %v6161 = vpack.c.b16 %v5561, %v5553
    %v6162 = vpack.c.b16 %v5562, %v5554
    %v6163 = vpack.c.b16 %v5563, %v5555
    %v6164 = vpack.c.b16 %v5564, %v5556
    %v6165 = vpack.c.b16 %v5573, %v5565
    %v6166 = vpack.c.b16 %v5574, %v5566
    %v6167 = vpack.c.b16 %v5575, %v5567
    %v6168 = vpack.c.b16 %v5576, %v5568
    %v6169 = vpack.c.b16 %v5577, %v5569
    %v6170 = vpack.c.b16 %v5578, %v5570
    %v6171 = vpack.c.b16 %v5579, %v5571
    %v6172 = vpack.c.b16 %v5580, %v5572
    %v6173 = vpack.c.b16 %v5589, %v5581
    %v6174 = vpack.c.b16 %v5590, %v5582
    %v6175 = vpack.c.b16 %v5591, %v5583
    %v6176 = vpack.c.b16 %v5592, %v5584
    %v6177 = vpack.c.b16 %v5593, %v5585
    %v6178 = vpack.c.b16 %v5594, %v5586
    %v6179 = vpack.c.b16 %v5595, %v5587
    %v6180 = vpack.c.b16 %v5596, %v5588
    %v6181 = vpack.c.b16 %v5605, %v5597
    %v6182 = vpack.c.b16 %v5606, %v5598
    %v6183 = vpack.c.b16 %v5607, %v5599
    %v6184 = vpack.c.b16 %v5608, %v5600
    %v6185 = vpack.c.b16 %v5609, %v5601
    %v6186 = vpack.c.b16 %v5610, %v5602
    %v6187 = vpack.c.b16 %v5611, %v5603
    %v6188 = vpack.c.b16 %v5612, %v5604
    %v6189 = vpack.c.b16 %v5621, %v5613
    %v6190 = vpack.c.b16 %v5622, %v5614
    %v6191 = vpack.c.b16 %v5623, %v5615
    %v6192 = vpack.c.b16 %v5624, %v5616
    %v6193 = vpack.c.b16 %v5625, %v5617
    %v6194 = vpack.c.b16 %v5626, %v5618
    %v6195 = vpack.c.b16 %v5627, %v5619
    %v6196 = vpack.c.b16 %v5628, %v5620
    %v6197 = vpack.c.b16 %v5637, %v5629
    %v6198 = vpack.c.b16 %v5638, %v5630
    %v6199 = vpack.c.b16 %v5639, %v5631
    %v6200 = vpack.c.b16 %v5640, %v5632
    %v6201 = vpack.c.b16 %v5641, %v5633
    %v6202 = vpack.c.b16 %v5642, %v5634
    %v6203 = vpack.c.b16 %v5643, %v5635
    %v6204 = vpack.c.b16 %v5644, %v5636
    %v6205 = vpack.c.b16 %v5653, %v5645
    %v6206 = vpack.c.b16 %v5654, %v5646
    %v6207 = vpack.c.b16 %v5655, %v5647
    %v6208 = vpack.c.b16 %v5656, %v5648
    %v6209 = vpack.c.b16 %v5657, %v5649
    %v6210 = vpack.c.b16 %v5658, %v5650
    %v6211 = vpack.c.b16 %v5659, %v5651
    %v6212 = vpack.c.b16 %v5660, %v5652
    %v6213 = vpack.c.b16 %v5669, %v5661
    %v6214 = vpack.c.b16 %v5670, %v5662
    %v6215 = vpack.c.b16 %v5671, %v5663
    %v6216 = vpack.c.b16 %v5672, %v5664
    %v6217 = vpack.c.b16 %v5673, %v5665
    %v6218 = vpack.c.b16 %v5674, %v5666
    %v6219 = vpack.c.b16 %v5675, %v5667
    %v6220 = vpack.c.b16 %v5676, %v5668
    %v6221 = vpack.c.b16 %v5685, %v5677
    %v6222 = vpack.c.b16 %v5686, %v5678
    %v6223 = vpack.c.b16 %v5687, %v5679
    %v6224 = vpack.c.b16 %v5688, %v5680
    %v6225 = vpack.c.b16 %v5689, %v5681
    %v6226 = vpack.c.b16 %v5690, %v5682
    %v6227 = vpack.c.b16 %v5691, %v5683
    %v6228 = vpack.c.b16 %v5692, %v5684
    %v6229 = vpack.c.b16 %v5701, %v5693
    %v6230 = vpack.c.b16 %v5702, %v5694
    %v6231 = vpack.c.b16 %v5703, %v5695
    %v6232 = vpack.c.b16 %v5704, %v5696
    %v6233 = vpack.c.b16 %v5705, %v5697
    %v6234 = vpack.c.b16 %v5706, %v5698
    %v6235 = vpack.c.b16 %v5707, %v5699
    %v6236 = vpack.c.b16 %v5708, %v5700
    %v6237 = vpack.c.b16 %v5717, %v5709
    %v6238 = vpack.c.b16 %v5718, %v5710
    %v6239 = vpack.c.b16 %v5719, %v5711
    %v6240 = vpack.c.b16 %v5720, %v5712
    %v6241 = vpack.c.b16 %v5721, %v5713
    %v6242 = vpack.c.b16 %v5722, %v5714
    %v6243 = vpack.c.b16 %v5723, %v5715
    %v6244 = vpack.c.b16 %v5724, %v5716
    %v6245 = vpack.c.b16 %v5733, %v5725
    %v6246 = vpack.c.b16 %v5734, %v5726
    %v6247 = vpack.c.b16 %v5735, %v5727
    %v6248 = vpack.c.b16 %v5736, %v5728
    %v6249 = vpack.c.b16 %v5737, %v5729
    %v6250 = vpack.c.b16 %v5738, %v5730
    %v6251 = vpack.c.b16 %v5739, %v5731
    %v6252 = vpack.c.b16 %v5740, %v5732
    %6765 = vmatprep.subr.bf16.mxu0 %v5742
    %6766 = vmatpush1.bf16.msra.mxu0 %v5741
    %6767 = vmatprep.subr.bf16.mxu0 %v5750
    %6768 = vmatpush1.bf16.msra.mxu0 %v5749
    %6769 = vmatprep.subr.bf16.mxu0 %v5758
    %6770 = vmatpush1.bf16.msra.mxu0 %v5757
    %6771 = vmatprep.subr.bf16.mxu0 %v5766
    %6772 = vmatpush1.bf16.msra.mxu0 %v5765
    %6773 = vmatprep.subr.bf16.mxu0 %v5774
    %6774 = vmatpush1.bf16.msra.mxu0 %v5773
    %6775 = vmatprep.subr.bf16.mxu0 %v5782
    %6776 = vmatpush1.bf16.msra.mxu0 %v5781
    %6777 = vmatprep.subr.bf16.mxu0 %v5790
    %6778 = vmatpush1.bf16.msra.mxu0 %v5789
    %6779 = vmatprep.subr.bf16.mxu0 %v5798
    %6780 = vmatpush1.bf16.msra.mxu0 %v5797
    %6781 = vmatprep.subr.bf16.mxu0 %v5806
    %6782 = vmatpush1.bf16.msra.mxu0 %v5805
    %6783 = vmatprep.subr.bf16.mxu0 %v5814
    %6784 = vmatpush1.bf16.msra.mxu0 %v5813
    %6785 = vmatprep.subr.bf16.mxu0 %v5822
    %6786 = vmatpush1.bf16.msra.mxu0 %v5821
    %6787 = vmatprep.subr.bf16.mxu0 %v5830
    %6788 = vmatpush1.bf16.msra.mxu0 %v5829
    %6789 = vmatprep.subr.bf16.mxu0 %v5838
    %6790 = vmatpush1.bf16.msra.mxu0 %v5837
    %6791 = vmatprep.subr.bf16.mxu0 %v5846
    %6792 = vmatpush1.bf16.msra.mxu0 %v5845
    %6793 = vmatprep.subr.bf16.mxu0 %v5854
    %6794 = vmatpush1.bf16.msra.mxu0 %v5853
    %6795 = vmatprep.subr.bf16.mxu0 %v5862
    %6796 = vmatpush1.bf16.msra.mxu0 %v5861
    %6797 = vmatprep.mubr.bf16.mxu0 %v3644
    %6798 = vmatmul.mubr.bf16.gmra.mrb[0].mxu0 %v3643
    %v6799 = vpop.f32.mrb[0].mxu0
    %v6800 = vadd.f32 %v4168, %v6799
    %v6801 = vpop.f32.mrb[0].mxu0
    %v6802 = vadd.f32 %v4172, %v6801
    %v6803 = vpop.f32.mrb[0].mxu0
    %v6804 = vadd.f32 %v4168, %v6803
    %v6805 = vpop.f32.mrb[0].mxu0
    %v6806 = vadd.f32 %v4172, %v6805
    %6807 = vdwg.mxu0
    %6808 = vmatprep.subr.bf16.mxu0 %v5870
    %6809 = vmatpush1.bf16.msra.mxu0 %v5869
    %6810 = vmatprep.subr.bf16.mxu0 %v5878
    %6811 = vmatpush1.bf16.msra.mxu0 %v5877
    %6812 = vmatprep.subr.bf16.mxu0 %v5886
    %6813 = vmatpush1.bf16.msra.mxu0 %v5885
    %6814 = vmatprep.subr.bf16.mxu0 %v5894
    %6815 = vmatpush1.bf16.msra.mxu0 %v5893
    %6816 = vmatprep.subr.bf16.mxu0 %v5902
    %6817 = vmatpush1.bf16.msra.mxu0 %v5901
    %6818 = vmatprep.subr.bf16.mxu0 %v5910
    %6819 = vmatpush1.bf16.msra.mxu0 %v5909
    %6820 = vmatprep.subr.bf16.mxu0 %v5918
    %6821 = vmatpush1.bf16.msra.mxu0 %v5917
    %6822 = vmatprep.subr.bf16.mxu0 %v5926
    %6823 = vmatpush1.bf16.msra.mxu0 %v5925
    %6824 = vmatprep.subr.bf16.mxu0 %v5934
    %6825 = vmatpush1.bf16.msra.mxu0 %v5933
    %6826 = vmatprep.subr.bf16.mxu0 %v5942
    %6827 = vmatpush1.bf16.msra.mxu0 %v5941
    %6828 = vmatprep.subr.bf16.mxu0 %v5950
    %6829 = vmatpush1.bf16.msra.mxu0 %v5949
    %6830 = vmatprep.subr.bf16.mxu0 %v5958
    %6831 = vmatpush1.bf16.msra.mxu0 %v5957
    %6832 = vmatprep.subr.bf16.mxu0 %v5966
    %6833 = vmatpush1.bf16.msra.mxu0 %v5965
    %6834 = vmatprep.subr.bf16.mxu0 %v5974
    %6835 = vmatpush1.bf16.msra.mxu0 %v5973
    %6836 = vmatprep.subr.bf16.mxu0 %v5982
    %6837 = vmatpush1.bf16.msra.mxu0 %v5981
    %6838 = vmatprep.subr.bf16.mxu0 %v5990
    %6839 = vmatpush1.bf16.msra.mxu0 %v5989
    %6840 = vmatprep.mubr.bf16.mxu0 %v3646
    %6841 = vmatmul.mubr.bf16.gmra.mrb[0].mxu0 %v3645
    %v6842 = vpop.f32.mrb[0].mxu0
    %v6843 = vadd.f32 %v6800, %v6842
    %v6844 = vpop.f32.mrb[0].mxu0
    %v6845 = vadd.f32 %v6802, %v6844
    %v6846 = vpop.f32.mrb[0].mxu0
    %v6847 = vadd.f32 %v6804, %v6846
    %v6848 = vpop.f32.mrb[0].mxu0
    %v6849 = vadd.f32 %v6806, %v6848
    %6850 = vdwg.mxu0
    %6851 = vmatprep.subr.bf16.mxu0 %v5998
    %6852 = vmatpush1.bf16.msra.mxu0 %v5997
    %6853 = vmatprep.subr.bf16.mxu0 %v6006
    %6854 = vmatpush1.bf16.msra.mxu0 %v6005
    %6855 = vmatprep.subr.bf16.mxu0 %v6014
    %6856 = vmatpush1.bf16.msra.mxu0 %v6013
    %6857 = vmatprep.subr.bf16.mxu0 %v6022
    %6858 = vmatpush1.bf16.msra.mxu0 %v6021
    %6859 = vmatprep.subr.bf16.mxu0 %v6030
    %6860 = vmatpush1.bf16.msra.mxu0 %v6029
    %6861 = vmatprep.subr.bf16.mxu0 %v6038
    %6862 = vmatpush1.bf16.msra.mxu0 %v6037
    %6863 = vmatprep.subr.bf16.mxu0 %v6046
    %6864 = vmatpush1.bf16.msra.mxu0 %v6045
    %6865 = vmatprep.subr.bf16.mxu0 %v6054
    %6866 = vmatpush1.bf16.msra.mxu0 %v6053
    %6867 = vmatprep.subr.bf16.mxu0 %v6062
    %6868 = vmatpush1.bf16.msra.mxu0 %v6061
    %6869 = vmatprep.subr.bf16.mxu0 %v6070
    %6870 = vmatpush1.bf16.msra.mxu0 %v6069
    %6871 = vmatprep.subr.bf16.mxu0 %v6078
    %6872 = vmatpush1.bf16.msra.mxu0 %v6077
    %6873 = vmatprep.subr.bf16.mxu0 %v6086
    %6874 = vmatpush1.bf16.msra.mxu0 %v6085
    %6875 = vmatprep.subr.bf16.mxu0 %v6094
    %6876 = vmatpush1.bf16.msra.mxu0 %v6093
    %6877 = vmatprep.subr.bf16.mxu0 %v6102
    %6878 = vmatpush1.bf16.msra.mxu0 %v6101
    %6879 = vmatprep.subr.bf16.mxu0 %v6110
    %6880 = vmatpush1.bf16.msra.mxu0 %v6109
    %6881 = vmatprep.subr.bf16.mxu0 %v6118
    %6882 = vmatpush1.bf16.msra.mxu0 %v6117
    %6883 = vmatprep.mubr.bf16.mxu0 %v3648
    %6884 = vmatmul.mubr.bf16.gmra.mrb[0].mxu0 %v3647
    %v6885 = vpop.f32.mrb[0].mxu0
    %v6886 = vadd.f32 %v6843, %v6885
    %v6887 = vpop.f32.mrb[0].mxu0
    %v6888 = vadd.f32 %v6845, %v6887
    %v6889 = vpop.f32.mrb[0].mxu0
    %v6890 = vadd.f32 %v6847, %v6889
    %v6891 = vpop.f32.mrb[0].mxu0
    %v6892 = vadd.f32 %v6849, %v6891
    %6893 = vdwg.mxu0
    %6894 = vmatprep.subr.bf16.mxu0 %v6126
    %6895 = vmatpush1.bf16.msra.mxu0 %v6125
    %6896 = vmatprep.subr.bf16.mxu0 %v6134
    %6897 = vmatpush1.bf16.msra.mxu0 %v6133
    %6898 = vmatprep.subr.bf16.mxu0 %v6142
    %6899 = vmatpush1.bf16.msra.mxu0 %v6141
    %6900 = vmatprep.subr.bf16.mxu0 %v6150
    %6901 = vmatpush1.bf16.msra.mxu0 %v6149
    %6902 = vmatprep.subr.bf16.mxu0 %v6158
    %6903 = vmatpush1.bf16.msra.mxu0 %v6157
    %6904 = vmatprep.subr.bf16.mxu0 %v6166
    %6905 = vmatpush1.bf16.msra.mxu0 %v6165
    %6906 = vmatprep.subr.bf16.mxu0 %v6174
    %6907 = vmatpush1.bf16.msra.mxu0 %v6173
    %6908 = vmatprep.subr.bf16.mxu0 %v6182
    %6909 = vmatpush1.bf16.msra.mxu0 %v6181
    %6910 = vmatprep.subr.bf16.mxu0 %v6190
    %6911 = vmatpush1.bf16.msra.mxu0 %v6189
    %6912 = vmatprep.subr.bf16.mxu0 %v6198
    %6913 = vmatpush1.bf16.msra.mxu0 %v6197
    %6914 = vmatprep.subr.bf16.mxu0 %v6206
    %6915 = vmatpush1.bf16.msra.mxu0 %v6205
    %6916 = vmatprep.subr.bf16.mxu0 %v6214
    %6917 = vmatpush1.bf16.msra.mxu0 %v6213
    %6918 = vmatprep.subr.bf16.mxu0 %v6222
    %6919 = vmatpush1.bf16.msra.mxu0 %v6221
    %6920 = vmatprep.subr.bf16.mxu0 %v6230
    %6921 = vmatpush1.bf16.msra.mxu0 %v6229
    %6922 = vmatprep.subr.bf16.mxu0 %v6238
    %6923 = vmatpush1.bf16.msra.mxu0 %v6237
    %6924 = vmatprep.subr.bf16.mxu0 %v6246
    %6925 = vmatpush1.bf16.msra.mxu0 %v6245
    %6926 = vmatprep.mubr.bf16.mxu0 %v3650
    %6927 = vmatmul.mubr.bf16.gmra.mrb[0].mxu0 %v3649
    %v6928 = vpop.f32.mrb[0].mxu0
    %v6929 = vadd.f32 %v6886, %v6928
    %v6930 = vpop.f32.mrb[0].mxu0
    %v6931 = vadd.f32 %v6888, %v6930
    %v6932 = vpop.f32.mrb[0].mxu0
    %v6933 = vadd.f32 %v6890, %v6932
    %v6934 = vpop.f32.mrb[0].mxu0
    %v6935 = vadd.f32 %v6892, %v6934
    %6936 = vdwg.mxu0
    %6937 = vmatprep.subr.bf16.mxu0 %v5744
    %6938 = vmatpush1.bf16.msra.mxu0 %v5743
    %6939 = vmatprep.subr.bf16.mxu0 %v5752
    %6940 = vmatpush1.bf16.msra.mxu0 %v5751
    %6941 = vmatprep.subr.bf16.mxu0 %v5760
    %6942 = vmatpush1.bf16.msra.mxu0 %v5759
    %6943 = vmatprep.subr.bf16.mxu0 %v5768
    %6944 = vmatpush1.bf16.msra.mxu0 %v5767
    %6945 = vmatprep.subr.bf16.mxu0 %v5776
    %6946 = vmatpush1.bf16.msra.mxu0 %v5775
    %6947 = vmatprep.subr.bf16.mxu0 %v5784
    %6948 = vmatpush1.bf16.msra.mxu0 %v5783
    %6949 = vmatprep.subr.bf16.mxu0 %v5792
    %6950 = vmatpush1.bf16.msra.mxu0 %v5791
    %6951 = vmatprep.subr.bf16.mxu0 %v5800
    %6952 = vmatpush1.bf16.msra.mxu0 %v5799
    %6953 = vmatprep.subr.bf16.mxu0 %v5808
    %6954 = vmatpush1.bf16.msra.mxu0 %v5807
    %6955 = vmatprep.subr.bf16.mxu0 %v5816
    %6956 = vmatpush1.bf16.msra.mxu0 %v5815
    %6957 = vmatprep.subr.bf16.mxu0 %v5824
    %6958 = vmatpush1.bf16.msra.mxu0 %v5823
    %6959 = vmatprep.subr.bf16.mxu0 %v5832
    %6960 = vmatpush1.bf16.msra.mxu0 %v5831
    %6961 = vmatprep.subr.bf16.mxu0 %v5840
    %6962 = vmatpush1.bf16.msra.mxu0 %v5839
    %6963 = vmatprep.subr.bf16.mxu0 %v5848
    %6964 = vmatpush1.bf16.msra.mxu0 %v5847
    %6965 = vmatprep.subr.bf16.mxu0 %v5856
    %6966 = vmatpush1.bf16.msra.mxu0 %v5855
    %6967 = vmatprep.subr.bf16.mxu0 %v5864
    %6968 = vmatpush1.bf16.msra.mxu0 %v5863
    %6969 = vmatprep.mubr.bf16.mxu0 %v3644
    %6970 = vmatmul.mubr.bf16.gmra.mrb[0].mxu0 %v3643
    %v6971 = vpop.f32.mrb[0].mxu0
    %v6972 = vadd.f32 %v4176, %v6971
    %v6973 = vpop.f32.mrb[0].mxu0
    %v6974 = vadd.f32 %v4180, %v6973
    %v6975 = vpop.f32.mrb[0].mxu0
    %v6976 = vadd.f32 %v4176, %v6975
    %v6977 = vpop.f32.mrb[0].mxu0
    %v6978 = vadd.f32 %v4180, %v6977
    %6979 = vdwg.mxu0
    %6980 = vmatprep.subr.bf16.mxu0 %v5872
    %6981 = vmatpush1.bf16.msra.mxu0 %v5871
    %6982 = vmatprep.subr.bf16.mxu0 %v5880
    %6983 = vmatpush1.bf16.msra.mxu0 %v5879
    %6984 = vmatprep.subr.bf16.mxu0 %v5888
    %6985 = vmatpush1.bf16.msra.mxu0 %v5887
    %6986 = vmatprep.subr.bf16.mxu0 %v5896
    %6987 = vmatpush1.bf16.msra.mxu0 %v5895
    %6988 = vmatprep.subr.bf16.mxu0 %v5904
    %6989 = vmatpush1.bf16.msra.mxu0 %v5903
    %6990 = vmatprep.subr.bf16.mxu0 %v5912
    %6991 = vmatpush1.bf16.msra.mxu0 %v5911
    %6992 = vmatprep.subr.bf16.mxu0 %v5920
    %6993 = vmatpush1.bf16.msra.mxu0 %v5919
    %6994 = vmatprep.subr.bf16.mxu0 %v5928
    %6995 = vmatpush1.bf16.msra.mxu0 %v5927
    %6996 = vmatprep.subr.bf16.mxu0 %v5936
    %6997 = vmatpush1.bf16.msra.mxu0 %v5935
    %6998 = vmatprep.subr.bf16.mxu0 %v5944
    %6999 = vmatpush1.bf16.msra.mxu0 %v5943
    %7000 = vmatprep.subr.bf16.mxu0 %v5952
    %7001 = vmatpush1.bf16.msra.mxu0 %v5951
    %7002 = vmatprep.subr.bf16.mxu0 %v5960
    %7003 = vmatpush1.bf16.msra.mxu0 %v5959
    %7004 = vmatprep.subr.bf16.mxu0 %v5968
    %7005 = vmatpush1.bf16.msra.mxu0 %v5967
    %7006 = vmatprep.subr.bf16.mxu0 %v5976
    %7007 = vmatpush1.bf16.msra.mxu0 %v5975
    %7008 = vmatprep.subr.bf16.mxu0 %v5984
    %7009 = vmatpush1.bf16.msra.mxu0 %v5983
    %7010 = vmatprep.subr.bf16.mxu0 %v5992
    %7011 = vmatpush1.bf16.msra.mxu0 %v5991
    %7012 = vmatprep.mubr.bf16.mxu0 %v3646
    %7013 = vmatmul.mubr.bf16.gmra.mrb[0].mxu0 %v3645
    %v7014 = vpop.f32.mrb[0].mxu0
    %v7015 = vadd.f32 %v6972, %v7014
    %v7016 = vpop.f32.mrb[0].mxu0
    %v7017 = vadd.f32 %v6974, %v7016
    %v7018 = vpop.f32.mrb[0].mxu0
    %v7019 = vadd.f32 %v6976, %v7018
    %v7020 = vpop.f32.mrb[0].mxu0
    %v7021 = vadd.f32 %v6978, %v7020
    %7022 = vdwg.mxu0
    %7023 = vmatprep.subr.bf16.mxu0 %v6000
    %7024 = vmatpush1.bf16.msra.mxu0 %v5999
    %7025 = vmatprep.subr.bf16.mxu0 %v6008
    %7026 = vmatpush1.bf16.msra.mxu0 %v6007
    %7027 = vmatprep.subr.bf16.mxu0 %v6016
    %7028 = vmatpush1.bf16.msra.mxu0 %v6015
    %7029 = vmatprep.subr.bf16.mxu0 %v6024
    %7030 = vmatpush1.bf16.msra.mxu0 %v6023
    %7031 = vmatprep.subr.bf16.mxu0 %v6032
    %7032 = vmatpush1.bf16.msra.mxu0 %v6031
    %7033 = vmatprep.subr.bf16.mxu0 %v6040
    %7034 = vmatpush1.bf16.msra.mxu0 %v6039
    %7035 = vmatprep.subr.bf16.mxu0 %v6048
    %7036 = vmatpush1.bf16.msra.mxu0 %v6047
    %7037 = vmatprep.subr.bf16.mxu0 %v6056
    %7038 = vmatpush1.bf16.msra.mxu0 %v6055
    %7039 = vmatprep.subr.bf16.mxu0 %v6064
    %7040 = vmatpush1.bf16.msra.mxu0 %v6063
    %7041 = vmatprep.subr.bf16.mxu0 %v6072
    %7042 = vmatpush1.bf16.msra.mxu0 %v6071
    %7043 = vmatprep.subr.bf16.mxu0 %v6080
    %7044 = vmatpush1.bf16.msra.mxu0 %v6079
    %7045 = vmatprep.subr.bf16.mxu0 %v6088
    %7046 = vmatpush1.bf16.msra.mxu0 %v6087
    %7047 = vmatprep.subr.bf16.mxu0 %v6096
    %7048 = vmatpush1.bf16.msra.mxu0 %v6095
    %7049 = vmatprep.subr.bf16.mxu0 %v6104
    %7050 = vmatpush1.bf16.msra.mxu0 %v6103
    %7051 = vmatprep.subr.bf16.mxu0 %v6112
    %7052 = vmatpush1.bf16.msra.mxu0 %v6111
    %7053 = vmatprep.subr.bf16.mxu0 %v6120
    %7054 = vmatpush1.bf16.msra.mxu0 %v6119
    %7055 = vmatprep.mubr.bf16.mxu0 %v3648
    %7056 = vmatmul.mubr.bf16.gmra.mrb[0].mxu0 %v3647
    %v7057 = vpop.f32.mrb[0].mxu0
    %v7058 = vadd.f32 %v7015, %v7057
    %v7059 = vpop.f32.mrb[0].mxu0
    %v7060 = vadd.f32 %v7017, %v7059
    %v7061 = vpop.f32.mrb[0].mxu0
    %v7062 = vadd.f32 %v7019, %v7061
    %v7063 = vpop.f32.mrb[0].mxu0
    %v7064 = vadd.f32 %v7021, %v7063
    %7065 = vdwg.mxu0
    %7066 = vmatprep.subr.bf16.mxu0 %v6128
    %7067 = vmatpush1.bf16.msra.mxu0 %v6127
    %7068 = vmatprep.subr.bf16.mxu0 %v6136
    %7069 = vmatpush1.bf16.msra.mxu0 %v6135
    %7070 = vmatprep.subr.bf16.mxu0 %v6144
    %7071 = vmatpush1.bf16.msra.mxu0 %v6143
    %7072 = vmatprep.subr.bf16.mxu0 %v6152
    %7073 = vmatpush1.bf16.msra.mxu0 %v6151
    %7074 = vmatprep.subr.bf16.mxu0 %v6160
    %7075 = vmatpush1.bf16.msra.mxu0 %v6159
    %7076 = vmatprep.subr.bf16.mxu0 %v6168
    %7077 = vmatpush1.bf16.msra.mxu0 %v6167
    %7078 = vmatprep.subr.bf16.mxu0 %v6176
    %7079 = vmatpush1.bf16.msra.mxu0 %v6175
    %7080 = vmatprep.subr.bf16.mxu0 %v6184
    %7081 = vmatpush1.bf16.msra.mxu0 %v6183
    %7082 = vmatprep.subr.bf16.mxu0 %v6192
    %7083 = vmatpush1.bf16.msra.mxu0 %v6191
    %7084 = vmatprep.subr.bf16.mxu0 %v6200
    %7085 = vmatpush1.bf16.msra.mxu0 %v6199
    %7086 = vmatprep.subr.bf16.mxu0 %v6208
    %7087 = vmatpush1.bf16.msra.mxu0 %v6207
    %7088 = vmatprep.subr.bf16.mxu0 %v6216
    %7089 = vmatpush1.bf16.msra.mxu0 %v6215
    %7090 = vmatprep.subr.bf16.mxu0 %v6224
    %7091 = vmatpush1.bf16.msra.mxu0 %v6223
    %7092 = vmatprep.subr.bf16.mxu0 %v6232
    %7093 = vmatpush1.bf16.msra.mxu0 %v6231
    %7094 = vmatprep.subr.bf16.mxu0 %v6240
    %7095 = vmatpush1.bf16.msra.mxu0 %v6239
    %7096 = vmatprep.subr.bf16.mxu0 %v6248
    %7097 = vmatpush1.bf16.msra.mxu0 %v6247
    %7098 = vmatprep.mubr.bf16.mxu0 %v3650
    %7099 = vmatmul.mubr.bf16.gmra.mrb[0].mxu0 %v3649
    %v7100 = vpop.f32.mrb[0].mxu0
    %v7101 = vadd.f32 %v7058, %v7100
    %v7102 = vpop.f32.mrb[0].mxu0
    %v7103 = vadd.f32 %v7060, %v7102
    %v7104 = vpop.f32.mrb[0].mxu0
    %v7105 = vadd.f32 %v7062, %v7104
    %v7106 = vpop.f32.mrb[0].mxu0
    %v7107 = vadd.f32 %v7064, %v7106
    %7108 = vdwg.mxu0
    %7109 = vmatprep.subr.bf16.mxu0 %v5746
    %7110 = vmatpush1.bf16.msra.mxu0 %v5745
    %7111 = vmatprep.subr.bf16.mxu0 %v5754
    %7112 = vmatpush1.bf16.msra.mxu0 %v5753
    %7113 = vmatprep.subr.bf16.mxu0 %v5762
    %7114 = vmatpush1.bf16.msra.mxu0 %v5761
    %7115 = vmatprep.subr.bf16.mxu0 %v5770
    %7116 = vmatpush1.bf16.msra.mxu0 %v5769
    %7117 = vmatprep.subr.bf16.mxu0 %v5778
    %7118 = vmatpush1.bf16.msra.mxu0 %v5777
    %7119 = vmatprep.subr.bf16.mxu0 %v5786
    %7120 = vmatpush1.bf16.msra.mxu0 %v5785
    %7121 = vmatprep.subr.bf16.mxu0 %v5794
    %7122 = vmatpush1.bf16.msra.mxu0 %v5793
    %7123 = vmatprep.subr.bf16.mxu0 %v5802
    %7124 = vmatpush1.bf16.msra.mxu0 %v5801
    %7125 = vmatprep.subr.bf16.mxu0 %v5810
    %7126 = vmatpush1.bf16.msra.mxu0 %v5809
    %7127 = vmatprep.subr.bf16.mxu0 %v5818
    %7128 = vmatpush1.bf16.msra.mxu0 %v5817
    %7129 = vmatprep.subr.bf16.mxu0 %v5826
    %7130 = vmatpush1.bf16.msra.mxu0 %v5825
    %7131 = vmatprep.subr.bf16.mxu0 %v5834
    %7132 = vmatpush1.bf16.msra.mxu0 %v5833
    %7133 = vmatprep.subr.bf16.mxu0 %v5842
    %7134 = vmatpush1.bf16.msra.mxu0 %v5841
    %7135 = vmatprep.subr.bf16.mxu0 %v5850
    %7136 = vmatpush1.bf16.msra.mxu0 %v5849
    %7137 = vmatprep.subr.bf16.mxu0 %v5858
    %7138 = vmatpush1.bf16.msra.mxu0 %v5857
    %7139 = vmatprep.subr.bf16.mxu0 %v5866
    %7140 = vmatpush1.bf16.msra.mxu0 %v5865
    %7141 = vmatprep.mubr.bf16.mxu0 %v3644
    %7142 = vmatmul.mubr.bf16.gmra.mrb[0].mxu0 %v3643
    %v7143 = vpop.f32.mrb[0].mxu0
    %v7144 = vadd.f32 %v4184, %v7143
    %v7145 = vpop.f32.mrb[0].mxu0
    %v7146 = vadd.f32 %v4188, %v7145
    %v7147 = vpop.f32.mrb[0].mxu0
    %v7148 = vadd.f32 %v4184, %v7147
    %v7149 = vpop.f32.mrb[0].mxu0
    %v7150 = vadd.f32 %v4188, %v7149
    %7151 = vdwg.mxu0
    %7152 = vmatprep.subr.bf16.mxu0 %v5874
    %7153 = vmatpush1.bf16.msra.mxu0 %v5873
    %7154 = vmatprep.subr.bf16.mxu0 %v5882
    %7155 = vmatpush1.bf16.msra.mxu0 %v5881
    %7156 = vmatprep.subr.bf16.mxu0 %v5890
    %7157 = vmatpush1.bf16.msra.mxu0 %v5889
    %7158 = vmatprep.subr.bf16.mxu0 %v5898
    %7159 = vmatpush1.bf16.msra.mxu0 %v5897
    %7160 = vmatprep.subr.bf16.mxu0 %v5906
    %7161 = vmatpush1.bf16.msra.mxu0 %v5905
    %7162 = vmatprep.subr.bf16.mxu0 %v5914
    %7163 = vmatpush1.bf16.msra.mxu0 %v5913
    %7164 = vmatprep.subr.bf16.mxu0 %v5922
    %7165 = vmatpush1.bf16.msra.mxu0 %v5921
    %7166 = vmatprep.subr.bf16.mxu0 %v5930
    %7167 = vmatpush1.bf16.msra.mxu0 %v5929
    %7168 = vmatprep.subr.bf16.mxu0 %v5938
    %7169 = vmatpush1.bf16.msra.mxu0 %v5937
    %7170 = vmatprep.subr.bf16.mxu0 %v5946
    %7171 = vmatpush1.bf16.msra.mxu0 %v5945
    %7172 = vmatprep.subr.bf16.mxu0 %v5954
    %7173 = vmatpush1.bf16.msra.mxu0 %v5953
    %7174 = vmatprep.subr.bf16.mxu0 %v5962
    %7175 = vmatpush1.bf16.msra.mxu0 %v5961
    %7176 = vmatprep.subr.bf16.mxu0 %v5970
    %7177 = vmatpush1.bf16.msra.mxu0 %v5969
    %7178 = vmatprep.subr.bf16.mxu0 %v5978
    %7179 = vmatpush1.bf16.msra.mxu0 %v5977
    %7180 = vmatprep.subr.bf16.mxu0 %v5986
    %7181 = vmatpush1.bf16.msra.mxu0 %v5985
    %7182 = vmatprep.subr.bf16.mxu0 %v5994
    %7183 = vmatpush1.bf16.msra.mxu0 %v5993
    %7184 = vmatprep.mubr.bf16.mxu0 %v3646
    %7185 = vmatmul.mubr.bf16.gmra.mrb[0].mxu0 %v3645
    %v7186 = vpop.f32.mrb[0].mxu0
    %v7187 = vadd.f32 %v7144, %v7186
    %v7188 = vpop.f32.mrb[0].mxu0
    %v7189 = vadd.f32 %v7146, %v7188
    %v7190 = vpop.f32.mrb[0].mxu0
    %v7191 = vadd.f32 %v7148, %v7190
    %v7192 = vpop.f32.mrb[0].mxu0
    %v7193 = vadd.f32 %v7150, %v7192
    %7194 = vdwg.mxu0
    %7195 = vmatprep.subr.bf16.mxu0 %v6002
    %7196 = vmatpush1.bf16.msra.mxu0 %v6001
    %7197 = vmatprep.subr.bf16.mxu0 %v6010
    %7198 = vmatpush1.bf16.msra.mxu0 %v6009
    %7199 = vmatprep.subr.bf16.mxu0 %v6018
    %7200 = vmatpush1.bf16.msra.mxu0 %v6017
    %7201 = vmatprep.subr.bf16.mxu0 %v6026
    %7202 = vmatpush1.bf16.msra.mxu0 %v6025
    %7203 = vmatprep.subr.bf16.mxu0 %v6034
    %7204 = vmatpush1.bf16.msra.mxu0 %v6033
    %7205 = vmatprep.subr.bf16.mxu0 %v6042
    %7206 = vmatpush1.bf16.msra.mxu0 %v6041
    %7207 = vmatprep.subr.bf16.mxu0 %v6050
    %7208 = vmatpush1.bf16.msra.mxu0 %v6049
    %7209 = vmatprep.subr.bf16.mxu0 %v6058
    %7210 = vmatpush1.bf16.msra.mxu0 %v6057
    %7211 = vmatprep.subr.bf16.mxu0 %v6066
    %7212 = vmatpush1.bf16.msra.mxu0 %v6065
    %7213 = vmatprep.subr.bf16.mxu0 %v6074
    %7214 = vmatpush1.bf16.msra.mxu0 %v6073
    %7215 = vmatprep.subr.bf16.mxu0 %v6082
    %7216 = vmatpush1.bf16.msra.mxu0 %v6081
    %7217 = vmatprep.subr.bf16.mxu0 %v6090
    %7218 = vmatpush1.bf16.msra.mxu0 %v6089
    %7219 = vmatprep.subr.bf16.mxu0 %v6098
    %7220 = vmatpush1.bf16.msra.mxu0 %v6097
    %7221 = vmatprep.subr.bf16.mxu0 %v6106
    %7222 = vmatpush1.bf16.msra.mxu0 %v6105
    %7223 = vmatprep.subr.bf16.mxu0 %v6114
    %7224 = vmatpush1.bf16.msra.mxu0 %v6113
    %7225 = vmatprep.subr.bf16.mxu0 %v6122
    %7226 = vmatpush1.bf16.msra.mxu0 %v6121
    %7227 = vmatprep.mubr.bf16.mxu0 %v3648
    %7228 = vmatmul.mubr.bf16.gmra.mrb[0].mxu0 %v3647
    %v7229 = vpop.f32.mrb[0].mxu0
    %v7230 = vadd.f32 %v7187, %v7229
    %v7231 = vpop.f32.mrb[0].mxu0
    %v7232 = vadd.f32 %v7189, %v7231
    %v7233 = vpop.f32.mrb[0].mxu0
    %v7234 = vadd.f32 %v7191, %v7233
    %v7235 = vpop.f32.mrb[0].mxu0
    %v7236 = vadd.f32 %v7193, %v7235
    %7237 = vdwg.mxu0
    %7238 = vmatprep.subr.bf16.mxu0 %v6130
    %7239 = vmatpush1.bf16.msra.mxu0 %v6129
    %7240 = vmatprep.subr.bf16.mxu0 %v6138
    %7241 = vmatpush1.bf16.msra.mxu0 %v6137
    %7242 = vmatprep.subr.bf16.mxu0 %v6146
    %7243 = vmatpush1.bf16.msra.mxu0 %v6145
    %7244 = vmatprep.subr.bf16.mxu0 %v6154
    %7245 = vmatpush1.bf16.msra.mxu0 %v6153
    %7246 = vmatprep.subr.bf16.mxu0 %v6162
    %7247 = vmatpush1.bf16.msra.mxu0 %v6161
    %7248 = vmatprep.subr.bf16.mxu0 %v6170
    %7249 = vmatpush1.bf16.msra.mxu0 %v6169
    %7250 = vmatprep.subr.bf16.mxu0 %v6178
    %7251 = vmatpush1.bf16.msra.mxu0 %v6177
    %7252 = vmatprep.subr.bf16.mxu0 %v6186
    %7253 = vmatpush1.bf16.msra.mxu0 %v6185
    %7254 = vmatprep.subr.bf16.mxu0 %v6194
    %7255 = vmatpush1.bf16.msra.mxu0 %v6193
    %7256 = vmatprep.subr.bf16.mxu0 %v6202
    %7257 = vmatpush1.bf16.msra.mxu0 %v6201
    %7258 = vmatprep.subr.bf16.mxu0 %v6210
    %7259 = vmatpush1.bf16.msra.mxu0 %v6209
    %7260 = vmatprep.subr.bf16.mxu0 %v6218
    %7261 = vmatpush1.bf16.msra.mxu0 %v6217
    %7262 = vmatprep.subr.bf16.mxu0 %v6226
    %7263 = vmatpush1.bf16.msra.mxu0 %v6225
    %7264 = vmatprep.subr.bf16.mxu0 %v6234
    %7265 = vmatpush1.bf16.msra.mxu0 %v6233
    %7266 = vmatprep.subr.bf16.mxu0 %v6242
    %7267 = vmatpush1.bf16.msra.mxu0 %v6241
    %7268 = vmatprep.subr.bf16.mxu0 %v6250
    %7269 = vmatpush1.bf16.msra.mxu0 %v6249
    %7270 = vmatprep.mubr.bf16.mxu0 %v3650
    %7271 = vmatmul.mubr.bf16.gmra.mrb[0].mxu0 %v3649
    %v7272 = vpop.f32.mrb[0].mxu0
    %v7273 = vadd.f32 %v7230, %v7272
    %v7274 = vpop.f32.mrb[0].mxu0
    %v7275 = vadd.f32 %v7232, %v7274
    %v7276 = vpop.f32.mrb[0].mxu0
    %v7277 = vadd.f32 %v7234, %v7276
    %v7278 = vpop.f32.mrb[0].mxu0
    %v7279 = vadd.f32 %v7236, %v7278
    %7280 = vdwg.mxu0
    %7281 = vmatprep.subr.bf16.mxu0 %v5748
    %7282 = vmatpush1.bf16.msra.mxu0 %v5747
    %7283 = vmatprep.subr.bf16.mxu0 %v5756
    %7284 = vmatpush1.bf16.msra.mxu0 %v5755
    %7285 = vmatprep.subr.bf16.mxu0 %v5764
    %7286 = vmatpush1.bf16.msra.mxu0 %v5763
    %7287 = vmatprep.subr.bf16.mxu0 %v5772
    %7288 = vmatpush1.bf16.msra.mxu0 %v5771
    %7289 = vmatprep.subr.bf16.mxu0 %v5780
    %7290 = vmatpush1.bf16.msra.mxu0 %v5779
    %7291 = vmatprep.subr.bf16.mxu0 %v5788
    %7292 = vmatpush1.bf16.msra.mxu0 %v5787
    %7293 = vmatprep.subr.bf16.mxu0 %v5796
    %7294 = vmatpush1.bf16.msra.mxu0 %v5795
    %7295 = vmatprep.subr.bf16.mxu0 %v5804
    %7296 = vmatpush1.bf16.msra.mxu0 %v5803
    %7297 = vmatprep.subr.bf16.mxu0 %v5812
    %7298 = vmatpush1.bf16.msra.mxu0 %v5811
    %7299 = vmatprep.subr.bf16.mxu0 %v5820
    %7300 = vmatpush1.bf16.msra.mxu0 %v5819
    %7301 = vmatprep.subr.bf16.mxu0 %v5828
    %7302 = vmatpush1.bf16.msra.mxu0 %v5827
    %7303 = vmatprep.subr.bf16.mxu0 %v5836
    %7304 = vmatpush1.bf16.msra.mxu0 %v5835
    %7305 = vmatprep.subr.bf16.mxu0 %v5844
    %7306 = vmatpush1.bf16.msra.mxu0 %v5843
    %7307 = vmatprep.subr.bf16.mxu0 %v5852
    %7308 = vmatpush1.bf16.msra.mxu0 %v5851
    %7309 = vmatprep.subr.bf16.mxu0 %v5860
    %7310 = vmatpush1.bf16.msra.mxu0 %v5859
    %7311 = vmatprep.subr.bf16.mxu0 %v5868
    %7312 = vmatpush1.bf16.msra.mxu0 %v5867
    %7313 = vmatprep.mubr.bf16.mxu0 %v3644
    %7314 = vmatmul.mubr.bf16.gmra.mrb[0].mxu0 %v3643
    %v7315 = vpop.f32.mrb[0].mxu0
    %v7316 = vadd.f32 %v4192, %v7315
    %v7317 = vpop.f32.mrb[0].mxu0
    %v7318 = vadd.f32 %v4196, %v7317
    %v7319 = vpop.f32.mrb[0].mxu0
    %v7320 = vadd.f32 %v4192, %v7319
    %v7321 = vpop.f32.mrb[0].mxu0
    %v7322 = vadd.f32 %v4196, %v7321
    %7323 = vdwg.mxu0
    %7324 = vmatprep.subr.bf16.mxu0 %v5876
    %7325 = vmatpush1.bf16.msra.mxu0 %v5875
    %7326 = vmatprep.subr.bf16.mxu0 %v5884
    %7327 = vmatpush1.bf16.msra.mxu0 %v5883
    %7328 = vmatprep.subr.bf16.mxu0 %v5892
    %7329 = vmatpush1.bf16.msra.mxu0 %v5891
    %7330 = vmatprep.subr.bf16.mxu0 %v5900
    %7331 = vmatpush1.bf16.msra.mxu0 %v5899
    %7332 = vmatprep.subr.bf16.mxu0 %v5908
    %7333 = vmatpush1.bf16.msra.mxu0 %v5907
    %7334 = vmatprep.subr.bf16.mxu0 %v5916
    %7335 = vmatpush1.bf16.msra.mxu0 %v5915
    %7336 = vmatprep.subr.bf16.mxu0 %v5924
    %7337 = vmatpush1.bf16.msra.mxu0 %v5923
    %7338 = vmatprep.subr.bf16.mxu0 %v5932
    %7339 = vmatpush1.bf16.msra.mxu0 %v5931
    %7340 = vmatprep.subr.bf16.mxu0 %v5940
    %7341 = vmatpush1.bf16.msra.mxu0 %v5939
    %7342 = vmatprep.subr.bf16.mxu0 %v5948
    %7343 = vmatpush1.bf16.msra.mxu0 %v5947
    %7344 = vmatprep.subr.bf16.mxu0 %v5956
    %7345 = vmatpush1.bf16.msra.mxu0 %v5955
    %7346 = vmatprep.subr.bf16.mxu0 %v5964
    %7347 = vmatpush1.bf16.msra.mxu0 %v5963
    %7348 = vmatprep.subr.bf16.mxu0 %v5972
    %7349 = vmatpush1.bf16.msra.mxu0 %v5971
    %7350 = vmatprep.subr.bf16.mxu0 %v5980
    %7351 = vmatpush1.bf16.msra.mxu0 %v5979
    %7352 = vmatprep.subr.bf16.mxu0 %v5988
    %7353 = vmatpush1.bf16.msra.mxu0 %v5987
    %7354 = vmatprep.subr.bf16.mxu0 %v5996
    %7355 = vmatpush1.bf16.msra.mxu0 %v5995
    %7356 = vmatprep.mubr.bf16.mxu0 %v3646
    %7357 = vmatmul.mubr.bf16.gmra.mrb[0].mxu0 %v3645
    %v7358 = vpop.f32.mrb[0].mxu0
    %v7359 = vadd.f32 %v7316, %v7358
    %v7360 = vpop.f32.mrb[0].mxu0
    %v7361 = vadd.f32 %v7318, %v7360
    %v7362 = vpop.f32.mrb[0].mxu0
    %v7363 = vadd.f32 %v7320, %v7362
    %v7364 = vpop.f32.mrb[0].mxu0
    %v7365 = vadd.f32 %v7322, %v7364
    %7366 = vdwg.mxu0
    %7367 = vmatprep.subr.bf16.mxu0 %v6004
    %7368 = vmatpush1.bf16.msra.mxu0 %v6003
    %7369 = vmatprep.subr.bf16.mxu0 %v6012
    %7370 = vmatpush1.bf16.msra.mxu0 %v6011
    %7371 = vmatprep.subr.bf16.mxu0 %v6020
    %7372 = vmatpush1.bf16.msra.mxu0 %v6019
    %7373 = vmatprep.subr.bf16.mxu0 %v6028
    %7374 = vmatpush1.bf16.msra.mxu0 %v6027
    %7375 = vmatprep.subr.bf16.mxu0 %v6036
    %7376 = vmatpush1.bf16.msra.mxu0 %v6035
    %7377 = vmatprep.subr.bf16.mxu0 %v6044
    %7378 = vmatpush1.bf16.msra.mxu0 %v6043
    %7379 = vmatprep.subr.bf16.mxu0 %v6052
    %7380 = vmatpush1.bf16.msra.mxu0 %v6051
    %7381 = vmatprep.subr.bf16.mxu0 %v6060
    %7382 = vmatpush1.bf16.msra.mxu0 %v6059
    %7383 = vmatprep.subr.bf16.mxu0 %v6068
    %7384 = vmatpush1.bf16.msra.mxu0 %v6067
    %7385 = vmatprep.subr.bf16.mxu0 %v6076
    %7386 = vmatpush1.bf16.msra.mxu0 %v6075
    %7387 = vmatprep.subr.bf16.mxu0 %v6084
    %7388 = vmatpush1.bf16.msra.mxu0 %v6083
    %7389 = vmatprep.subr.bf16.mxu0 %v6092
    %7390 = vmatpush1.bf16.msra.mxu0 %v6091
    %7391 = vmatprep.subr.bf16.mxu0 %v6100
    %7392 = vmatpush1.bf16.msra.mxu0 %v6099
    %7393 = vmatprep.subr.bf16.mxu0 %v6108
    %7394 = vmatpush1.bf16.msra.mxu0 %v6107
    %7395 = vmatprep.subr.bf16.mxu0 %v6116
    %7396 = vmatpush1.bf16.msra.mxu0 %v6115
    %7397 = vmatprep.subr.bf16.mxu0 %v6124
    %7398 = vmatpush1.bf16.msra.mxu0 %v6123
    %7399 = vmatprep.mubr.bf16.mxu0 %v3648
    %7400 = vmatmul.mubr.bf16.gmra.mrb[0].mxu0 %v3647
    %v7401 = vpop.f32.mrb[0].mxu0
    %v7402 = vadd.f32 %v7359, %v7401
    %v7403 = vpop.f32.mrb[0].mxu0
    %v7404 = vadd.f32 %v7361, %v7403
    %v7405 = vpop.f32.mrb[0].mxu0
    %v7406 = vadd.f32 %v7363, %v7405
    %v7407 = vpop.f32.mrb[0].mxu0
    %v7408 = vadd.f32 %v7365, %v7407
    %7409 = vdwg.mxu0
    %7410 = vmatprep.subr.bf16.mxu0 %v6132
    %7411 = vmatpush1.bf16.msra.mxu0 %v6131
    %7412 = vmatprep.subr.bf16.mxu0 %v6140
    %7413 = vmatpush1.bf16.msra.mxu0 %v6139
    %7414 = vmatprep.subr.bf16.mxu0 %v6148
    %7415 = vmatpush1.bf16.msra.mxu0 %v6147
    %7416 = vmatprep.subr.bf16.mxu0 %v6156
    %7417 = vmatpush1.bf16.msra.mxu0 %v6155
    %7418 = vmatprep.subr.bf16.mxu0 %v6164
    %7419 = vmatpush1.bf16.msra.mxu0 %v6163
    %7420 = vmatprep.subr.bf16.mxu0 %v6172
    %7421 = vmatpush1.bf16.msra.mxu0 %v6171
    %7422 = vmatprep.subr.bf16.mxu0 %v6180
    %7423 = vmatpush1.bf16.msra.mxu0 %v6179
    %7424 = vmatprep.subr.bf16.mxu0 %v6188
    %7425 = vmatpush1.bf16.msra.mxu0 %v6187
    %7426 = vmatprep.subr.bf16.mxu0 %v6196
    %7427 = vmatpush1.bf16.msra.mxu0 %v6195
    %7428 = vmatprep.subr.bf16.mxu0 %v6204
    %7429 = vmatpush1.bf16.msra.mxu0 %v6203
    %7430 = vmatprep.subr.bf16.mxu0 %v6212
    %7431 = vmatpush1.bf16.msra.mxu0 %v6211
    %7432 = vmatprep.subr.bf16.mxu0 %v6220
    %7433 = vmatpush1.bf16.msra.mxu0 %v6219
    %7434 = vmatprep.subr.bf16.mxu0 %v6228
    %7435 = vmatpush1.bf16.msra.mxu0 %v6227
    %7436 = vmatprep.subr.bf16.mxu0 %v6236
    %7437 = vmatpush1.bf16.msra.mxu0 %v6235
    %7438 = vmatprep.subr.bf16.mxu0 %v6244
    %7439 = vmatpush1.bf16.msra.mxu0 %v6243
    %7440 = vmatprep.subr.bf16.mxu0 %v6252
    %7441 = vmatpush1.bf16.msra.mxu0 %v6251
    %7442 = vmatprep.mubr.bf16.mxu0 %v3650
    %7443 = vmatmul.mubr.bf16.gmra.mrb[0].mxu0 %v3649
    %v7444 = vpop.f32.mrb[0].mxu0
    %v7445 = vadd.f32 %v7402, %v7444
    %v7446 = vpop.f32.mrb[0].mxu0
    %v7447 = vadd.f32 %v7404, %v7446
    %v7448 = vpop.f32.mrb[0].mxu0
    %v7449 = vadd.f32 %v7406, %v7448
    %v7450 = vpop.f32.mrb[0].mxu0
    %v7451 = vadd.f32 %v7408, %v7450
    %7452 = vdwg.mxu0
    %v7453 = vtanh.pop %v6929
    %v7454 = vtanh.pop %v6931
    %v7455 = vtanh.pop %v7101
    %v7456 = vtanh.pop %v7103
    %v7457 = vtanh.pop %v7273
    %v7458 = vtanh.pop %v7275
    %v7459 = vtanh.pop %v7445
    %v7460 = vtanh.pop %v7447
    %v7461 = vtanh.pop %v6933
    %v7462 = vtanh.pop %v6935
    %v7463 = vtanh.pop %v7105
    %v7464 = vtanh.pop %v7107
    %v7465 = vtanh.pop %v7277
    %v7466 = vtanh.pop %v7279
    %v7467 = vtanh.pop %v7449
    %v7468 = vtanh.pop %v7451
    %7469 = vst [vmem:[%s15] sm:$0xff] %v7453
    %7470 = vst [vmem:[%s15 + $0x8] sm:$0xff] %v7454
    %7471 = vst [vmem:[%s15 + $0x10] sm:$0xff] %v7455
    %7472 = vst [vmem:[%s15 + $0x18] sm:$0xff] %v7456
    %7473 = vst [vmem:[%s15 + $0x20] sm:$0xff] %v7457
    %7474 = vst [vmem:[%s15 + $0x28] sm:$0xff] %v7458
    %7475 = vst [vmem:[%s15 + $0x30] sm:$0xff] %v7459
    %7476 = vst [vmem:[%s15 + $0x38] sm:$0xff] %v7460
    %7477 = vst [vmem:[%s15 + $0x40] sm:$0xff] %v7461
    %7478 = vst [vmem:[%s15 + $0x48] sm:$0xff] %v7462
    %7479 = vst [vmem:[%s15 + $0x50] sm:$0xff] %v7463
    %7480 = vst [vmem:[%s15 + $0x58] sm:$0xff] %v7464
    %7481 = vst [vmem:[%s15 + $0x60] sm:$0xff] %v7465
    %7482 = vst [vmem:[%s15 + $0x68] sm:$0xff] %v7466
    %7483 = vst [vmem:[%s15 + $0x70] sm:$0xff] %v7467
    %7484 = vst [vmem:[%s15 + $0x78] sm:$0xff] %v7468
    // Predicated region
    $region114: #{generator_forward.1} parent=1 // pred_check
      _
    $region115: #{generator_forward.1} parent=1 // pred_check_branch
      %7486 = sbr.rel (0) target = $region117
    $region116: #{generator_forward.1} parent=1 // pred_region
      _
    $region117: #{generator_forward.1} parent=1 // pred_fallthru
      _
    // Predicated region
    $region118: #{generator_forward.1} parent=1 // pred_check
      _
    $region119: #{generator_forward.1} parent=1 // pred_check_branch
      %7488 = sbr.rel (0) target = $region121
    $region120: #{generator_forward.1} parent=1 // pred_region
      _
    $region121: #{generator_forward.1} parent=1 // pred_fallthru
      _
    %7489 = vsyncpa [#allocation3], 1
    %7490 = vsyncpa [#allocation5], 1
    %7491 = vsyncpa [#allocation8], 1
    %7492 = vsyncpa [#allocation11], 1
    %7493 = vsyncpa [#allocation14], 1
    %7494 = vsyncpa [#allocation17], 1
    %7495 = vsyncpa [#allocation20], 1

</llo_original>
